<compile_context>
chip_gen: v5e
topology: v5e:2x2
jax: 0.10.0
libtpu: 0.0.40
codegen_flags: <defaults>
</compile_context>

<pallas_src>
import jax
import jax.numpy as jnp
from jax import lax
from jax.experimental import pallas as pl
from jax.experimental.pallas import tpu as pltpu

# ---------------- hyper-parameters (small, consistent with the module) ----------------
B, T = 2, 8                 # batch, sequence length
B_PAD = 8                   # batch rows padded to f32 sublane count
MAX_CHARS = 16              # chars per word
VOCAB, CHAR_VOCAB = 50, 30
DIM_W = 32                  # params.dim_w
DIM_CHAR = 16
N_CHAR_FILTERS = 16         # params.n_char_filters
CHAR_K = 3                  # char conv kernel width
CONV_P = MAX_CHARS - CHAR_K + 1   # valid conv positions = 14
DIM_RNN = 32                # params.dim_rnn (bidirectional -> CRF input = 2*dim_rnn)
NTAGS = 73                  # hard-coded in MyCRF(2*dim_rnn, 73, DEVICE)
NTAGS_PAD = 128             # lane-padded tag dimension
NEG = -1e9

DIM_IN = DIM_W + N_CHAR_FILTERS   # params.word_total_dim = 48
TBP = T * B_PAD                   # time-major row count (t*B_PAD + b) = 64


# =====================================================================================
# Fused kernel: char-CNN -> BiGRU (length-masked packed semantics) -> CRF NLL
# =====================================================================================
def ner_fused_kernel(char_win_ref, char_w_ref, char_b_ref,
                     word_ref,
                     wihw_ref, wihc_ref, bih_ref,
                     whhf_ref, whhb_ref, bhhf_ref, bhhb_ref,
                     wef_ref, web_ref, be_ref,
                     trans_ref, start_ref, end_ref,
                     lab_ref, len_ref,
                     out_ref,
                     hidf_ref, hidb_ref):
    TB = word_ref.shape[0]                 # T*B_PAD time-major rows (t*B_PAD + b)
    Bn = out_ref.shape[0]                  # padded batch (8 sublanes)
    Tn = TB // Bn
    H = whhf_ref.shape[0]
    N = trans_ref.shape[0]
    F = char_w_ref.shape[1]
    P = char_win_ref.shape[0] // TB

    # ---------------- char CNN: one im2col matmul (p-major rows) + bias + ReLU + max-pool
    conv = jnp.dot(char_win_ref[...], char_w_ref[...],
                   preferred_element_type=jnp.float32)            # (P*TB, F)
    conv = jnp.maximum(conv + char_b_ref[...], 0.0)
    # p-major layout -> leading-axis reduce is layout-free, pure VPU max over P tiles
    char_feat = jnp.max(conv.reshape(P, TB, F), axis=0)            # (TB, F)

    # ---------------- WordRep + hoisted input-side gates (both directions, no concat) ----
    gx = (jnp.dot(word_ref[...], wihw_ref[...], preferred_element_type=jnp.float32)
          + jnp.dot(char_feat.astype(jnp.bfloat16), wihc_ref[...],
                    preferred_element_type=jnp.float32)
          + bih_ref[...])                                          # (TB, 6H)

    # loop-invariant hoists
    whh_f = whhf_ref[...]                  # (H, 3H) bf16
    whh_b = whhb_ref[...]
    bhh_f = bhhf_ref[...]                  # (1, 3H) f32
    bhh_b = bhhb_ref[...]
    lens_row = len_ref[...]                # (TB, 1) int32, length per row
    lens_b = lens_row[0:Bn, :]             # (B_PAD, 1) per-sequence length

    # ---------------- bidirectional GRU: fully-unrolled, per-step writes to VMEM scratch --
    h_f = jnp.zeros((Bn, H), jnp.float32)
    h_b = jnp.zeros((Bn, H), jnp.float32)

    for s in range(Tn):
        t_f = s
        t_b = Tn - 1 - s

        gh_f = jnp.dot(h_f.astype(jnp.bfloat16), whh_f,
                       preferred_element_type=jnp.float32) + bhh_f       # (B, 3H)
        gh_b = jnp.dot(h_b.astype(jnp.bfloat16), whh_b,
                       preferred_element_type=jnp.float32) + bhh_b       # (B, 3H)

        # forward direction (gate columns 0 .. 3H of gx)
        r0 = t_f * Bn
        r = jax.nn.sigmoid(gx[r0:r0 + Bn, 0:H] + gh_f[:, 0:H])
        z = jax.nn.sigmoid(gx[r0:r0 + Bn, H:2 * H] + gh_f[:, H:2 * H])
        n = jnp.tanh(gx[r0:r0 + Bn, 2 * H:3 * H] + r * gh_f[:, 2 * H:3 * H])
        hnew_f = (1.0 - z) * n + z * h_f

        # backward direction (gate columns 3H .. 6H of gx)
        r0 = t_b * Bn
        r = jax.nn.sigmoid(gx[r0:r0 + Bn, 3 * H:4 * H] + gh_b[:, 0:H])
        z = jax.nn.sigmoid(gx[r0:r0 + Bn, 4 * H:5 * H] + gh_b[:, H:2 * H])
        n = jnp.tanh(gx[r0:r0 + Bn, 5 * H:6 * H] + r * gh_b[:, 2 * H:3 * H])
        hnew_b = (1.0 - z) * n + z * h_b

        mask_f = lens_b > t_f                       # (B,1) bool
        mask_b = lens_b > t_b
        h_f = jnp.where(mask_f, hnew_f, h_f)        # freeze state past the sequence end
        h_b = jnp.where(mask_b, hnew_b, h_b)
        hidf_ref[t_f * Bn:(t_f + 1) * Bn, :] = jnp.where(mask_f, hnew_f, 0.0)
        hidb_ref[t_b * Bn:(t_b + 1) * Bn, :] = jnp.where(mask_b, hnew_b, 0.0)

    # ---------------- emissions (hidden2tag), no lane concat ----------------
    emis = (jnp.dot(hidf_ref[...].astype(jnp.bfloat16), wef_ref[...],
                    preferred_element_type=jnp.float32)
            + jnp.dot(hidb_ref[...].astype(jnp.bfloat16), web_ref[...],
                      preferred_element_type=jnp.float32)
            + be_ref[...])                                          # (TB, N)

    start = start_ref[...]
    end = end_ref[...]

    # ---------------- gold path score FIRST (uses trans; exp_trans not yet live) ----------
    trans = trans_ref[...]
    lab = lab_ref[...]                                              # (TB,1) int32
    oh = (lax.broadcasted_iota(jnp.int32, (TB, N), 1) == lab).astype(jnp.float32)
    t_of_row = lax.broadcasted_iota(jnp.int32, (Tn, Bn, 1), 0).reshape(TB, 1)
    validf = (t_of_row < lens_row).astype(jnp.float32)              # (TB,1)

    emit_rows = jnp.sum(oh * emis, axis=-1, keepdims=True) * validf
    emit_gold = jnp.sum(emit_rows.reshape(Tn, Bn, 1), axis=0)       # (B,1)

    pm = jnp.dot(oh[0:(Tn - 1) * Bn, :], trans,
                 preferred_element_type=jnp.float32)                # ((T-1)*B, N)
    ts_rows = jnp.sum(pm * oh[Bn:, :], axis=-1, keepdims=True) * validf[Bn:, :]
    trans_gold = jnp.sum(ts_rows.reshape(Tn - 1, Bn, 1), axis=0)    # (B,1)

    start_gold = jnp.sum(oh[0:Bn, :] * start, axis=-1, keepdims=True)

    lastf = (t_of_row == (lens_row - 1)).astype(jnp.float32)
    end_rows = jnp.sum(oh * end, axis=-1, keepdims=True) * lastf
    end_gold = jnp.sum(end_rows.reshape(Tn, Bn, 1), axis=0)         # (B,1)

    gold = emit_gold + trans_gold + start_gold + end_gold

    # ---------------- log partition: forward recursion, logsumexp-as-matmul (f32) ---------
    trans2 = trans_ref[...]                       # re-read; trans & exp_trans not co-live
    c = jnp.max(trans2, axis=0, keepdims=True)    # per-column max shift -> exp cannot ovf
    exp_trans = jnp.exp(trans2 - c)               # padded rows -> 0, padded cols -> 1

    alpha = start + emis[0:Bn, :]                 # (B, N)
    for t in range(1, Tn):
        emit_t = emis[t * Bn:(t + 1) * Bn, :]
        m = jnp.max(alpha, axis=-1, keepdims=True)
        s_mat = jnp.dot(jnp.exp(alpha - m), exp_trans,
                        preferred_element_type=jnp.float32)          # (B, N) MXU
        lse = m + c + jnp.log(jnp.maximum(s_mat, 1e-30))   # clamp keeps padded lanes finite
        alpha = jnp.where(lens_b > t, emit_t + lse, alpha)            # length mask
    fin = alpha + end
    mZ = jnp.max(fin, axis=-1, keepdims=True)
    logZ = mZ + jnp.log(jnp.sum(jnp.exp(fin - mZ), axis=-1, keepdims=True))   # (B,1)

    out_ref[...] = logZ - gold


def _zero_map(nd):
    def im(i):
        return (0,) * nd
    return im


def _full_spec(arr):
    return pl.BlockSpec(arr.shape, _zero_map(arr.ndim))


def ner_crf_nll(char_win, word_flat, labels, lens_row, p):
    args = (char_win, p["char_w"], p["char_b"], word_flat,
            p["wih_w"], p["wih_c"], p["bih"],
            p["whh_f"], p["whh_b"], p["bhh_f"], p["bhh_b"],
            p["we_f"], p["we_b"], p["be"],
            p["trans"], p["start"], p["end"],
            labels, lens_row)
    return pl.pallas_call(
        ner_fused_kernel,
        out_shape=jax.ShapeDtypeStruct((B_PAD, 1), jnp.float32),
        grid=(1,),
        in_specs=[_full_spec(a) for a in args],
        out_specs=pl.BlockSpec((B_PAD, 1), _zero_map(2)),
        scratch_shapes=[pltpu.VMEM((TBP, DIM_RNN), jnp.float32),   # hid_f
                        pltpu.VMEM((TBP, DIM_RNN), jnp.float32)],  # hid_b
        compiler_params=pltpu.CompilerParams(dimension_semantics=("arbitrary",)),
    )(*args)


# =====================================================================================
# Parameters (deterministic, synthetic) and the composed forward pass
# =====================================================================================
def init_params(key):
    ks = jax.random.split(key, 20)
    s = 0.1
    H = DIM_RNN
    p = {}
    p["Wemb"] = jax.random.normal(ks[0], (VOCAB, DIM_W), jnp.float32) * s
    p["Cemb"] = jax.random.normal(ks[1], (CHAR_VOCAB, DIM_CHAR), jnp.float32) * s
    p["char_w"] = ((jax.random.normal(ks[2], (CHAR_K, DIM_CHAR, N_CHAR_FILTERS), jnp.float32) * s)
                   .reshape(CHAR_K * DIM_CHAR, N_CHAR_FILTERS)
                   .astype(jnp.bfloat16))                                 # im2col weight
    p["char_b"] = jax.random.normal(ks[3], (1, N_CHAR_FILTERS), jnp.float32) * s

    def pack3(w):                       # (3, In, H) -> (In, 3H), gate order [r|z|n]
        return jnp.concatenate([w[0], w[1], w[2]], axis=1)

    wih_f = jax.random.normal(ks[4], (3, DIM_IN, H), jnp.float32) * s
    whh_f = jax.random.normal(ks[5], (3, H, H), jnp.float32) * s
    bih_f = jax.random.normal(ks[6], (3, 1, H), jnp.float32) * s
    bhh_f = jax.random.normal(ks[7], (3, 1, H), jnp.float32) * s
    wih_b = jax.random.normal(ks[8], (3, DIM_IN, H), jnp.float32) * s
    whh_b = jax.random.normal(ks[9], (3, H, H), jnp.float32) * s
    bih_b = jax.random.normal(ks[10], (3, 1, H), jnp.float32) * s
    bhh_b = jax.random.normal(ks[11], (3, 1, H), jnp.float32) * s

    # input-side gates packed [fwd gates | bwd gates], split word / char rows (no concat
    # in-kernel); hidden-side and emission weights split per direction.
    wih = jnp.concatenate([pack3(wih_f), pack3(wih_b)], axis=1)           # (48, 6H)
    p["wih_w"] = wih[:DIM_W].astype(jnp.bfloat16)                         # (DIM_W, 6H)
    p["wih_c"] = wih[DIM_W:].astype(jnp.bfloat16)                         # (F, 6H)
    p["bih"] = jnp.concatenate([pack3(bih_f), pack3(bih_b)], axis=1)      # (1, 6H)
    p["whh_f"] = pack3(whh_f).astype(jnp.bfloat16)                        # (H, 3H)
    p["whh_b"] = pack3(whh_b).astype(jnp.bfloat16)
    p["bhh_f"] = pack3(bhh_f)                                             # (1, 3H)
    p["bhh_b"] = pack3(bhh_b)

    pad = NTAGS_PAD - NTAGS
    we = jax.random.normal(ks[12], (2 * H, NTAGS), jnp.float32) * s
    we = jnp.pad(we, ((0, 0), (0, pad)))
    p["we_f"] = we[:H].astype(jnp.bfloat16)                               # (H, N_PAD)
    p["we_b"] = we[H:].astype(jnp.bfloat16)
    be = jax.random.normal(ks[13], (NTAGS,), jnp.float32) * s
    p["be"] = jnp.pad(be, (0, pad), constant_values=NEG).reshape(1, NTAGS_PAD)
    tr = jax.random.normal(ks[14], (NTAGS, NTAGS), jnp.float32) * s
    p["trans"] = jnp.pad(tr, ((0, pad), (0, pad)), constant_values=NEG)
    st = jax.random.normal(ks[15], (NTAGS,), jnp.float32) * s
    p["start"] = jnp.pad(st, (0, pad), constant_values=NEG).reshape(1, NTAGS_PAD)
    en = jax.random.normal(ks[16], (NTAGS,), jnp.float32) * s
    p["end"] = jnp.pad(en, (0, pad), constant_values=NEG).reshape(1, NTAGS_PAD)
    return p


def ner_forward(params, Word_ints, Char_ids, Label_y, Sent_length):
    # --- pad batch rows to B_PAD sublanes (dummy sequences with length 0, ignored below) --
    nb = Word_ints.shape[0]
    padB = B_PAD - nb
    Wp = jnp.pad(Word_ints, ((0, padB), (0, 0)))
    Cp = jnp.pad(Char_ids, ((0, padB), (0, 0), (0, 0)))
    Lp = jnp.pad(Label_y, ((0, padB), (0, 0)))
    SL = jnp.pad(Sent_length.astype(jnp.int32), (0, padB))

    # --- WordRep embedding gathers are JAX glue (data-dependent table lookups);
    #     nn.Dropout layers are identity in eval mode. ---
    word_emb = jnp.take(params["Wemb"], Wp, axis=0)                        # (B_PAD,T,DIM_W)
    word_flat = (jnp.transpose(word_emb, (1, 0, 2))
                 .reshape(TBP, DIM_W).astype(jnp.bfloat16))                # time-major rows

    char_ids_tb = jnp.transpose(Cp, (1, 0, 2)).reshape(TBP, MAX_CHARS)
    char_emb = jnp.take(params["Cemb"], char_ids_tb, axis=0)               # (TB, C, Dc)
    # im2col layout for the char conv, p-major rows (row = p*TB + tb); pure layout glue
    win = jnp.stack([char_emb[:, j:j + CHAR_K, :].reshape(TBP, CHAR_K * DIM_CHAR)
                     for j in range(CONV_P)], axis=0)
    char_win = win.reshape(CONV_P * TBP, CHAR_K * DIM_CHAR).astype(jnp.bfloat16)

    labels = jnp.transpose(Lp, (1, 0)).reshape(TBP, 1).astype(jnp.int32)
    lens_row = jnp.broadcast_to(SL.reshape(1, B_PAD), (T, B_PAD)).reshape(TBP, 1)

    nll = ner_crf_nll(char_win, word_flat, labels, lens_row, params)       # (B_PAD,1)
    return jnp.mean(nll[:nb, 0])                                           # scalar crf_loss


if __name__ == "__main__":
    key = jax.random.PRNGKey(0)
    kp, kw, kc, kl = jax.random.split(key, 4)
    params = init_params(kp)
    Word_ints = jax.random.randint(kw, (B, T), 0, VOCAB, dtype=jnp.int32)
    Char_ids = jax.random.randint(kc, (B, T, MAX_CHARS), 0, CHAR_VOCAB, dtype=jnp.int32)
    Label_y = jax.random.randint(kl, (B, T), 0, NTAGS, dtype=jnp.int32)
    Sent_length = jnp.array([T, 5], dtype=jnp.int32)

    loss = jax.jit(ner_forward)(params, Word_ints, Char_ids, Label_y, Sent_length)
    loss = jax.block_until_ready(loss)
    assert loss.shape == () and bool(jnp.isfinite(loss))
    print("KERNEL_OK")
</pallas_src>

<mosaic_0001>
module attributes {stable_mosaic.version = 11 : i64} {
  func.func @ner_fused_kernel(%arg0: i32, %arg1: memref<896x48xbf16, #tpu.memory_space<vmem>>, %arg2: memref<48x16xbf16, #tpu.memory_space<vmem>>, %arg3: memref<1x16xf32, #tpu.memory_space<vmem>>, %arg4: memref<64x32xbf16, #tpu.memory_space<vmem>>, %arg5: memref<32x192xbf16, #tpu.memory_space<vmem>>, %arg6: memref<16x192xbf16, #tpu.memory_space<vmem>>, %arg7: memref<1x192xf32, #tpu.memory_space<vmem>>, %arg8: memref<32x96xbf16, #tpu.memory_space<vmem>>, %arg9: memref<32x96xbf16, #tpu.memory_space<vmem>>, %arg10: memref<1x96xf32, #tpu.memory_space<vmem>>, %arg11: memref<1x96xf32, #tpu.memory_space<vmem>>, %arg12: memref<32x128xbf16, #tpu.memory_space<vmem>>, %arg13: memref<32x128xbf16, #tpu.memory_space<vmem>>, %arg14: memref<1x128xf32, #tpu.memory_space<vmem>>, %arg15: memref<128x128xf32, #tpu.memory_space<vmem>>, %arg16: memref<1x128xf32, #tpu.memory_space<vmem>>, %arg17: memref<1x128xf32, #tpu.memory_space<vmem>>, %arg18: memref<64x1xi32, #tpu.memory_space<vmem>>, %arg19: memref<64x1xi32, #tpu.memory_space<vmem>>, %arg20: memref<8x1xf32, #tpu.memory_space<vmem>>, %arg21: memref<64x32xf32, #tpu.memory_space<vmem>>, %arg22: memref<64x32xf32, #tpu.memory_space<vmem>>) attributes {dimension_semantics = [#tpu.dimension_semantics<arbitrary>], iteration_bounds = array<i64: 1>, scalar_prefetch = 0 : i64, scratch_operands = 2 : i64, tpu.core_type = #tpu.core_type<tc>, window_params = [{pipeline_mode = #tpu.pipeline_mode<synchronous>, transform_indices = @transform_0, window_bounds = array<i64: 896, 48>}, {pipeline_mode = #tpu.pipeline_mode<synchronous>, transform_indices = @transform_1, window_bounds = array<i64: 48, 16>}, {pipeline_mode = #tpu.pipeline_mode<synchronous>, transform_indices = @transform_2, window_bounds = array<i64: 1, 16>}, {pipeline_mode = #tpu.pipeline_mode<synchronous>, transform_indices = @transform_3, window_bounds = array<i64: 64, 32>}, {pipeline_mode = #tpu.pipeline_mode<synchronous>, transform_indices = @transform_4, window_bounds = array<i64: 32, 192>}, {pipeline_mode = #tpu.pipeline_mode<synchronous>, transform_indices = @transform_5, window_bounds = array<i64: 16, 192>}, {pipeline_mode = #tpu.pipeline_mode<synchronous>, transform_indices = @transform_6, window_bounds = array<i64: 1, 192>}, {pipeline_mode = #tpu.pipeline_mode<synchronous>, transform_indices = @transform_7, window_bounds = array<i64: 32, 96>}, {pipeline_mode = #tpu.pipeline_mode<synchronous>, transform_indices = @transform_8, window_bounds = array<i64: 32, 96>}, {pipeline_mode = #tpu.pipeline_mode<synchronous>, transform_indices = @transform_9, window_bounds = array<i64: 1, 96>}, {pipeline_mode = #tpu.pipeline_mode<synchronous>, transform_indices = @transform_10, window_bounds = array<i64: 1, 96>}, {pipeline_mode = #tpu.pipeline_mode<synchronous>, transform_indices = @transform_11, window_bounds = array<i64: 32, 128>}, {pipeline_mode = #tpu.pipeline_mode<synchronous>, transform_indices = @transform_12, window_bounds = array<i64: 32, 128>}, {pipeline_mode = #tpu.pipeline_mode<synchronous>, transform_indices = @transform_13, window_bounds = array<i64: 1, 128>}, {pipeline_mode = #tpu.pipeline_mode<synchronous>, transform_indices = @transform_14, window_bounds = array<i64: 128, 128>}, {pipeline_mode = #tpu.pipeline_mode<synchronous>, transform_indices = @transform_15, window_bounds = array<i64: 1, 128>}, {pipeline_mode = #tpu.pipeline_mode<synchronous>, transform_indices = @transform_16, window_bounds = array<i64: 1, 128>}, {pipeline_mode = #tpu.pipeline_mode<synchronous>, transform_indices = @transform_17, window_bounds = array<i64: 64, 1>}, {pipeline_mode = #tpu.pipeline_mode<synchronous>, transform_indices = @transform_18, window_bounds = array<i64: 64, 1>}, {pipeline_mode = #tpu.pipeline_mode<synchronous>, transform_indices = @transform_19, window_bounds = array<i64: 8, 1>}]} {
    %c0 = arith.constant 0 : index
    %c0_0 = arith.constant 0 : index
    %0 = vector.load %arg1[%c0, %c0_0] : memref<896x48xbf16, #tpu.memory_space<vmem>>, vector<896x48xbf16>
    %c0_1 = arith.constant 0 : index
    %c0_2 = arith.constant 0 : index
    %1 = vector.load %arg2[%c0_1, %c0_2] : memref<48x16xbf16, #tpu.memory_space<vmem>>, vector<48x16xbf16>
    %cst = arith.constant dense<0.000000e+00> : vector<896x16xf32>
    %2 = tpu.matmul %0, %1, %cst {dimension_numbers = #tpu.dot_dimension_numbers<[1], [0], [0], [1], [0, 0, 1, 1], [], []>} : vector<896x48xbf16>, vector<48x16xbf16>, vector<896x16xf32> -> vector<896x16xf32>
    %c0_3 = arith.constant 0 : index
    %c0_4 = arith.constant 0 : index
    %3 = vector.load %arg3[%c0_3, %c0_4] : memref<1x16xf32, #tpu.memory_space<vmem>>, vector<1x16xf32>
    %4 = vector.broadcast %3 : vector<1x16xf32> to vector<896x16xf32>
    %5 = arith.addf %2, %4 : vector<896x16xf32>
    %cst_5 = arith.constant 0.000000e+00 : f32
    %6 = vector.broadcast %cst_5 : f32 to vector<896x16xf32>
    %7 = arith.maximumf %5, %6 : vector<896x16xf32>
    %8 = vector.shape_cast %7 : vector<896x16xf32> to vector<14x64x16xf32>
    %cst_6 = arith.constant dense<0xFF800000> : vector<64x16xf32>
    %9 = vector.multi_reduction <maximumf>, %8, %cst_6 [0] : vector<14x64x16xf32> to vector<64x16xf32>
    %c0_7 = arith.constant 0 : index
    %c0_8 = arith.constant 0 : index
    %10 = vector.load %arg4[%c0_7, %c0_8] : memref<64x32xbf16, #tpu.memory_space<vmem>>, vector<64x32xbf16>
    %c0_9 = arith.constant 0 : index
    %c0_10 = arith.constant 0 : index
    %11 = vector.load %arg5[%c0_9, %c0_10] : memref<32x192xbf16, #tpu.memory_space<vmem>>, vector<32x192xbf16>
    %cst_11 = arith.constant dense<0.000000e+00> : vector<64x192xf32>
    %12 = tpu.matmul %10, %11, %cst_11 {dimension_numbers = #tpu.dot_dimension_numbers<[1], [0], [0], [1], [0, 0, 1, 1], [], []>} : vector<64x32xbf16>, vector<32x192xbf16>, vector<64x192xf32> -> vector<64x192xf32>
    %13 = arith.truncf %9 : vector<64x16xf32> to vector<64x16xbf16>
    %c0_12 = arith.constant 0 : index
    %c0_13 = arith.constant 0 : index
    %14 = vector.load %arg6[%c0_12, %c0_13] : memref<16x192xbf16, #tpu.memory_space<vmem>>, vector<16x192xbf16>
    %cst_14 = arith.constant dense<0.000000e+00> : vector<64x192xf32>
    %15 = tpu.matmul %13, %14, %cst_14 {dimension_numbers = #tpu.dot_dimension_numbers<[1], [0], [0], [1], [0, 0, 1, 1], [], []>} : vector<64x16xbf16>, vector<16x192xbf16>, vector<64x192xf32> -> vector<64x192xf32>
    %16 = arith.addf %12, %15 : vector<64x192xf32>
    %c0_15 = arith.constant 0 : index
    %c0_16 = arith.constant 0 : index
    %17 = vector.load %arg7[%c0_15, %c0_16] : memref<1x192xf32, #tpu.memory_space<vmem>>, vector<1x192xf32>
    %18 = vector.broadcast %17 : vector<1x192xf32> to vector<64x192xf32>
    %19 = arith.addf %16, %18 : vector<64x192xf32>
    %c0_17 = arith.constant 0 : index
    %c0_18 = arith.constant 0 : index
    %20 = vector.load %arg8[%c0_17, %c0_18] : memref<32x96xbf16, #tpu.memory_space<vmem>>, vector<32x96xbf16>
    %c0_19 = arith.constant 0 : index
    %c0_20 = arith.constant 0 : index
    %21 = vector.load %arg9[%c0_19, %c0_20] : memref<32x96xbf16, #tpu.memory_space<vmem>>, vector<32x96xbf16>
    %c0_21 = arith.constant 0 : index
    %c0_22 = arith.constant 0 : index
    %22 = vector.load %arg10[%c0_21, %c0_22] : memref<1x96xf32, #tpu.memory_space<vmem>>, vector<1x96xf32>
    %c0_23 = arith.constant 0 : index
    %c0_24 = arith.constant 0 : index
    %23 = vector.load %arg11[%c0_23, %c0_24] : memref<1x96xf32, #tpu.memory_space<vmem>>, vector<1x96xf32>
    %c0_25 = arith.constant 0 : index
    %c0_26 = arith.constant 0 : index
    %24 = vector.load %arg19[%c0_25, %c0_26] : memref<64x1xi32, #tpu.memory_space<vmem>>, vector<64x1xi32>
    %25 = vector.extract_strided_slice %24 {offsets = [0, 0], sizes = [8, 1], strides = [1, 1]} : vector<64x1xi32> to vector<8x1xi32>
    %cst_27 = arith.constant 0.000000e+00 : f32
    %26 = vector.broadcast %cst_27 : f32 to vector<8x32xf32>
    %cst_28 = arith.constant 0.000000e+00 : f32
    %27 = vector.broadcast %cst_28 : f32 to vector<8x32xf32>
    %28 = arith.truncf %26 : vector<8x32xf32> to vector<8x32xbf16>
    %cst_29 = arith.constant dense<0.000000e+00> : vector<8x96xf32>
    %29 = tpu.matmul %28, %20, %cst_29 {dimension_numbers = #tpu.dot_dimension_numbers<[1], [0], [0], [1], [0, 0, 1, 1], [], []>} : vector<8x32xbf16>, vector<32x96xbf16>, vector<8x96xf32> -> vector<8x96xf32>
    %30 = vector.broadcast %22 : vector<1x96xf32> to vector<8x96xf32>
    %31 = arith.addf %29, %30 : vector<8x96xf32>
    %32 = arith.truncf %27 : vector<8x32xf32> to vector<8x32xbf16>
    %cst_30 = arith.constant dense<0.000000e+00> : vector<8x96xf32>
    %33 = tpu.matmul %32, %21, %cst_30 {dimension_numbers = #tpu.dot_dimension_numbers<[1], [0], [0], [1], [0, 0, 1, 1], [], []>} : vector<8x32xbf16>, vector<32x96xbf16>, vector<8x96xf32> -> vector<8x96xf32>
    %34 = vector.broadcast %23 : vector<1x96xf32> to vector<8x96xf32>
    %35 = arith.addf %33, %34 : vector<8x96xf32>
    %36 = vector.extract_strided_slice %19 {offsets = [0, 0], sizes = [8, 32], strides = [1, 1]} : vector<64x192xf32> to vector<8x32xf32>
    %37 = vector.extract_strided_slice %31 {offsets = [0, 0], sizes = [8, 32], strides = [1, 1]} : vector<8x96xf32> to vector<8x32xf32>
    %38 = arith.addf %36, %37 : vector<8x32xf32>
    %39 = arith.negf %38 : vector<8x32xf32>
    %40 = math.exp %39 : vector<8x32xf32>
    %cst_31 = arith.constant 1.000000e+00 : f32
    %41 = vector.broadcast %cst_31 : f32 to vector<8x32xf32>
    %42 = arith.addf %41, %40 : vector<8x32xf32>
    %43 = arith.divf %41, %42 : vector<8x32xf32>
    %44 = vector.extract_strided_slice %19 {offsets = [0, 32], sizes = [8, 32], strides = [1, 1]} : vector<64x192xf32> to vector<8x32xf32>
    %45 = vector.extract_strided_slice %31 {offsets = [0, 32], sizes = [8, 32], strides = [1, 1]} : vector<8x96xf32> to vector<8x32xf32>
    %46 = arith.addf %44, %45 : vector<8x32xf32>
    %47 = arith.negf %46 : vector<8x32xf32>
    %48 = math.exp %47 : vector<8x32xf32>
    %cst_32 = arith.constant 1.000000e+00 : f32
    %49 = vector.broadcast %cst_32 : f32 to vector<8x32xf32>
    %50 = arith.addf %49, %48 : vector<8x32xf32>
    %51 = arith.divf %49, %50 : vector<8x32xf32>
    %52 = vector.extract_strided_slice %19 {offsets = [0, 64], sizes = [8, 32], strides = [1, 1]} : vector<64x192xf32> to vector<8x32xf32>
    %53 = vector.extract_strided_slice %31 {offsets = [0, 64], sizes = [8, 32], strides = [1, 1]} : vector<8x96xf32> to vector<8x32xf32>
    %54 = arith.mulf %43, %53 : vector<8x32xf32>
    %55 = arith.addf %52, %54 : vector<8x32xf32>
    %56 = math.tanh %55 : vector<8x32xf32>
    %cst_33 = arith.constant 1.000000e+00 : f32
    %57 = vector.broadcast %cst_33 : f32 to vector<8x32xf32>
    %58 = arith.subf %57, %51 : vector<8x32xf32>
    %59 = arith.mulf %58, %56 : vector<8x32xf32>
    %60 = arith.mulf %51, %26 : vector<8x32xf32>
    %61 = arith.addf %59, %60 : vector<8x32xf32>
    %62 = vector.extract_strided_slice %19 {offsets = [56, 96], sizes = [8, 32], strides = [1, 1]} : vector<64x192xf32> to vector<8x32xf32>
    %63 = vector.extract_strided_slice %35 {offsets = [0, 0], sizes = [8, 32], strides = [1, 1]} : vector<8x96xf32> to vector<8x32xf32>
    %64 = arith.addf %62, %63 : vector<8x32xf32>
    %65 = arith.negf %64 : vector<8x32xf32>
    %66 = math.exp %65 : vector<8x32xf32>
    %cst_34 = arith.constant 1.000000e+00 : f32
    %67 = vector.broadcast %cst_34 : f32 to vector<8x32xf32>
    %68 = arith.addf %67, %66 : vector<8x32xf32>
    %69 = arith.divf %67, %68 : vector<8x32xf32>
    %70 = vector.extract_strided_slice %19 {offsets = [56, 128], sizes = [8, 32], strides = [1, 1]} : vector<64x192xf32> to vector<8x32xf32>
    %71 = vector.extract_strided_slice %35 {offsets = [0, 32], sizes = [8, 32], strides = [1, 1]} : vector<8x96xf32> to vector<8x32xf32>
    %72 = arith.addf %70, %71 : vector<8x32xf32>
    %73 = arith.negf %72 : vector<8x32xf32>
    %74 = math.exp %73 : vector<8x32xf32>
    %cst_35 = arith.constant 1.000000e+00 : f32
    %75 = vector.broadcast %cst_35 : f32 to vector<8x32xf32>
    %76 = arith.addf %75, %74 : vector<8x32xf32>
    %77 = arith.divf %75, %76 : vector<8x32xf32>
    %78 = vector.extract_strided_slice %19 {offsets = [56, 160], sizes = [8, 32], strides = [1, 1]} : vector<64x192xf32> to vector<8x32xf32>
    %79 = vector.extract_strided_slice %35 {offsets = [0, 64], sizes = [8, 32], strides = [1, 1]} : vector<8x96xf32> to vector<8x32xf32>
    %80 = arith.mulf %69, %79 : vector<8x32xf32>
    %81 = arith.addf %78, %80 : vector<8x32xf32>
    %82 = math.tanh %81 : vector<8x32xf32>
    %cst_36 = arith.constant 1.000000e+00 : f32
    %83 = vector.broadcast %cst_36 : f32 to vector<8x32xf32>
    %84 = arith.subf %83, %77 : vector<8x32xf32>
    %85 = arith.mulf %84, %82 : vector<8x32xf32>
    %86 = arith.mulf %77, %27 : vector<8x32xf32>
    %87 = arith.addf %85, %86 : vector<8x32xf32>
    %c0_i32 = arith.constant 0 : i32
    %88 = vector.broadcast %c0_i32 : i32 to vector<8x1xi32>
    %89 = arith.cmpi sgt, %25, %88 : vector<8x1xi32>
    %c7_i32 = arith.constant 7 : i32
    %90 = vector.broadcast %c7_i32 : i32 to vector<8x1xi32>
    %91 = arith.cmpi sgt, %25, %90 : vector<8x1xi32>
    %92 = vector.shape_cast %89 : vector<8x1xi1> to vector<8x1xi1>
    %93 = vector.broadcast %92 : vector<8x1xi1> to vector<8x32xi1>
    %94 = arith.select %93, %61, %26 : vector<8x32xi1>, vector<8x32xf32>
    %95 = vector.shape_cast %91 : vector<8x1xi1> to vector<8x1xi1>
    %96 = vector.broadcast %95 : vector<8x1xi1> to vector<8x32xi1>
    %97 = arith.select %96, %87, %27 : vector<8x32xi1>, vector<8x32xf32>
    %cst_37 = arith.constant 0.000000e+00 : f32
    %98 = vector.shape_cast %89 : vector<8x1xi1> to vector<8x1xi1>
    %99 = vector.broadcast %98 : vector<8x1xi1> to vector<8x32xi1>
    %100 = vector.broadcast %cst_37 : f32 to vector<8x32xf32>
    %101 = arith.select %99, %61, %100 : vector<8x32xi1>, vector<8x32xf32>
    %c0_38 = arith.constant 0 : index
    %c0_39 = arith.constant 0 : index
    %102 = vector.load %arg21[%c0_38, %c0_39] : memref<64x32xf32, #tpu.memory_space<vmem>>, vector<8x32xf32>
    tpu.vector_store %arg21[%c0_38, %c0_39], %101 {strides = array<i32>} : memref<64x32xf32, #tpu.memory_space<vmem>>, vector<8x32xf32>,
    %cst_40 = arith.constant 0.000000e+00 : f32
    %103 = vector.shape_cast %91 : vector<8x1xi1> to vector<8x1xi1>
    %104 = vector.broadcast %103 : vector<8x1xi1> to vector<8x32xi1>
    %105 = vector.broadcast %cst_40 : f32 to vector<8x32xf32>
    %106 = arith.select %104, %87, %105 : vector<8x32xi1>, vector<8x32xf32>
    %c56 = arith.constant 56 : index
    %c0_41 = arith.constant 0 : index
    %107 = vector.load %arg22[%c56, %c0_41] : memref<64x32xf32, #tpu.memory_space<vmem>>, vector<8x32xf32>
    tpu.vector_store %arg22[%c56, %c0_41], %106 {strides = array<i32>} : memref<64x32xf32, #tpu.memory_space<vmem>>, vector<8x32xf32>,
    %108 = arith.truncf %94 : vector<8x32xf32> to vector<8x32xbf16>
    %cst_42 = arith.constant dense<0.000000e+00> : vector<8x96xf32>
    %109 = tpu.matmul %108, %20, %cst_42 {dimension_numbers = #tpu.dot_dimension_numbers<[1], [0], [0], [1], [0, 0, 1, 1], [], []>} : vector<8x32xbf16>, vector<32x96xbf16>, vector<8x96xf32> -> vector<8x96xf32>
    %110 = vector.broadcast %22 : vector<1x96xf32> to vector<8x96xf32>
    %111 = arith.addf %109, %110 : vector<8x96xf32>
    %112 = arith.truncf %97 : vector<8x32xf32> to vector<8x32xbf16>
    %cst_43 = arith.constant dense<0.000000e+00> : vector<8x96xf32>
    %113 = tpu.matmul %112, %21, %cst_43 {dimension_numbers = #tpu.dot_dimension_numbers<[1], [0], [0], [1], [0, 0, 1, 1], [], []>} : vector<8x32xbf16>, vector<32x96xbf16>, vector<8x96xf32> -> vector<8x96xf32>
    %114 = vector.broadcast %23 : vector<1x96xf32> to vector<8x96xf32>
    %115 = arith.addf %113, %114 : vector<8x96xf32>
    %116 = vector.extract_strided_slice %19 {offsets = [8, 0], sizes = [8, 32], strides = [1, 1]} : vector<64x192xf32> to vector<8x32xf32>
    %117 = vector.extract_strided_slice %111 {offsets = [0, 0], sizes = [8, 32], strides = [1, 1]} : vector<8x96xf32> to vector<8x32xf32>
    %118 = arith.addf %116, %117 : vector<8x32xf32>
    %119 = arith.negf %118 : vector<8x32xf32>
    %120 = math.exp %119 : vector<8x32xf32>
    %cst_44 = arith.constant 1.000000e+00 : f32
    %121 = vector.broadcast %cst_44 : f32 to vector<8x32xf32>
    %122 = arith.addf %121, %120 : vector<8x32xf32>
    %123 = arith.divf %121, %122 : vector<8x32xf32>
    %124 = vector.extract_strided_slice %19 {offsets = [8, 32], sizes = [8, 32], strides = [1, 1]} : vector<64x192xf32> to vector<8x32xf32>
    %125 = vector.extract_strided_slice %111 {offsets = [0, 32], sizes = [8, 32], strides = [1, 1]} : vector<8x96xf32> to vector<8x32xf32>
    %126 = arith.addf %124, %125 : vector<8x32xf32>
    %127 = arith.negf %126 : vector<8x32xf32>
    %128 = math.exp %127 : vector<8x32xf32>
    %cst_45 = arith.constant 1.000000e+00 : f32
    %129 = vector.broadcast %cst_45 : f32 to vector<8x32xf32>
    %130 = arith.addf %129, %128 : vector<8x32xf32>
    %131 = arith.divf %129, %130 : vector<8x32xf32>
    %132 = vector.extract_strided_slice %19 {offsets = [8, 64], sizes = [8, 32], strides = [1, 1]} : vector<64x192xf32> to vector<8x32xf32>
    %133 = vector.extract_strided_slice %111 {offsets = [0, 64], sizes = [8, 32], strides = [1, 1]} : vector<8x96xf32> to vector<8x32xf32>
    %134 = arith.mulf %123, %133 : vector<8x32xf32>
    %135 = arith.addf %132, %134 : vector<8x32xf32>
    %136 = math.tanh %135 : vector<8x32xf32>
    %cst_46 = arith.constant 1.000000e+00 : f32
    %137 = vector.broadcast %cst_46 : f32 to vector<8x32xf32>
    %138 = arith.subf %137, %131 : vector<8x32xf32>
    %139 = arith.mulf %138, %136 : vector<8x32xf32>
    %140 = arith.mulf %131, %94 : vector<8x32xf32>
    %141 = arith.addf %139, %140 : vector<8x32xf32>
    %142 = vector.extract_strided_slice %19 {offsets = [48, 96], sizes = [8, 32], strides = [1, 1]} : vector<64x192xf32> to vector<8x32xf32>
    %143 = vector.extract_strided_slice %115 {offsets = [0, 0], sizes = [8, 32], strides = [1, 1]} : vector<8x96xf32> to vector<8x32xf32>
    %144 = arith.addf %142, %143 : vector<8x32xf32>
    %145 = arith.negf %144 : vector<8x32xf32>
    %146 = math.exp %145 : vector<8x32xf32>
    %cst_47 = arith.constant 1.000000e+00 : f32
    %147 = vector.broadcast %cst_47 : f32 to vector<8x32xf32>
    %148 = arith.addf %147, %146 : vector<8x32xf32>
    %149 = arith.divf %147, %148 : vector<8x32xf32>
    %150 = vector.extract_strided_slice %19 {offsets = [48, 128], sizes = [8, 32], strides = [1, 1]} : vector<64x192xf32> to vector<8x32xf32>
    %151 = vector.extract_strided_slice %115 {offsets = [0, 32], sizes = [8, 32], strides = [1, 1]} : vector<8x96xf32> to vector<8x32xf32>
    %152 = arith.addf %150, %151 : vector<8x32xf32>
    %153 = arith.negf %152 : vector<8x32xf32>
    %154 = math.exp %153 : vector<8x32xf32>
    %cst_48 = arith.constant 1.000000e+00 : f32
    %155 = vector.broadcast %cst_48 : f32 to vector<8x32xf32>
    %156 = arith.addf %155, %154 : vector<8x32xf32>
    %157 = arith.divf %155, %156 : vector<8x32xf32>
    %158 = vector.extract_strided_slice %19 {offsets = [48, 160], sizes = [8, 32], strides = [1, 1]} : vector<64x192xf32> to vector<8x32xf32>
    %159 = vector.extract_strided_slice %115 {offsets = [0, 64], sizes = [8, 32], strides = [1, 1]} : vector<8x96xf32> to vector<8x32xf32>
    %160 = arith.mulf %149, %159 : vector<8x32xf32>
    %161 = arith.addf %158, %160 : vector<8x32xf32>
    %162 = math.tanh %161 : vector<8x32xf32>
    %cst_49 = arith.constant 1.000000e+00 : f32
    %163 = vector.broadcast %cst_49 : f32 to vector<8x32xf32>
    %164 = arith.subf %163, %157 : vector<8x32xf32>
    %165 = arith.mulf %164, %162 : vector<8x32xf32>
    %166 = arith.mulf %157, %97 : vector<8x32xf32>
    %167 = arith.addf %165, %166 : vector<8x32xf32>
    %c1_i32 = arith.constant 1 : i32
    %168 = vector.broadcast %c1_i32 : i32 to vector<8x1xi32>
    %169 = arith.cmpi sgt, %25, %168 : vector<8x1xi32>
    %c6_i32 = arith.constant 6 : i32
    %170 = vector.broadcast %c6_i32 : i32 to vector<8x1xi32>
    %171 = arith.cmpi sgt, %25, %170 : vector<8x1xi32>
    %172 = vector.shape_cast %169 : vector<8x1xi1> to vector<8x1xi1>
    %173 = vector.broadcast %172 : vector<8x1xi1> to vector<8x32xi1>
    %174 = arith.select %173, %141, %94 : vector<8x32xi1>, vector<8x32xf32>
    %175 = vector.shape_cast %171 : vector<8x1xi1> to vector<8x1xi1>
    %176 = vector.broadcast %175 : vector<8x1xi1> to vector<8x32xi1>
    %177 = arith.select %176, %167, %97 : vector<8x32xi1>, vector<8x32xf32>
    %cst_50 = arith.constant 0.000000e+00 : f32
    %178 = vector.shape_cast %169 : vector<8x1xi1> to vector<8x1xi1>
    %179 = vector.broadcast %178 : vector<8x1xi1> to vector<8x32xi1>
    %180 = vector.broadcast %cst_50 : f32 to vector<8x32xf32>
    %181 = arith.select %179, %141, %180 : vector<8x32xi1>, vector<8x32xf32>
    %c8 = arith.constant 8 : index
    %c0_51 = arith.constant 0 : index
    %182 = vector.load %arg21[%c8, %c0_51] : memref<64x32xf32, #tpu.memory_space<vmem>>, vector<8x32xf32>
    tpu.vector_store %arg21[%c8, %c0_51], %181 {strides = array<i32>} : memref<64x32xf32, #tpu.memory_space<vmem>>, vector<8x32xf32>,
    %cst_52 = arith.constant 0.000000e+00 : f32
    %183 = vector.shape_cast %171 : vector<8x1xi1> to vector<8x1xi1>
    %184 = vector.broadcast %183 : vector<8x1xi1> to vector<8x32xi1>
    %185 = vector.broadcast %cst_52 : f32 to vector<8x32xf32>
    %186 = arith.select %184, %167, %185 : vector<8x32xi1>, vector<8x32xf32>
    %c48 = arith.constant 48 : index
    %c0_53 = arith.constant 0 : index
    %187 = vector.load %arg22[%c48, %c0_53] : memref<64x32xf32, #tpu.memory_space<vmem>>, vector<8x32xf32>
    tpu.vector_store %arg22[%c48, %c0_53], %186 {strides = array<i32>} : memref<64x32xf32, #tpu.memory_space<vmem>>, vector<8x32xf32>,
    %188 = arith.truncf %174 : vector<8x32xf32> to vector<8x32xbf16>
    %cst_54 = arith.constant dense<0.000000e+00> : vector<8x96xf32>
    %189 = tpu.matmul %188, %20, %cst_54 {dimension_numbers = #tpu.dot_dimension_numbers<[1], [0], [0], [1], [0, 0, 1, 1], [], []>} : vector<8x32xbf16>, vector<32x96xbf16>, vector<8x96xf32> -> vector<8x96xf32>
    %190 = vector.broadcast %22 : vector<1x96xf32> to vector<8x96xf32>
    %191 = arith.addf %189, %190 : vector<8x96xf32>
    %192 = arith.truncf %177 : vector<8x32xf32> to vector<8x32xbf16>
    %cst_55 = arith.constant dense<0.000000e+00> : vector<8x96xf32>
    %193 = tpu.matmul %192, %21, %cst_55 {dimension_numbers = #tpu.dot_dimension_numbers<[1], [0], [0], [1], [0, 0, 1, 1], [], []>} : vector<8x32xbf16>, vector<32x96xbf16>, vector<8x96xf32> -> vector<8x96xf32>
    %194 = vector.broadcast %23 : vector<1x96xf32> to vector<8x96xf32>
    %195 = arith.addf %193, %194 : vector<8x96xf32>
    %196 = vector.extract_strided_slice %19 {offsets = [16, 0], sizes = [8, 32], strides = [1, 1]} : vector<64x192xf32> to vector<8x32xf32>
    %197 = vector.extract_strided_slice %191 {offsets = [0, 0], sizes = [8, 32], strides = [1, 1]} : vector<8x96xf32> to vector<8x32xf32>
    %198 = arith.addf %196, %197 : vector<8x32xf32>
    %199 = arith.negf %198 : vector<8x32xf32>
    %200 = math.exp %199 : vector<8x32xf32>
    %cst_56 = arith.constant 1.000000e+00 : f32
    %201 = vector.broadcast %cst_56 : f32 to vector<8x32xf32>
    %202 = arith.addf %201, %200 : vector<8x32xf32>
    %203 = arith.divf %201, %202 : vector<8x32xf32>
    %204 = vector.extract_strided_slice %19 {offsets = [16, 32], sizes = [8, 32], strides = [1, 1]} : vector<64x192xf32> to vector<8x32xf32>
    %205 = vector.extract_strided_slice %191 {offsets = [0, 32], sizes = [8, 32], strides = [1, 1]} : vector<8x96xf32> to vector<8x32xf32>
    %206 = arith.addf %204, %205 : vector<8x32xf32>
    %207 = arith.negf %206 : vector<8x32xf32>
    %208 = math.exp %207 : vector<8x32xf32>
    %cst_57 = arith.constant 1.000000e+00 : f32
    %209 = vector.broadcast %cst_57 : f32 to vector<8x32xf32>
    %210 = arith.addf %209, %208 : vector<8x32xf32>
    %211 = arith.divf %209, %210 : vector<8x32xf32>
    %212 = vector.extract_strided_slice %19 {offsets = [16, 64], sizes = [8, 32], strides = [1, 1]} : vector<64x192xf32> to vector<8x32xf32>
    %213 = vector.extract_strided_slice %191 {offsets = [0, 64], sizes = [8, 32], strides = [1, 1]} : vector<8x96xf32> to vector<8x32xf32>
    %214 = arith.mulf %203, %213 : vector<8x32xf32>
    %215 = arith.addf %212, %214 : vector<8x32xf32>
    %216 = math.tanh %215 : vector<8x32xf32>
    %cst_58 = arith.constant 1.000000e+00 : f32
    %217 = vector.broadcast %cst_58 : f32 to vector<8x32xf32>
    %218 = arith.subf %217, %211 : vector<8x32xf32>
    %219 = arith.mulf %218, %216 : vector<8x32xf32>
    %220 = arith.mulf %211, %174 : vector<8x32xf32>
    %221 = arith.addf %219, %220 : vector<8x32xf32>
    %222 = vector.extract_strided_slice %19 {offsets = [40, 96], sizes = [8, 32], strides = [1, 1]} : vector<64x192xf32> to vector<8x32xf32>
    %223 = vector.extract_strided_slice %195 {offsets = [0, 0], sizes = [8, 32], strides = [1, 1]} : vector<8x96xf32> to vector<8x32xf32>
    %224 = arith.addf %222, %223 : vector<8x32xf32>
    %225 = arith.negf %224 : vector<8x32xf32>
    %226 = math.exp %225 : vector<8x32xf32>
    %cst_59 = arith.constant 1.000000e+00 : f32
    %227 = vector.broadcast %cst_59 : f32 to vector<8x32xf32>
    %228 = arith.addf %227, %226 : vector<8x32xf32>
    %229 = arith.divf %227, %228 : vector<8x32xf32>
    %230 = vector.extract_strided_slice %19 {offsets = [40, 128], sizes = [8, 32], strides = [1, 1]} : vector<64x192xf32> to vector<8x32xf32>
    %231 = vector.extract_strided_slice %195 {offsets = [0, 32], sizes = [8, 32], strides = [1, 1]} : vector<8x96xf32> to vector<8x32xf32>
    %232 = arith.addf %230, %231 : vector<8x32xf32>
    %233 = arith.negf %232 : vector<8x32xf32>
    %234 = math.exp %233 : vector<8x32xf32>
    %cst_60 = arith.constant 1.000000e+00 : f32
    %235 = vector.broadcast %cst_60 : f32 to vector<8x32xf32>
    %236 = arith.addf %235, %234 : vector<8x32xf32>
    %237 = arith.divf %235, %236 : vector<8x32xf32>
    %238 = vector.extract_strided_slice %19 {offsets = [40, 160], sizes = [8, 32], strides = [1, 1]} : vector<64x192xf32> to vector<8x32xf32>
    %239 = vector.extract_strided_slice %195 {offsets = [0, 64], sizes = [8, 32], strides = [1, 1]} : vector<8x96xf32> to vector<8x32xf32>
    %240 = arith.mulf %229, %239 : vector<8x32xf32>
    %241 = arith.addf %238, %240 : vector<8x32xf32>
    %242 = math.tanh %241 : vector<8x32xf32>
    %cst_61 = arith.constant 1.000000e+00 : f32
    %243 = vector.broadcast %cst_61 : f32 to vector<8x32xf32>
    %244 = arith.subf %243, %237 : vector<8x32xf32>
    %245 = arith.mulf %244, %242 : vector<8x32xf32>
    %246 = arith.mulf %237, %177 : vector<8x32xf32>
    %247 = arith.addf %245, %246 : vector<8x32xf32>
    %c2_i32 = arith.constant 2 : i32
    %248 = vector.broadcast %c2_i32 : i32 to vector<8x1xi32>
    %249 = arith.cmpi sgt, %25, %248 : vector<8x1xi32>
    %c5_i32 = arith.constant 5 : i32
    %250 = vector.broadcast %c5_i32 : i32 to vector<8x1xi32>
    %251 = arith.cmpi sgt, %25, %250 : vector<8x1xi32>
    %252 = vector.shape_cast %249 : vector<8x1xi1> to vector<8x1xi1>
    %253 = vector.broadcast %252 : vector<8x1xi1> to vector<8x32xi1>
    %254 = arith.select %253, %221, %174 : vector<8x32xi1>, vector<8x32xf32>
    %255 = vector.shape_cast %251 : vector<8x1xi1> to vector<8x1xi1>
    %256 = vector.broadcast %255 : vector<8x1xi1> to vector<8x32xi1>
    %257 = arith.select %256, %247, %177 : vector<8x32xi1>, vector<8x32xf32>
    %cst_62 = arith.constant 0.000000e+00 : f32
    %258 = vector.shape_cast %249 : vector<8x1xi1> to vector<8x1xi1>
    %259 = vector.broadcast %258 : vector<8x1xi1> to vector<8x32xi1>
    %260 = vector.broadcast %cst_62 : f32 to vector<8x32xf32>
    %261 = arith.select %259, %221, %260 : vector<8x32xi1>, vector<8x32xf32>
    %c16 = arith.constant 16 : index
    %c0_63 = arith.constant 0 : index
    %262 = vector.load %arg21[%c16, %c0_63] : memref<64x32xf32, #tpu.memory_space<vmem>>, vector<8x32xf32>
    tpu.vector_store %arg21[%c16, %c0_63], %261 {strides = array<i32>} : memref<64x32xf32, #tpu.memory_space<vmem>>, vector<8x32xf32>,
    %cst_64 = arith.constant 0.000000e+00 : f32
    %263 = vector.shape_cast %251 : vector<8x1xi1> to vector<8x1xi1>
    %264 = vector.broadcast %263 : vector<8x1xi1> to vector<8x32xi1>
    %265 = vector.broadcast %cst_64 : f32 to vector<8x32xf32>
    %266 = arith.select %264, %247, %265 : vector<8x32xi1>, vector<8x32xf32>
    %c40 = arith.constant 40 : index
    %c0_65 = arith.constant 0 : index
    %267 = vector.load %arg22[%c40, %c0_65] : memref<64x32xf32, #tpu.memory_space<vmem>>, vector<8x32xf32>
    tpu.vector_store %arg22[%c40, %c0_65], %266 {strides = array<i32>} : memref<64x32xf32, #tpu.memory_space<vmem>>, vector<8x32xf32>,
    %268 = arith.truncf %254 : vector<8x32xf32> to vector<8x32xbf16>
    %cst_66 = arith.constant dense<0.000000e+00> : vector<8x96xf32>
    %269 = tpu.matmul %268, %20, %cst_66 {dimension_numbers = #tpu.dot_dimension_numbers<[1], [0], [0], [1], [0, 0, 1, 1], [], []>} : vector<8x32xbf16>, vector<32x96xbf16>, vector<8x96xf32> -> vector<8x96xf32>
    %270 = vector.broadcast %22 : vector<1x96xf32> to vector<8x96xf32>
    %271 = arith.addf %269, %270 : vector<8x96xf32>
    %272 = arith.truncf %257 : vector<8x32xf32> to vector<8x32xbf16>
    %cst_67 = arith.constant dense<0.000000e+00> : vector<8x96xf32>
    %273 = tpu.matmul %272, %21, %cst_67 {dimension_numbers = #tpu.dot_dimension_numbers<[1], [0], [0], [1], [0, 0, 1, 1], [], []>} : vector<8x32xbf16>, vector<32x96xbf16>, vector<8x96xf32> -> vector<8x96xf32>
    %274 = vector.broadcast %23 : vector<1x96xf32> to vector<8x96xf32>
    %275 = arith.addf %273, %274 : vector<8x96xf32>
    %276 = vector.extract_strided_slice %19 {offsets = [24, 0], sizes = [8, 32], strides = [1, 1]} : vector<64x192xf32> to vector<8x32xf32>
    %277 = vector.extract_strided_slice %271 {offsets = [0, 0], sizes = [8, 32], strides = [1, 1]} : vector<8x96xf32> to vector<8x32xf32>
    %278 = arith.addf %276, %277 : vector<8x32xf32>
    %279 = arith.negf %278 : vector<8x32xf32>
    %280 = math.exp %279 : vector<8x32xf32>
    %cst_68 = arith.constant 1.000000e+00 : f32
    %281 = vector.broadcast %cst_68 : f32 to vector<8x32xf32>
    %282 = arith.addf %281, %280 : vector<8x32xf32>
    %283 = arith.divf %281, %282 : vector<8x32xf32>
    %284 = vector.extract_strided_slice %19 {offsets = [24, 32], sizes = [8, 32], strides = [1, 1]} : vector<64x192xf32> to vector<8x32xf32>
    %285 = vector.extract_strided_slice %271 {offsets = [0, 32], sizes = [8, 32], strides = [1, 1]} : vector<8x96xf32> to vector<8x32xf32>
    %286 = arith.addf %284, %285 : vector<8x32xf32>
    %287 = arith.negf %286 : vector<8x32xf32>
    %288 = math.exp %287 : vector<8x32xf32>
    %cst_69 = arith.constant 1.000000e+00 : f32
    %289 = vector.broadcast %cst_69 : f32 to vector<8x32xf32>
    %290 = arith.addf %289, %288 : vector<8x32xf32>
    %291 = arith.divf %289, %290 : vector<8x32xf32>
    %292 = vector.extract_strided_slice %19 {offsets = [24, 64], sizes = [8, 32], strides = [1, 1]} : vector<64x192xf32> to vector<8x32xf32>
    %293 = vector.extract_strided_slice %271 {offsets = [0, 64], sizes = [8, 32], strides = [1, 1]} : vector<8x96xf32> to vector<8x32xf32>
    %294 = arith.mulf %283, %293 : vector<8x32xf32>
    %295 = arith.addf %292, %294 : vector<8x32xf32>
    %296 = math.tanh %295 : vector<8x32xf32>
    %cst_70 = arith.constant 1.000000e+00 : f32
    %297 = vector.broadcast %cst_70 : f32 to vector<8x32xf32>
    %298 = arith.subf %297, %291 : vector<8x32xf32>
    %299 = arith.mulf %298, %296 : vector<8x32xf32>
    %300 = arith.mulf %291, %254 : vector<8x32xf32>
    %301 = arith.addf %299, %300 : vector<8x32xf32>
    %302 = vector.extract_strided_slice %19 {offsets = [32, 96], sizes = [8, 32], strides = [1, 1]} : vector<64x192xf32> to vector<8x32xf32>
    %303 = vector.extract_strided_slice %275 {offsets = [0, 0], sizes = [8, 32], strides = [1, 1]} : vector<8x96xf32> to vector<8x32xf32>
    %304 = arith.addf %302, %303 : vector<8x32xf32>
    %305 = arith.negf %304 : vector<8x32xf32>
    %306 = math.exp %305 : vector<8x32xf32>
    %cst_71 = arith.constant 1.000000e+00 : f32
    %307 = vector.broadcast %cst_71 : f32 to vector<8x32xf32>
    %308 = arith.addf %307, %306 : vector<8x32xf32>
    %309 = arith.divf %307, %308 : vector<8x32xf32>
    %310 = vector.extract_strided_slice %19 {offsets = [32, 128], sizes = [8, 32], strides = [1, 1]} : vector<64x192xf32> to vector<8x32xf32>
    %311 = vector.extract_strided_slice %275 {offsets = [0, 32], sizes = [8, 32], strides = [1, 1]} : vector<8x96xf32> to vector<8x32xf32>
    %312 = arith.addf %310, %311 : vector<8x32xf32>
    %313 = arith.negf %312 : vector<8x32xf32>
    %314 = math.exp %313 : vector<8x32xf32>
    %cst_72 = arith.constant 1.000000e+00 : f32
    %315 = vector.broadcast %cst_72 : f32 to vector<8x32xf32>
    %316 = arith.addf %315, %314 : vector<8x32xf32>
    %317 = arith.divf %315, %316 : vector<8x32xf32>
    %318 = vector.extract_strided_slice %19 {offsets = [32, 160], sizes = [8, 32], strides = [1, 1]} : vector<64x192xf32> to vector<8x32xf32>
    %319 = vector.extract_strided_slice %275 {offsets = [0, 64], sizes = [8, 32], strides = [1, 1]} : vector<8x96xf32> to vector<8x32xf32>
    %320 = arith.mulf %309, %319 : vector<8x32xf32>
    %321 = arith.addf %318, %320 : vector<8x32xf32>
    %322 = math.tanh %321 : vector<8x32xf32>
    %cst_73 = arith.constant 1.000000e+00 : f32
    %323 = vector.broadcast %cst_73 : f32 to vector<8x32xf32>
    %324 = arith.subf %323, %317 : vector<8x32xf32>
    %325 = arith.mulf %324, %322 : vector<8x32xf32>
    %326 = arith.mulf %317, %257 : vector<8x32xf32>
    %327 = arith.addf %325, %326 : vector<8x32xf32>
    %c3_i32 = arith.constant 3 : i32
    %328 = vector.broadcast %c3_i32 : i32 to vector<8x1xi32>
    %329 = arith.cmpi sgt, %25, %328 : vector<8x1xi32>
    %c4_i32 = arith.constant 4 : i32
    %330 = vector.broadcast %c4_i32 : i32 to vector<8x1xi32>
    %331 = arith.cmpi sgt, %25, %330 : vector<8x1xi32>
    %332 = vector.shape_cast %329 : vector<8x1xi1> to vector<8x1xi1>
    %333 = vector.broadcast %332 : vector<8x1xi1> to vector<8x32xi1>
    %334 = arith.select %333, %301, %254 : vector<8x32xi1>, vector<8x32xf32>
    %335 = vector.shape_cast %331 : vector<8x1xi1> to vector<8x1xi1>
    %336 = vector.broadcast %335 : vector<8x1xi1> to vector<8x32xi1>
    %337 = arith.select %336, %327, %257 : vector<8x32xi1>, vector<8x32xf32>
    %cst_74 = arith.constant 0.000000e+00 : f32
    %338 = vector.shape_cast %329 : vector<8x1xi1> to vector<8x1xi1>
    %339 = vector.broadcast %338 : vector<8x1xi1> to vector<8x32xi1>
    %340 = vector.broadcast %cst_74 : f32 to vector<8x32xf32>
    %341 = arith.select %339, %301, %340 : vector<8x32xi1>, vector<8x32xf32>
    %c24 = arith.constant 24 : index
    %c0_75 = arith.constant 0 : index
    %342 = vector.load %arg21[%c24, %c0_75] : memref<64x32xf32, #tpu.memory_space<vmem>>, vector<8x32xf32>
    tpu.vector_store %arg21[%c24, %c0_75], %341 {strides = array<i32>} : memref<64x32xf32, #tpu.memory_space<vmem>>, vector<8x32xf32>,
    %cst_76 = arith.constant 0.000000e+00 : f32
    %343 = vector.shape_cast %331 : vector<8x1xi1> to vector<8x1xi1>
    %344 = vector.broadcast %343 : vector<8x1xi1> to vector<8x32xi1>
    %345 = vector.broadcast %cst_76 : f32 to vector<8x32xf32>
    %346 = arith.select %344, %327, %345 : vector<8x32xi1>, vector<8x32xf32>
    %c32 = arith.constant 32 : index
    %c0_77 = arith.constant 0 : index
    %347 = vector.load %arg22[%c32, %c0_77] : memref<64x32xf32, #tpu.memory_space<vmem>>, vector<8x32xf32>
    tpu.vector_store %arg22[%c32, %c0_77], %346 {strides = array<i32>} : memref<64x32xf32, #tpu.memory_space<vmem>>, vector<8x32xf32>,
    %348 = arith.truncf %334 : vector<8x32xf32> to vector<8x32xbf16>
    %cst_78 = arith.constant dense<0.000000e+00> : vector<8x96xf32>
    %349 = tpu.matmul %348, %20, %cst_78 {dimension_numbers = #tpu.dot_dimension_numbers<[1], [0], [0], [1], [0, 0, 1, 1], [], []>} : vector<8x32xbf16>, vector<32x96xbf16>, vector<8x96xf32> -> vector<8x96xf32>
    %350 = vector.broadcast %22 : vector<1x96xf32> to vector<8x96xf32>
    %351 = arith.addf %349, %350 : vector<8x96xf32>
    %352 = arith.truncf %337 : vector<8x32xf32> to vector<8x32xbf16>
    %cst_79 = arith.constant dense<0.000000e+00> : vector<8x96xf32>
    %353 = tpu.matmul %352, %21, %cst_79 {dimension_numbers = #tpu.dot_dimension_numbers<[1], [0], [0], [1], [0, 0, 1, 1], [], []>} : vector<8x32xbf16>, vector<32x96xbf16>, vector<8x96xf32> -> vector<8x96xf32>
    %354 = vector.broadcast %23 : vector<1x96xf32> to vector<8x96xf32>
    %355 = arith.addf %353, %354 : vector<8x96xf32>
    %356 = vector.extract_strided_slice %19 {offsets = [32, 0], sizes = [8, 32], strides = [1, 1]} : vector<64x192xf32> to vector<8x32xf32>
    %357 = vector.extract_strided_slice %351 {offsets = [0, 0], sizes = [8, 32], strides = [1, 1]} : vector<8x96xf32> to vector<8x32xf32>
    %358 = arith.addf %356, %357 : vector<8x32xf32>
    %359 = arith.negf %358 : vector<8x32xf32>
    %360 = math.exp %359 : vector<8x32xf32>
    %cst_80 = arith.constant 1.000000e+00 : f32
    %361 = vector.broadcast %cst_80 : f32 to vector<8x32xf32>
    %362 = arith.addf %361, %360 : vector<8x32xf32>
    %363 = arith.divf %361, %362 : vector<8x32xf32>
    %364 = vector.extract_strided_slice %19 {offsets = [32, 32], sizes = [8, 32], strides = [1, 1]} : vector<64x192xf32> to vector<8x32xf32>
    %365 = vector.extract_strided_slice %351 {offsets = [0, 32], sizes = [8, 32], strides = [1, 1]} : vector<8x96xf32> to vector<8x32xf32>
    %366 = arith.addf %364, %365 : vector<8x32xf32>
    %367 = arith.negf %366 : vector<8x32xf32>
    %368 = math.exp %367 : vector<8x32xf32>
    %cst_81 = arith.constant 1.000000e+00 : f32
    %369 = vector.broadcast %cst_81 : f32 to vector<8x32xf32>
    %370 = arith.addf %369, %368 : vector<8x32xf32>
    %371 = arith.divf %369, %370 : vector<8x32xf32>
    %372 = vector.extract_strided_slice %19 {offsets = [32, 64], sizes = [8, 32], strides = [1, 1]} : vector<64x192xf32> to vector<8x32xf32>
    %373 = vector.extract_strided_slice %351 {offsets = [0, 64], sizes = [8, 32], strides = [1, 1]} : vector<8x96xf32> to vector<8x32xf32>
    %374 = arith.mulf %363, %373 : vector<8x32xf32>
    %375 = arith.addf %372, %374 : vector<8x32xf32>
    %376 = math.tanh %375 : vector<8x32xf32>
    %cst_82 = arith.constant 1.000000e+00 : f32
    %377 = vector.broadcast %cst_82 : f32 to vector<8x32xf32>
    %378 = arith.subf %377, %371 : vector<8x32xf32>
    %379 = arith.mulf %378, %376 : vector<8x32xf32>
    %380 = arith.mulf %371, %334 : vector<8x32xf32>
    %381 = arith.addf %379, %380 : vector<8x32xf32>
    %382 = vector.extract_strided_slice %19 {offsets = [24, 96], sizes = [8, 32], strides = [1, 1]} : vector<64x192xf32> to vector<8x32xf32>
    %383 = vector.extract_strided_slice %355 {offsets = [0, 0], sizes = [8, 32], strides = [1, 1]} : vector<8x96xf32> to vector<8x32xf32>
    %384 = arith.addf %382, %383 : vector<8x32xf32>
    %385 = arith.negf %384 : vector<8x32xf32>
    %386 = math.exp %385 : vector<8x32xf32>
    %cst_83 = arith.constant 1.000000e+00 : f32
    %387 = vector.broadcast %cst_83 : f32 to vector<8x32xf32>
    %388 = arith.addf %387, %386 : vector<8x32xf32>
    %389 = arith.divf %387, %388 : vector<8x32xf32>
    %390 = vector.extract_strided_slice %19 {offsets = [24, 128], sizes = [8, 32], strides = [1, 1]} : vector<64x192xf32> to vector<8x32xf32>
    %391 = vector.extract_strided_slice %355 {offsets = [0, 32], sizes = [8, 32], strides = [1, 1]} : vector<8x96xf32> to vector<8x32xf32>
    %392 = arith.addf %390, %391 : vector<8x32xf32>
    %393 = arith.negf %392 : vector<8x32xf32>
    %394 = math.exp %393 : vector<8x32xf32>
    %cst_84 = arith.constant 1.000000e+00 : f32
    %395 = vector.broadcast %cst_84 : f32 to vector<8x32xf32>
    %396 = arith.addf %395, %394 : vector<8x32xf32>
    %397 = arith.divf %395, %396 : vector<8x32xf32>
    %398 = vector.extract_strided_slice %19 {offsets = [24, 160], sizes = [8, 32], strides = [1, 1]} : vector<64x192xf32> to vector<8x32xf32>
    %399 = vector.extract_strided_slice %355 {offsets = [0, 64], sizes = [8, 32], strides = [1, 1]} : vector<8x96xf32> to vector<8x32xf32>
    %400 = arith.mulf %389, %399 : vector<8x32xf32>
    %401 = arith.addf %398, %400 : vector<8x32xf32>
    %402 = math.tanh %401 : vector<8x32xf32>
    %cst_85 = arith.constant 1.000000e+00 : f32
    %403 = vector.broadcast %cst_85 : f32 to vector<8x32xf32>
    %404 = arith.subf %403, %397 : vector<8x32xf32>
    %405 = arith.mulf %404, %402 : vector<8x32xf32>
    %406 = arith.mulf %397, %337 : vector<8x32xf32>
    %407 = arith.addf %405, %406 : vector<8x32xf32>
    %c4_i32_86 = arith.constant 4 : i32
    %408 = vector.broadcast %c4_i32_86 : i32 to vector<8x1xi32>
    %409 = arith.cmpi sgt, %25, %408 : vector<8x1xi32>
    %c3_i32_87 = arith.constant 3 : i32
    %410 = vector.broadcast %c3_i32_87 : i32 to vector<8x1xi32>
    %411 = arith.cmpi sgt, %25, %410 : vector<8x1xi32>
    %412 = vector.shape_cast %409 : vector<8x1xi1> to vector<8x1xi1>
    %413 = vector.broadcast %412 : vector<8x1xi1> to vector<8x32xi1>
    %414 = arith.select %413, %381, %334 : vector<8x32xi1>, vector<8x32xf32>
    %415 = vector.shape_cast %411 : vector<8x1xi1> to vector<8x1xi1>
    %416 = vector.broadcast %415 : vector<8x1xi1> to vector<8x32xi1>
    %417 = arith.select %416, %407, %337 : vector<8x32xi1>, vector<8x32xf32>
    %cst_88 = arith.constant 0.000000e+00 : f32
    %418 = vector.shape_cast %409 : vector<8x1xi1> to vector<8x1xi1>
    %419 = vector.broadcast %418 : vector<8x1xi1> to vector<8x32xi1>
    %420 = vector.broadcast %cst_88 : f32 to vector<8x32xf32>
    %421 = arith.select %419, %381, %420 : vector<8x32xi1>, vector<8x32xf32>
    %c32_89 = arith.constant 32 : index
    %c0_90 = arith.constant 0 : index
    %422 = vector.load %arg21[%c32_89, %c0_90] : memref<64x32xf32, #tpu.memory_space<vmem>>, vector<8x32xf32>
    tpu.vector_store %arg21[%c32_89, %c0_90], %421 {strides = array<i32>} : memref<64x32xf32, #tpu.memory_space<vmem>>, vector<8x32xf32>,
    %cst_91 = arith.constant 0.000000e+00 : f32
    %423 = vector.shape_cast %411 : vector<8x1xi1> to vector<8x1xi1>
    %424 = vector.broadcast %423 : vector<8x1xi1> to vector<8x32xi1>
    %425 = vector.broadcast %cst_91 : f32 to vector<8x32xf32>
    %426 = arith.select %424, %407, %425 : vector<8x32xi1>, vector<8x32xf32>
    %c24_92 = arith.constant 24 : index
    %c0_93 = arith.constant 0 : index
    %427 = vector.load %arg22[%c24_92, %c0_93] : memref<64x32xf32, #tpu.memory_space<vmem>>, vector<8x32xf32>
    tpu.vector_store %arg22[%c24_92, %c0_93], %426 {strides = array<i32>} : memref<64x32xf32, #tpu.memory_space<vmem>>, vector<8x32xf32>,
    %428 = arith.truncf %414 : vector<8x32xf32> to vector<8x32xbf16>
    %cst_94 = arith.constant dense<0.000000e+00> : vector<8x96xf32>
    %429 = tpu.matmul %428, %20, %cst_94 {dimension_numbers = #tpu.dot_dimension_numbers<[1], [0], [0], [1], [0, 0, 1, 1], [], []>} : vector<8x32xbf16>, vector<32x96xbf16>, vector<8x96xf32> -> vector<8x96xf32>
    %430 = vector.broadcast %22 : vector<1x96xf32> to vector<8x96xf32>
    %431 = arith.addf %429, %430 : vector<8x96xf32>
    %432 = arith.truncf %417 : vector<8x32xf32> to vector<8x32xbf16>
    %cst_95 = arith.constant dense<0.000000e+00> : vector<8x96xf32>
    %433 = tpu.matmul %432, %21, %cst_95 {dimension_numbers = #tpu.dot_dimension_numbers<[1], [0], [0], [1], [0, 0, 1, 1], [], []>} : vector<8x32xbf16>, vector<32x96xbf16>, vector<8x96xf32> -> vector<8x96xf32>
    %434 = vector.broadcast %23 : vector<1x96xf32> to vector<8x96xf32>
    %435 = arith.addf %433, %434 : vector<8x96xf32>
    %436 = vector.extract_strided_slice %19 {offsets = [40, 0], sizes = [8, 32], strides = [1, 1]} : vector<64x192xf32> to vector<8x32xf32>
    %437 = vector.extract_strided_slice %431 {offsets = [0, 0], sizes = [8, 32], strides = [1, 1]} : vector<8x96xf32> to vector<8x32xf32>
    %438 = arith.addf %436, %437 : vector<8x32xf32>
    %439 = arith.negf %438 : vector<8x32xf32>
    %440 = math.exp %439 : vector<8x32xf32>
    %cst_96 = arith.constant 1.000000e+00 : f32
    %441 = vector.broadcast %cst_96 : f32 to vector<8x32xf32>
    %442 = arith.addf %441, %440 : vector<8x32xf32>
    %443 = arith.divf %441, %442 : vector<8x32xf32>
    %444 = vector.extract_strided_slice %19 {offsets = [40, 32], sizes = [8, 32], strides = [1, 1]} : vector<64x192xf32> to vector<8x32xf32>
    %445 = vector.extract_strided_slice %431 {offsets = [0, 32], sizes = [8, 32], strides = [1, 1]} : vector<8x96xf32> to vector<8x32xf32>
    %446 = arith.addf %444, %445 : vector<8x32xf32>
    %447 = arith.negf %446 : vector<8x32xf32>
    %448 = math.exp %447 : vector<8x32xf32>
    %cst_97 = arith.constant 1.000000e+00 : f32
    %449 = vector.broadcast %cst_97 : f32 to vector<8x32xf32>
    %450 = arith.addf %449, %448 : vector<8x32xf32>
    %451 = arith.divf %449, %450 : vector<8x32xf32>
    %452 = vector.extract_strided_slice %19 {offsets = [40, 64], sizes = [8, 32], strides = [1, 1]} : vector<64x192xf32> to vector<8x32xf32>
    %453 = vector.extract_strided_slice %431 {offsets = [0, 64], sizes = [8, 32], strides = [1, 1]} : vector<8x96xf32> to vector<8x32xf32>
    %454 = arith.mulf %443, %453 : vector<8x32xf32>
    %455 = arith.addf %452, %454 : vector<8x32xf32>
    %456 = math.tanh %455 : vector<8x32xf32>
    %cst_98 = arith.constant 1.000000e+00 : f32
    %457 = vector.broadcast %cst_98 : f32 to vector<8x32xf32>
    %458 = arith.subf %457, %451 : vector<8x32xf32>
    %459 = arith.mulf %458, %456 : vector<8x32xf32>
    %460 = arith.mulf %451, %414 : vector<8x32xf32>
    %461 = arith.addf %459, %460 : vector<8x32xf32>
    %462 = vector.extract_strided_slice %19 {offsets = [16, 96], sizes = [8, 32], strides = [1, 1]} : vector<64x192xf32> to vector<8x32xf32>
    %463 = vector.extract_strided_slice %435 {offsets = [0, 0], sizes = [8, 32], strides = [1, 1]} : vector<8x96xf32> to vector<8x32xf32>
    %464 = arith.addf %462, %463 : vector<8x32xf32>
    %465 = arith.negf %464 : vector<8x32xf32>
    %466 = math.exp %465 : vector<8x32xf32>
    %cst_99 = arith.constant 1.000000e+00 : f32
    %467 = vector.broadcast %cst_99 : f32 to vector<8x32xf32>
    %468 = arith.addf %467, %466 : vector<8x32xf32>
    %469 = arith.divf %467, %468 : vector<8x32xf32>
    %470 = vector.extract_strided_slice %19 {offsets = [16, 128], sizes = [8, 32], strides = [1, 1]} : vector<64x192xf32> to vector<8x32xf32>
    %471 = vector.extract_strided_slice %435 {offsets = [0, 32], sizes = [8, 32], strides = [1, 1]} : vector<8x96xf32> to vector<8x32xf32>
    %472 = arith.addf %470, %471 : vector<8x32xf32>
    %473 = arith.negf %472 : vector<8x32xf32>
    %474 = math.exp %473 : vector<8x32xf32>
    %cst_100 = arith.constant 1.000000e+00 : f32
    %475 = vector.broadcast %cst_100 : f32 to vector<8x32xf32>
    %476 = arith.addf %475, %474 : vector<8x32xf32>
    %477 = arith.divf %475, %476 : vector<8x32xf32>
    %478 = vector.extract_strided_slice %19 {offsets = [16, 160], sizes = [8, 32], strides = [1, 1]} : vector<64x192xf32> to vector<8x32xf32>
    %479 = vector.extract_strided_slice %435 {offsets = [0, 64], sizes = [8, 32], strides = [1, 1]} : vector<8x96xf32> to vector<8x32xf32>
    %480 = arith.mulf %469, %479 : vector<8x32xf32>
    %481 = arith.addf %478, %480 : vector<8x32xf32>
    %482 = math.tanh %481 : vector<8x32xf32>
    %cst_101 = arith.constant 1.000000e+00 : f32
    %483 = vector.broadcast %cst_101 : f32 to vector<8x32xf32>
    %484 = arith.subf %483, %477 : vector<8x32xf32>
    %485 = arith.mulf %484, %482 : vector<8x32xf32>
    %486 = arith.mulf %477, %417 : vector<8x32xf32>
    %487 = arith.addf %485, %486 : vector<8x32xf32>
    %c5_i32_102 = arith.constant 5 : i32
    %488 = vector.broadcast %c5_i32_102 : i32 to vector<8x1xi32>
    %489 = arith.cmpi sgt, %25, %488 : vector<8x1xi32>
    %c2_i32_103 = arith.constant 2 : i32
    %490 = vector.broadcast %c2_i32_103 : i32 to vector<8x1xi32>
    %491 = arith.cmpi sgt, %25, %490 : vector<8x1xi32>
    %492 = vector.shape_cast %489 : vector<8x1xi1> to vector<8x1xi1>
    %493 = vector.broadcast %492 : vector<8x1xi1> to vector<8x32xi1>
    %494 = arith.select %493, %461, %414 : vector<8x32xi1>, vector<8x32xf32>
    %495 = vector.shape_cast %491 : vector<8x1xi1> to vector<8x1xi1>
    %496 = vector.broadcast %495 : vector<8x1xi1> to vector<8x32xi1>
    %497 = arith.select %496, %487, %417 : vector<8x32xi1>, vector<8x32xf32>
    %cst_104 = arith.constant 0.000000e+00 : f32
    %498 = vector.shape_cast %489 : vector<8x1xi1> to vector<8x1xi1>
    %499 = vector.broadcast %498 : vector<8x1xi1> to vector<8x32xi1>
    %500 = vector.broadcast %cst_104 : f32 to vector<8x32xf32>
    %501 = arith.select %499, %461, %500 : vector<8x32xi1>, vector<8x32xf32>
    %c40_105 = arith.constant 40 : index
    %c0_106 = arith.constant 0 : index
    %502 = vector.load %arg21[%c40_105, %c0_106] : memref<64x32xf32, #tpu.memory_space<vmem>>, vector<8x32xf32>
    tpu.vector_store %arg21[%c40_105, %c0_106], %501 {strides = array<i32>} : memref<64x32xf32, #tpu.memory_space<vmem>>, vector<8x32xf32>,
    %cst_107 = arith.constant 0.000000e+00 : f32
    %503 = vector.shape_cast %491 : vector<8x1xi1> to vector<8x1xi1>
    %504 = vector.broadcast %503 : vector<8x1xi1> to vector<8x32xi1>
    %505 = vector.broadcast %cst_107 : f32 to vector<8x32xf32>
    %506 = arith.select %504, %487, %505 : vector<8x32xi1>, vector<8x32xf32>
    %c16_108 = arith.constant 16 : index
    %c0_109 = arith.constant 0 : index
    %507 = vector.load %arg22[%c16_108, %c0_109] : memref<64x32xf32, #tpu.memory_space<vmem>>, vector<8x32xf32>
    tpu.vector_store %arg22[%c16_108, %c0_109], %506 {strides = array<i32>} : memref<64x32xf32, #tpu.memory_space<vmem>>, vector<8x32xf32>,
    %508 = arith.truncf %494 : vector<8x32xf32> to vector<8x32xbf16>
    %cst_110 = arith.constant dense<0.000000e+00> : vector<8x96xf32>
    %509 = tpu.matmul %508, %20, %cst_110 {dimension_numbers = #tpu.dot_dimension_numbers<[1], [0], [0], [1], [0, 0, 1, 1], [], []>} : vector<8x32xbf16>, vector<32x96xbf16>, vector<8x96xf32> -> vector<8x96xf32>
    %510 = vector.broadcast %22 : vector<1x96xf32> to vector<8x96xf32>
    %511 = arith.addf %509, %510 : vector<8x96xf32>
    %512 = arith.truncf %497 : vector<8x32xf32> to vector<8x32xbf16>
    %cst_111 = arith.constant dense<0.000000e+00> : vector<8x96xf32>
    %513 = tpu.matmul %512, %21, %cst_111 {dimension_numbers = #tpu.dot_dimension_numbers<[1], [0], [0], [1], [0, 0, 1, 1], [], []>} : vector<8x32xbf16>, vector<32x96xbf16>, vector<8x96xf32> -> vector<8x96xf32>
    %514 = vector.broadcast %23 : vector<1x96xf32> to vector<8x96xf32>
    %515 = arith.addf %513, %514 : vector<8x96xf32>
    %516 = vector.extract_strided_slice %19 {offsets = [48, 0], sizes = [8, 32], strides = [1, 1]} : vector<64x192xf32> to vector<8x32xf32>
    %517 = vector.extract_strided_slice %511 {offsets = [0, 0], sizes = [8, 32], strides = [1, 1]} : vector<8x96xf32> to vector<8x32xf32>
    %518 = arith.addf %516, %517 : vector<8x32xf32>
    %519 = arith.negf %518 : vector<8x32xf32>
    %520 = math.exp %519 : vector<8x32xf32>
    %cst_112 = arith.constant 1.000000e+00 : f32
    %521 = vector.broadcast %cst_112 : f32 to vector<8x32xf32>
    %522 = arith.addf %521, %520 : vector<8x32xf32>
    %523 = arith.divf %521, %522 : vector<8x32xf32>
    %524 = vector.extract_strided_slice %19 {offsets = [48, 32], sizes = [8, 32], strides = [1, 1]} : vector<64x192xf32> to vector<8x32xf32>
    %525 = vector.extract_strided_slice %511 {offsets = [0, 32], sizes = [8, 32], strides = [1, 1]} : vector<8x96xf32> to vector<8x32xf32>
    %526 = arith.addf %524, %525 : vector<8x32xf32>
    %527 = arith.negf %526 : vector<8x32xf32>
    %528 = math.exp %527 : vector<8x32xf32>
    %cst_113 = arith.constant 1.000000e+00 : f32
    %529 = vector.broadcast %cst_113 : f32 to vector<8x32xf32>
    %530 = arith.addf %529, %528 : vector<8x32xf32>
    %531 = arith.divf %529, %530 : vector<8x32xf32>
    %532 = vector.extract_strided_slice %19 {offsets = [48, 64], sizes = [8, 32], strides = [1, 1]} : vector<64x192xf32> to vector<8x32xf32>
    %533 = vector.extract_strided_slice %511 {offsets = [0, 64], sizes = [8, 32], strides = [1, 1]} : vector<8x96xf32> to vector<8x32xf32>
    %534 = arith.mulf %523, %533 : vector<8x32xf32>
    %535 = arith.addf %532, %534 : vector<8x32xf32>
    %536 = math.tanh %535 : vector<8x32xf32>
    %cst_114 = arith.constant 1.000000e+00 : f32
    %537 = vector.broadcast %cst_114 : f32 to vector<8x32xf32>
    %538 = arith.subf %537, %531 : vector<8x32xf32>
    %539 = arith.mulf %538, %536 : vector<8x32xf32>
    %540 = arith.mulf %531, %494 : vector<8x32xf32>
    %541 = arith.addf %539, %540 : vector<8x32xf32>
    %542 = vector.extract_strided_slice %19 {offsets = [8, 96], sizes = [8, 32], strides = [1, 1]} : vector<64x192xf32> to vector<8x32xf32>
    %543 = vector.extract_strided_slice %515 {offsets = [0, 0], sizes = [8, 32], strides = [1, 1]} : vector<8x96xf32> to vector<8x32xf32>
    %544 = arith.addf %542, %543 : vector<8x32xf32>
    %545 = arith.negf %544 : vector<8x32xf32>
    %546 = math.exp %545 : vector<8x32xf32>
    %cst_115 = arith.constant 1.000000e+00 : f32
    %547 = vector.broadcast %cst_115 : f32 to vector<8x32xf32>
    %548 = arith.addf %547, %546 : vector<8x32xf32>
    %549 = arith.divf %547, %548 : vector<8x32xf32>
    %550 = vector.extract_strided_slice %19 {offsets = [8, 128], sizes = [8, 32], strides = [1, 1]} : vector<64x192xf32> to vector<8x32xf32>
    %551 = vector.extract_strided_slice %515 {offsets = [0, 32], sizes = [8, 32], strides = [1, 1]} : vector<8x96xf32> to vector<8x32xf32>
    %552 = arith.addf %550, %551 : vector<8x32xf32>
    %553 = arith.negf %552 : vector<8x32xf32>
    %554 = math.exp %553 : vector<8x32xf32>
    %cst_116 = arith.constant 1.000000e+00 : f32
    %555 = vector.broadcast %cst_116 : f32 to vector<8x32xf32>
    %556 = arith.addf %555, %554 : vector<8x32xf32>
    %557 = arith.divf %555, %556 : vector<8x32xf32>
    %558 = vector.extract_strided_slice %19 {offsets = [8, 160], sizes = [8, 32], strides = [1, 1]} : vector<64x192xf32> to vector<8x32xf32>
    %559 = vector.extract_strided_slice %515 {offsets = [0, 64], sizes = [8, 32], strides = [1, 1]} : vector<8x96xf32> to vector<8x32xf32>
    %560 = arith.mulf %549, %559 : vector<8x32xf32>
    %561 = arith.addf %558, %560 : vector<8x32xf32>
    %562 = math.tanh %561 : vector<8x32xf32>
    %cst_117 = arith.constant 1.000000e+00 : f32
    %563 = vector.broadcast %cst_117 : f32 to vector<8x32xf32>
    %564 = arith.subf %563, %557 : vector<8x32xf32>
    %565 = arith.mulf %564, %562 : vector<8x32xf32>
    %566 = arith.mulf %557, %497 : vector<8x32xf32>
    %567 = arith.addf %565, %566 : vector<8x32xf32>
    %c6_i32_118 = arith.constant 6 : i32
    %568 = vector.broadcast %c6_i32_118 : i32 to vector<8x1xi32>
    %569 = arith.cmpi sgt, %25, %568 : vector<8x1xi32>
    %c1_i32_119 = arith.constant 1 : i32
    %570 = vector.broadcast %c1_i32_119 : i32 to vector<8x1xi32>
    %571 = arith.cmpi sgt, %25, %570 : vector<8x1xi32>
    %572 = vector.shape_cast %569 : vector<8x1xi1> to vector<8x1xi1>
    %573 = vector.broadcast %572 : vector<8x1xi1> to vector<8x32xi1>
    %574 = arith.select %573, %541, %494 : vector<8x32xi1>, vector<8x32xf32>
    %575 = vector.shape_cast %571 : vector<8x1xi1> to vector<8x1xi1>
    %576 = vector.broadcast %575 : vector<8x1xi1> to vector<8x32xi1>
    %577 = arith.select %576, %567, %497 : vector<8x32xi1>, vector<8x32xf32>
    %cst_120 = arith.constant 0.000000e+00 : f32
    %578 = vector.shape_cast %569 : vector<8x1xi1> to vector<8x1xi1>
    %579 = vector.broadcast %578 : vector<8x1xi1> to vector<8x32xi1>
    %580 = vector.broadcast %cst_120 : f32 to vector<8x32xf32>
    %581 = arith.select %579, %541, %580 : vector<8x32xi1>, vector<8x32xf32>
    %c48_121 = arith.constant 48 : index
    %c0_122 = arith.constant 0 : index
    %582 = vector.load %arg21[%c48_121, %c0_122] : memref<64x32xf32, #tpu.memory_space<vmem>>, vector<8x32xf32>
    tpu.vector_store %arg21[%c48_121, %c0_122], %581 {strides = array<i32>} : memref<64x32xf32, #tpu.memory_space<vmem>>, vector<8x32xf32>,
    %cst_123 = arith.constant 0.000000e+00 : f32
    %583 = vector.shape_cast %571 : vector<8x1xi1> to vector<8x1xi1>
    %584 = vector.broadcast %583 : vector<8x1xi1> to vector<8x32xi1>
    %585 = vector.broadcast %cst_123 : f32 to vector<8x32xf32>
    %586 = arith.select %584, %567, %585 : vector<8x32xi1>, vector<8x32xf32>
    %c8_124 = arith.constant 8 : index
    %c0_125 = arith.constant 0 : index
    %587 = vector.load %arg22[%c8_124, %c0_125] : memref<64x32xf32, #tpu.memory_space<vmem>>, vector<8x32xf32>
    tpu.vector_store %arg22[%c8_124, %c0_125], %586 {strides = array<i32>} : memref<64x32xf32, #tpu.memory_space<vmem>>, vector<8x32xf32>,
    %588 = arith.truncf %574 : vector<8x32xf32> to vector<8x32xbf16>
    %cst_126 = arith.constant dense<0.000000e+00> : vector<8x96xf32>
    %589 = tpu.matmul %588, %20, %cst_126 {dimension_numbers = #tpu.dot_dimension_numbers<[1], [0], [0], [1], [0, 0, 1, 1], [], []>} : vector<8x32xbf16>, vector<32x96xbf16>, vector<8x96xf32> -> vector<8x96xf32>
    %590 = vector.broadcast %22 : vector<1x96xf32> to vector<8x96xf32>
    %591 = arith.addf %589, %590 : vector<8x96xf32>
    %592 = arith.truncf %577 : vector<8x32xf32> to vector<8x32xbf16>
    %cst_127 = arith.constant dense<0.000000e+00> : vector<8x96xf32>
    %593 = tpu.matmul %592, %21, %cst_127 {dimension_numbers = #tpu.dot_dimension_numbers<[1], [0], [0], [1], [0, 0, 1, 1], [], []>} : vector<8x32xbf16>, vector<32x96xbf16>, vector<8x96xf32> -> vector<8x96xf32>
    %594 = vector.broadcast %23 : vector<1x96xf32> to vector<8x96xf32>
    %595 = arith.addf %593, %594 : vector<8x96xf32>
    %596 = vector.extract_strided_slice %19 {offsets = [56, 0], sizes = [8, 32], strides = [1, 1]} : vector<64x192xf32> to vector<8x32xf32>
    %597 = vector.extract_strided_slice %591 {offsets = [0, 0], sizes = [8, 32], strides = [1, 1]} : vector<8x96xf32> to vector<8x32xf32>
    %598 = arith.addf %596, %597 : vector<8x32xf32>
    %599 = arith.negf %598 : vector<8x32xf32>
    %600 = math.exp %599 : vector<8x32xf32>
    %cst_128 = arith.constant 1.000000e+00 : f32
    %601 = vector.broadcast %cst_128 : f32 to vector<8x32xf32>
    %602 = arith.addf %601, %600 : vector<8x32xf32>
    %603 = arith.divf %601, %602 : vector<8x32xf32>
    %604 = vector.extract_strided_slice %19 {offsets = [56, 32], sizes = [8, 32], strides = [1, 1]} : vector<64x192xf32> to vector<8x32xf32>
    %605 = vector.extract_strided_slice %591 {offsets = [0, 32], sizes = [8, 32], strides = [1, 1]} : vector<8x96xf32> to vector<8x32xf32>
    %606 = arith.addf %604, %605 : vector<8x32xf32>
    %607 = arith.negf %606 : vector<8x32xf32>
    %608 = math.exp %607 : vector<8x32xf32>
    %cst_129 = arith.constant 1.000000e+00 : f32
    %609 = vector.broadcast %cst_129 : f32 to vector<8x32xf32>
    %610 = arith.addf %609, %608 : vector<8x32xf32>
    %611 = arith.divf %609, %610 : vector<8x32xf32>
    %612 = vector.extract_strided_slice %19 {offsets = [56, 64], sizes = [8, 32], strides = [1, 1]} : vector<64x192xf32> to vector<8x32xf32>
    %613 = vector.extract_strided_slice %591 {offsets = [0, 64], sizes = [8, 32], strides = [1, 1]} : vector<8x96xf32> to vector<8x32xf32>
    %614 = arith.mulf %603, %613 : vector<8x32xf32>
    %615 = arith.addf %612, %614 : vector<8x32xf32>
    %616 = math.tanh %615 : vector<8x32xf32>
    %cst_130 = arith.constant 1.000000e+00 : f32
    %617 = vector.broadcast %cst_130 : f32 to vector<8x32xf32>
    %618 = arith.subf %617, %611 : vector<8x32xf32>
    %619 = arith.mulf %618, %616 : vector<8x32xf32>
    %620 = arith.mulf %611, %574 : vector<8x32xf32>
    %621 = arith.addf %619, %620 : vector<8x32xf32>
    %622 = vector.extract_strided_slice %19 {offsets = [0, 96], sizes = [8, 32], strides = [1, 1]} : vector<64x192xf32> to vector<8x32xf32>
    %623 = vector.extract_strided_slice %595 {offsets = [0, 0], sizes = [8, 32], strides = [1, 1]} : vector<8x96xf32> to vector<8x32xf32>
    %624 = arith.addf %622, %623 : vector<8x32xf32>
    %625 = arith.negf %624 : vector<8x32xf32>
    %626 = math.exp %625 : vector<8x32xf32>
    %cst_131 = arith.constant 1.000000e+00 : f32
    %627 = vector.broadcast %cst_131 : f32 to vector<8x32xf32>
    %628 = arith.addf %627, %626 : vector<8x32xf32>
    %629 = arith.divf %627, %628 : vector<8x32xf32>
    %630 = vector.extract_strided_slice %19 {offsets = [0, 128], sizes = [8, 32], strides = [1, 1]} : vector<64x192xf32> to vector<8x32xf32>
    %631 = vector.extract_strided_slice %595 {offsets = [0, 32], sizes = [8, 32], strides = [1, 1]} : vector<8x96xf32> to vector<8x32xf32>
    %632 = arith.addf %630, %631 : vector<8x32xf32>
    %633 = arith.negf %632 : vector<8x32xf32>
    %634 = math.exp %633 : vector<8x32xf32>
    %cst_132 = arith.constant 1.000000e+00 : f32
    %635 = vector.broadcast %cst_132 : f32 to vector<8x32xf32>
    %636 = arith.addf %635, %634 : vector<8x32xf32>
    %637 = arith.divf %635, %636 : vector<8x32xf32>
    %638 = vector.extract_strided_slice %19 {offsets = [0, 160], sizes = [8, 32], strides = [1, 1]} : vector<64x192xf32> to vector<8x32xf32>
    %639 = vector.extract_strided_slice %595 {offsets = [0, 64], sizes = [8, 32], strides = [1, 1]} : vector<8x96xf32> to vector<8x32xf32>
    %640 = arith.mulf %629, %639 : vector<8x32xf32>
    %641 = arith.addf %638, %640 : vector<8x32xf32>
    %642 = math.tanh %641 : vector<8x32xf32>
    %cst_133 = arith.constant 1.000000e+00 : f32
    %643 = vector.broadcast %cst_133 : f32 to vector<8x32xf32>
    %644 = arith.subf %643, %637 : vector<8x32xf32>
    %645 = arith.mulf %644, %642 : vector<8x32xf32>
    %646 = arith.mulf %637, %577 : vector<8x32xf32>
    %647 = arith.addf %645, %646 : vector<8x32xf32>
    %c7_i32_134 = arith.constant 7 : i32
    %648 = vector.broadcast %c7_i32_134 : i32 to vector<8x1xi32>
    %649 = arith.cmpi sgt, %25, %648 : vector<8x1xi32>
    %c0_i32_135 = arith.constant 0 : i32
    %650 = vector.broadcast %c0_i32_135 : i32 to vector<8x1xi32>
    %651 = arith.cmpi sgt, %25, %650 : vector<8x1xi32>
    %cst_136 = arith.constant 0.000000e+00 : f32
    %652 = vector.shape_cast %649 : vector<8x1xi1> to vector<8x1xi1>
    %653 = vector.broadcast %652 : vector<8x1xi1> to vector<8x32xi1>
    %654 = vector.broadcast %cst_136 : f32 to vector<8x32xf32>
    %655 = arith.select %653, %621, %654 : vector<8x32xi1>, vector<8x32xf32>
    %c56_137 = arith.constant 56 : index
    %c0_138 = arith.constant 0 : index
    %656 = vector.load %arg21[%c56_137, %c0_138] : memref<64x32xf32, #tpu.memory_space<vmem>>, vector<8x32xf32>
    tpu.vector_store %arg21[%c56_137, %c0_138], %655 {strides = array<i32>} : memref<64x32xf32, #tpu.memory_space<vmem>>, vector<8x32xf32>,
    %cst_139 = arith.constant 0.000000e+00 : f32
    %657 = vector.shape_cast %651 : vector<8x1xi1> to vector<8x1xi1>
    %658 = vector.broadcast %657 : vector<8x1xi1> to vector<8x32xi1>
    %659 = vector.broadcast %cst_139 : f32 to vector<8x32xf32>
    %660 = arith.select %658, %647, %659 : vector<8x32xi1>, vector<8x32xf32>
    %c0_140 = arith.constant 0 : index
    %c0_141 = arith.constant 0 : index
    %661 = vector.load %arg22[%c0_140, %c0_141] : memref<64x32xf32, #tpu.memory_space<vmem>>, vector<8x32xf32>
    tpu.vector_store %arg22[%c0_140, %c0_141], %660 {strides = array<i32>} : memref<64x32xf32, #tpu.memory_space<vmem>>, vector<8x32xf32>,
    %c0_142 = arith.constant 0 : index
    %c0_143 = arith.constant 0 : index
    %662 = vector.load %arg21[%c0_142, %c0_143] : memref<64x32xf32, #tpu.memory_space<vmem>>, vector<64x32xf32>
    %663 = arith.truncf %662 : vector<64x32xf32> to vector<64x32xbf16>
    %c0_144 = arith.constant 0 : index
    %c0_145 = arith.constant 0 : index
    %664 = vector.load %arg12[%c0_144, %c0_145] : memref<32x128xbf16, #tpu.memory_space<vmem>>, vector<32x128xbf16>
    %cst_146 = arith.constant dense<0.000000e+00> : vector<64x128xf32>
    %665 = tpu.matmul %663, %664, %cst_146 {dimension_numbers = #tpu.dot_dimension_numbers<[1], [0], [0], [1], [0, 0, 1, 1], [], []>} : vector<64x32xbf16>, vector<32x128xbf16>, vector<64x128xf32> -> vector<64x128xf32>
    %c0_147 = arith.constant 0 : index
    %c0_148 = arith.constant 0 : index
    %666 = vector.load %arg22[%c0_147, %c0_148] : memref<64x32xf32, #tpu.memory_space<vmem>>, vector<64x32xf32>
    %667 = arith.truncf %666 : vector<64x32xf32> to vector<64x32xbf16>
    %c0_149 = arith.constant 0 : index
    %c0_150 = arith.constant 0 : index
    %668 = vector.load %arg13[%c0_149, %c0_150] : memref<32x128xbf16, #tpu.memory_space<vmem>>, vector<32x128xbf16>
    %cst_151 = arith.constant dense<0.000000e+00> : vector<64x128xf32>
    %669 = tpu.matmul %667, %668, %cst_151 {dimension_numbers = #tpu.dot_dimension_numbers<[1], [0], [0], [1], [0, 0, 1, 1], [], []>} : vector<64x32xbf16>, vector<32x128xbf16>, vector<64x128xf32> -> vector<64x128xf32>
    %670 = arith.addf %665, %669 : vector<64x128xf32>
    %c0_152 = arith.constant 0 : index
    %c0_153 = arith.constant 0 : index
    %671 = vector.load %arg14[%c0_152, %c0_153] : memref<1x128xf32, #tpu.memory_space<vmem>>, vector<1x128xf32>
    %672 = vector.broadcast %671 : vector<1x128xf32> to vector<64x128xf32>
    %673 = arith.addf %670, %672 : vector<64x128xf32>
    %c0_154 = arith.constant 0 : index
    %c0_155 = arith.constant 0 : index
    %674 = vector.load %arg16[%c0_154, %c0_155] : memref<1x128xf32, #tpu.memory_space<vmem>>, vector<1x128xf32>
    %c0_156 = arith.constant 0 : index
    %c0_157 = arith.constant 0 : index
    %675 = vector.load %arg17[%c0_156, %c0_157] : memref<1x128xf32, #tpu.memory_space<vmem>>, vector<1x128xf32>
    %c0_158 = arith.constant 0 : index
    %c0_159 = arith.constant 0 : index
    %676 = vector.load %arg15[%c0_158, %c0_159] : memref<128x128xf32, #tpu.memory_space<vmem>>, vector<128x128xf32>
    %c0_160 = arith.constant 0 : index
    %c0_161 = arith.constant 0 : index
    %677 = vector.load %arg18[%c0_160, %c0_161] : memref<64x1xi32, #tpu.memory_space<vmem>>, vector<64x1xi32>
    %678 = tpu.iota {dimensions = array<i32: 1>} : vector<64x128xi32>
    %679 = vector.broadcast %677 : vector<64x1xi32> to vector<64x128xi32>
    %680 = arith.cmpi eq, %678, %679 : vector<64x128xi32>
    %681 = arith.extui %680 : vector<64x128xi1> to vector<64x128xi32>
    %682 = arith.sitofp %681 : vector<64x128xi32> to vector<64x128xf32>
    %683 = tpu.iota {dimensions = array<i32: 0>} : vector<8x8x1xi32>
    %684 = vector.shape_cast %683 : vector<8x8x1xi32> to vector<64x1xi32>
    %685 = arith.cmpi slt, %684, %24 : vector<64x1xi32>
    %686 = arith.extui %685 : vector<64x1xi1> to vector<64x1xi32>
    %687 = arith.sitofp %686 : vector<64x1xi32> to vector<64x1xf32>
    %688 = arith.mulf %682, %673 : vector<64x128xf32>
    %cst_162 = arith.constant dense<0.000000e+00> : vector<64xf32>
    %689 = vector.multi_reduction <add>, %688, %cst_162 [1] : vector<64x128xf32> to vector<64xf32>
    %690 = vector.shape_cast %689 : vector<64xf32> to vector<64x1xf32>
    %691 = arith.mulf %690, %687 : vector<64x1xf32>
    %692 = vector.shape_cast %691 : vector<64x1xf32> to vector<8x8x1xf32>
    %cst_163 = arith.constant dense<0.000000e+00> : vector<8x1xf32>
    %693 = vector.multi_reduction <add>, %692, %cst_163 [0] : vector<8x8x1xf32> to vector<8x1xf32>
    %694 = vector.extract_strided_slice %682 {offsets = [0, 0], sizes = [56, 128], strides = [1, 1]} : vector<64x128xf32> to vector<56x128xf32>
    %cst_164 = arith.constant dense<0.000000e+00> : vector<56x128xf32>
    %695 = tpu.matmul %694, %676, %cst_164 {dimension_numbers = #tpu.dot_dimension_numbers<[1], [0], [0], [1], [0, 0, 1, 1], [], []>} : vector<56x128xf32>, vector<128x128xf32>, vector<56x128xf32> -> vector<56x128xf32>
    %696 = vector.extract_strided_slice %682 {offsets = [8, 0], sizes = [56, 128], strides = [1, 1]} : vector<64x128xf32> to vector<56x128xf32>
    %697 = arith.mulf %695, %696 : vector<56x128xf32>
    %cst_165 = arith.constant dense<0.000000e+00> : vector<56xf32>
    %698 = vector.multi_reduction <add>, %697, %cst_165 [1] : vector<56x128xf32> to vector<56xf32>
    %699 = vector.shape_cast %698 : vector<56xf32> to vector<56x1xf32>
    %700 = vector.extract_strided_slice %687 {offsets = [8, 0], sizes = [56, 1], strides = [1, 1]} : vector<64x1xf32> to vector<56x1xf32>
    %701 = arith.mulf %699, %700 : vector<56x1xf32>
    %702 = vector.shape_cast %701 : vector<56x1xf32> to vector<7x8x1xf32>
    %cst_166 = arith.constant dense<0.000000e+00> : vector<8x1xf32>
    %703 = vector.multi_reduction <add>, %702, %cst_166 [0] : vector<7x8x1xf32> to vector<8x1xf32>
    %704 = vector.extract_strided_slice %682 {offsets = [0, 0], sizes = [8, 128], strides = [1, 1]} : vector<64x128xf32> to vector<8x128xf32>
    %705 = vector.broadcast %674 : vector<1x128xf32> to vector<8x128xf32>
    %706 = arith.mulf %704, %705 : vector<8x128xf32>
    %cst_167 = arith.constant dense<0.000000e+00> : vector<8xf32>
    %707 = vector.multi_reduction <add>, %706, %cst_167 [1] : vector<8x128xf32> to vector<8xf32>
    %708 = vector.shape_cast %707 : vector<8xf32> to vector<8x1xf32>
    %c1_i32_168 = arith.constant 1 : i32
    %709 = vector.broadcast %c1_i32_168 : i32 to vector<64x1xi32>
    %710 = arith.subi %24, %709 : vector<64x1xi32>
    %711 = arith.cmpi eq, %684, %710 : vector<64x1xi32>
    %712 = arith.extui %711 : vector<64x1xi1> to vector<64x1xi32>
    %713 = arith.sitofp %712 : vector<64x1xi32> to vector<64x1xf32>
    %714 = vector.broadcast %675 : vector<1x128xf32> to vector<64x128xf32>
    %715 = arith.mulf %682, %714 : vector<64x128xf32>
    %cst_169 = arith.constant dense<0.000000e+00> : vector<64xf32>
    %716 = vector.multi_reduction <add>, %715, %cst_169 [1] : vector<64x128xf32> to vector<64xf32>
    %717 = vector.shape_cast %716 : vector<64xf32> to vector<64x1xf32>
    %718 = arith.mulf %717, %713 : vector<64x1xf32>
    %719 = vector.shape_cast %718 : vector<64x1xf32> to vector<8x8x1xf32>
    %cst_170 = arith.constant dense<0.000000e+00> : vector<8x1xf32>
    %720 = vector.multi_reduction <add>, %719, %cst_170 [0] : vector<8x8x1xf32> to vector<8x1xf32>
    %721 = arith.addf %693, %703 : vector<8x1xf32>
    %722 = arith.addf %721, %708 : vector<8x1xf32>
    %723 = arith.addf %722, %720 : vector<8x1xf32>
    %c0_171 = arith.constant 0 : index
    %c0_172 = arith.constant 0 : index
    %724 = vector.load %arg15[%c0_171, %c0_172] : memref<128x128xf32, #tpu.memory_space<vmem>>, vector<128x128xf32>
    %cst_173 = arith.constant dense<0xFF800000> : vector<128xf32>
    %725 = vector.multi_reduction <maximumf>, %724, %cst_173 [0] : vector<128x128xf32> to vector<128xf32>
    %726 = vector.shape_cast %725 : vector<128xf32> to vector<1x128xf32>
    %727 = vector.broadcast %726 : vector<1x128xf32> to vector<128x128xf32>
    %728 = arith.subf %724, %727 : vector<128x128xf32>
    %729 = math.exp %728 : vector<128x128xf32>
    %730 = vector.extract_strided_slice %673 {offsets = [0, 0], sizes = [8, 128], strides = [1, 1]} : vector<64x128xf32> to vector<8x128xf32>
    %731 = vector.broadcast %674 : vector<1x128xf32> to vector<8x128xf32>
    %732 = arith.addf %731, %730 : vector<8x128xf32>
    %733 = vector.extract_strided_slice %673 {offsets = [8, 0], sizes = [8, 128], strides = [1, 1]} : vector<64x128xf32> to vector<8x128xf32>
    %cst_174 = arith.constant dense<0xFF800000> : vector<8xf32>
    %734 = vector.multi_reduction <maximumf>, %732, %cst_174 [1] : vector<8x128xf32> to vector<8xf32>
    %735 = vector.shape_cast %734 : vector<8xf32> to vector<8x1xf32>
    %736 = vector.broadcast %735 : vector<8x1xf32> to vector<8x128xf32>
    %737 = arith.subf %732, %736 : vector<8x128xf32>
    %738 = math.exp %737 : vector<8x128xf32>
    %cst_175 = arith.constant dense<0.000000e+00> : vector<8x128xf32>
    %739 = tpu.matmul %738, %729, %cst_175 {dimension_numbers = #tpu.dot_dimension_numbers<[1], [0], [0], [1], [0, 0, 1, 1], [], []>} : vector<8x128xf32>, vector<128x128xf32>, vector<8x128xf32> -> vector<8x128xf32>
    %740 = vector.broadcast %735 : vector<8x1xf32> to vector<8x128xf32>
    %741 = vector.broadcast %726 : vector<1x128xf32> to vector<8x128xf32>
    %742 = arith.addf %740, %741 : vector<8x128xf32>
    %cst_176 = arith.constant 1.000000e-30 : f32
    %743 = vector.broadcast %cst_176 : f32 to vector<8x128xf32>
    %744 = arith.maximumf %739, %743 : vector<8x128xf32>
    %745 = math.log %744 : vector<8x128xf32>
    %746 = arith.addf %742, %745 : vector<8x128xf32>
    %c1_i32_177 = arith.constant 1 : i32
    %747 = vector.broadcast %c1_i32_177 : i32 to vector<8x1xi32>
    %748 = arith.cmpi sgt, %25, %747 : vector<8x1xi32>
    %749 = arith.addf %733, %746 : vector<8x128xf32>
    %750 = vector.shape_cast %748 : vector<8x1xi1> to vector<8x1xi1>
    %751 = vector.broadcast %750 : vector<8x1xi1> to vector<8x128xi1>
    %752 = arith.select %751, %749, %732 : vector<8x128xi1>, vector<8x128xf32>
    %753 = vector.extract_strided_slice %673 {offsets = [16, 0], sizes = [8, 128], strides = [1, 1]} : vector<64x128xf32> to vector<8x128xf32>
    %cst_178 = arith.constant dense<0xFF800000> : vector<8xf32>
    %754 = vector.multi_reduction <maximumf>, %752, %cst_178 [1] : vector<8x128xf32> to vector<8xf32>
    %755 = vector.shape_cast %754 : vector<8xf32> to vector<8x1xf32>
    %756 = vector.broadcast %755 : vector<8x1xf32> to vector<8x128xf32>
    %757 = arith.subf %752, %756 : vector<8x128xf32>
    %758 = math.exp %757 : vector<8x128xf32>
    %cst_179 = arith.constant dense<0.000000e+00> : vector<8x128xf32>
    %759 = tpu.matmul %758, %729, %cst_179 {dimension_numbers = #tpu.dot_dimension_numbers<[1], [0], [0], [1], [0, 0, 1, 1], [], []>} : vector<8x128xf32>, vector<128x128xf32>, vector<8x128xf32> -> vector<8x128xf32>
    %760 = vector.broadcast %755 : vector<8x1xf32> to vector<8x128xf32>
    %761 = vector.broadcast %726 : vector<1x128xf32> to vector<8x128xf32>
    %762 = arith.addf %760, %761 : vector<8x128xf32>
    %cst_180 = arith.constant 1.000000e-30 : f32
    %763 = vector.broadcast %cst_180 : f32 to vector<8x128xf32>
    %764 = arith.maximumf %759, %763 : vector<8x128xf32>
    %765 = math.log %764 : vector<8x128xf32>
    %766 = arith.addf %762, %765 : vector<8x128xf32>
    %c2_i32_181 = arith.constant 2 : i32
    %767 = vector.broadcast %c2_i32_181 : i32 to vector<8x1xi32>
    %768 = arith.cmpi sgt, %25, %767 : vector<8x1xi32>
    %769 = arith.addf %753, %766 : vector<8x128xf32>
    %770 = vector.shape_cast %768 : vector<8x1xi1> to vector<8x1xi1>
    %771 = vector.broadcast %770 : vector<8x1xi1> to vector<8x128xi1>
    %772 = arith.select %771, %769, %752 : vector<8x128xi1>, vector<8x128xf32>
    %773 = vector.extract_strided_slice %673 {offsets = [24, 0], sizes = [8, 128], strides = [1, 1]} : vector<64x128xf32> to vector<8x128xf32>
    %cst_182 = arith.constant dense<0xFF800000> : vector<8xf32>
    %774 = vector.multi_reduction <maximumf>, %772, %cst_182 [1] : vector<8x128xf32> to vector<8xf32>
    %775 = vector.shape_cast %774 : vector<8xf32> to vector<8x1xf32>
    %776 = vector.broadcast %775 : vector<8x1xf32> to vector<8x128xf32>
    %777 = arith.subf %772, %776 : vector<8x128xf32>
    %778 = math.exp %777 : vector<8x128xf32>
    %cst_183 = arith.constant dense<0.000000e+00> : vector<8x128xf32>
    %779 = tpu.matmul %778, %729, %cst_183 {dimension_numbers = #tpu.dot_dimension_numbers<[1], [0], [0], [1], [0, 0, 1, 1], [], []>} : vector<8x128xf32>, vector<128x128xf32>, vector<8x128xf32> -> vector<8x128xf32>
    %780 = vector.broadcast %775 : vector<8x1xf32> to vector<8x128xf32>
    %781 = vector.broadcast %726 : vector<1x128xf32> to vector<8x128xf32>
    %782 = arith.addf %780, %781 : vector<8x128xf32>
    %cst_184 = arith.constant 1.000000e-30 : f32
    %783 = vector.broadcast %cst_184 : f32 to vector<8x128xf32>
    %784 = arith.maximumf %779, %783 : vector<8x128xf32>
    %785 = math.log %784 : vector<8x128xf32>
    %786 = arith.addf %782, %785 : vector<8x128xf32>
    %c3_i32_185 = arith.constant 3 : i32
    %787 = vector.broadcast %c3_i32_185 : i32 to vector<8x1xi32>
    %788 = arith.cmpi sgt, %25, %787 : vector<8x1xi32>
    %789 = arith.addf %773, %786 : vector<8x128xf32>
    %790 = vector.shape_cast %788 : vector<8x1xi1> to vector<8x1xi1>
    %791 = vector.broadcast %790 : vector<8x1xi1> to vector<8x128xi1>
    %792 = arith.select %791, %789, %772 : vector<8x128xi1>, vector<8x128xf32>
    %793 = vector.extract_strided_slice %673 {offsets = [32, 0], sizes = [8, 128], strides = [1, 1]} : vector<64x128xf32> to vector<8x128xf32>
    %cst_186 = arith.constant dense<0xFF800000> : vector<8xf32>
    %794 = vector.multi_reduction <maximumf>, %792, %cst_186 [1] : vector<8x128xf32> to vector<8xf32>
    %795 = vector.shape_cast %794 : vector<8xf32> to vector<8x1xf32>
    %796 = vector.broadcast %795 : vector<8x1xf32> to vector<8x128xf32>
    %797 = arith.subf %792, %796 : vector<8x128xf32>
    %798 = math.exp %797 : vector<8x128xf32>
    %cst_187 = arith.constant dense<0.000000e+00> : vector<8x128xf32>
    %799 = tpu.matmul %798, %729, %cst_187 {dimension_numbers = #tpu.dot_dimension_numbers<[1], [0], [0], [1], [0, 0, 1, 1], [], []>} : vector<8x128xf32>, vector<128x128xf32>, vector<8x128xf32> -> vector<8x128xf32>
    %800 = vector.broadcast %795 : vector<8x1xf32> to vector<8x128xf32>
    %801 = vector.broadcast %726 : vector<1x128xf32> to vector<8x128xf32>
    %802 = arith.addf %800, %801 : vector<8x128xf32>
    %cst_188 = arith.constant 1.000000e-30 : f32
    %803 = vector.broadcast %cst_188 : f32 to vector<8x128xf32>
    %804 = arith.maximumf %799, %803 : vector<8x128xf32>
    %805 = math.log %804 : vector<8x128xf32>
    %806 = arith.addf %802, %805 : vector<8x128xf32>
    %c4_i32_189 = arith.constant 4 : i32
    %807 = vector.broadcast %c4_i32_189 : i32 to vector<8x1xi32>
    %808 = arith.cmpi sgt, %25, %807 : vector<8x1xi32>
    %809 = arith.addf %793, %806 : vector<8x128xf32>
    %810 = vector.shape_cast %808 : vector<8x1xi1> to vector<8x1xi1>
    %811 = vector.broadcast %810 : vector<8x1xi1> to vector<8x128xi1>
    %812 = arith.select %811, %809, %792 : vector<8x128xi1>, vector<8x128xf32>
    %813 = vector.extract_strided_slice %673 {offsets = [40, 0], sizes = [8, 128], strides = [1, 1]} : vector<64x128xf32> to vector<8x128xf32>
    %cst_190 = arith.constant dense<0xFF800000> : vector<8xf32>
    %814 = vector.multi_reduction <maximumf>, %812, %cst_190 [1] : vector<8x128xf32> to vector<8xf32>
    %815 = vector.shape_cast %814 : vector<8xf32> to vector<8x1xf32>
    %816 = vector.broadcast %815 : vector<8x1xf32> to vector<8x128xf32>
    %817 = arith.subf %812, %816 : vector<8x128xf32>
    %818 = math.exp %817 : vector<8x128xf32>
    %cst_191 = arith.constant dense<0.000000e+00> : vector<8x128xf32>
    %819 = tpu.matmul %818, %729, %cst_191 {dimension_numbers = #tpu.dot_dimension_numbers<[1], [0], [0], [1], [0, 0, 1, 1], [], []>} : vector<8x128xf32>, vector<128x128xf32>, vector<8x128xf32> -> vector<8x128xf32>
    %820 = vector.broadcast %815 : vector<8x1xf32> to vector<8x128xf32>
    %821 = vector.broadcast %726 : vector<1x128xf32> to vector<8x128xf32>
    %822 = arith.addf %820, %821 : vector<8x128xf32>
    %cst_192 = arith.constant 1.000000e-30 : f32
    %823 = vector.broadcast %cst_192 : f32 to vector<8x128xf32>
    %824 = arith.maximumf %819, %823 : vector<8x128xf32>
    %825 = math.log %824 : vector<8x128xf32>
    %826 = arith.addf %822, %825 : vector<8x128xf32>
    %c5_i32_193 = arith.constant 5 : i32
    %827 = vector.broadcast %c5_i32_193 : i32 to vector<8x1xi32>
    %828 = arith.cmpi sgt, %25, %827 : vector<8x1xi32>
    %829 = arith.addf %813, %826 : vector<8x128xf32>
    %830 = vector.shape_cast %828 : vector<8x1xi1> to vector<8x1xi1>
    %831 = vector.broadcast %830 : vector<8x1xi1> to vector<8x128xi1>
    %832 = arith.select %831, %829, %812 : vector<8x128xi1>, vector<8x128xf32>
    %833 = vector.extract_strided_slice %673 {offsets = [48, 0], sizes = [8, 128], strides = [1, 1]} : vector<64x128xf32> to vector<8x128xf32>
    %cst_194 = arith.constant dense<0xFF800000> : vector<8xf32>
    %834 = vector.multi_reduction <maximumf>, %832, %cst_194 [1] : vector<8x128xf32> to vector<8xf32>
    %835 = vector.shape_cast %834 : vector<8xf32> to vector<8x1xf32>
    %836 = vector.broadcast %835 : vector<8x1xf32> to vector<8x128xf32>
    %837 = arith.subf %832, %836 : vector<8x128xf32>
    %838 = math.exp %837 : vector<8x128xf32>
    %cst_195 = arith.constant dense<0.000000e+00> : vector<8x128xf32>
    %839 = tpu.matmul %838, %729, %cst_195 {dimension_numbers = #tpu.dot_dimension_numbers<[1], [0], [0], [1], [0, 0, 1, 1], [], []>} : vector<8x128xf32>, vector<128x128xf32>, vector<8x128xf32> -> vector<8x128xf32>
    %840 = vector.broadcast %835 : vector<8x1xf32> to vector<8x128xf32>
    %841 = vector.broadcast %726 : vector<1x128xf32> to vector<8x128xf32>
    %842 = arith.addf %840, %841 : vector<8x128xf32>
    %cst_196 = arith.constant 1.000000e-30 : f32
    %843 = vector.broadcast %cst_196 : f32 to vector<8x128xf32>
    %844 = arith.maximumf %839, %843 : vector<8x128xf32>
    %845 = math.log %844 : vector<8x128xf32>
    %846 = arith.addf %842, %845 : vector<8x128xf32>
    %c6_i32_197 = arith.constant 6 : i32
    %847 = vector.broadcast %c6_i32_197 : i32 to vector<8x1xi32>
    %848 = arith.cmpi sgt, %25, %847 : vector<8x1xi32>
    %849 = arith.addf %833, %846 : vector<8x128xf32>
    %850 = vector.shape_cast %848 : vector<8x1xi1> to vector<8x1xi1>
    %851 = vector.broadcast %850 : vector<8x1xi1> to vector<8x128xi1>
    %852 = arith.select %851, %849, %832 : vector<8x128xi1>, vector<8x128xf32>
    %853 = vector.extract_strided_slice %673 {offsets = [56, 0], sizes = [8, 128], strides = [1, 1]} : vector<64x128xf32> to vector<8x128xf32>
    %cst_198 = arith.constant dense<0xFF800000> : vector<8xf32>
    %854 = vector.multi_reduction <maximumf>, %852, %cst_198 [1] : vector<8x128xf32> to vector<8xf32>
    %855 = vector.shape_cast %854 : vector<8xf32> to vector<8x1xf32>
    %856 = vector.broadcast %855 : vector<8x1xf32> to vector<8x128xf32>
    %857 = arith.subf %852, %856 : vector<8x128xf32>
    %858 = math.exp %857 : vector<8x128xf32>
    %cst_199 = arith.constant dense<0.000000e+00> : vector<8x128xf32>
    %859 = tpu.matmul %858, %729, %cst_199 {dimension_numbers = #tpu.dot_dimension_numbers<[1], [0], [0], [1], [0, 0, 1, 1], [], []>} : vector<8x128xf32>, vector<128x128xf32>, vector<8x128xf32> -> vector<8x128xf32>
    %860 = vector.broadcast %855 : vector<8x1xf32> to vector<8x128xf32>
    %861 = vector.broadcast %726 : vector<1x128xf32> to vector<8x128xf32>
    %862 = arith.addf %860, %861 : vector<8x128xf32>
    %cst_200 = arith.constant 1.000000e-30 : f32
    %863 = vector.broadcast %cst_200 : f32 to vector<8x128xf32>
    %864 = arith.maximumf %859, %863 : vector<8x128xf32>
    %865 = math.log %864 : vector<8x128xf32>
    %866 = arith.addf %862, %865 : vector<8x128xf32>
    %c7_i32_201 = arith.constant 7 : i32
    %867 = vector.broadcast %c7_i32_201 : i32 to vector<8x1xi32>
    %868 = arith.cmpi sgt, %25, %867 : vector<8x1xi32>
    %869 = arith.addf %853, %866 : vector<8x128xf32>
    %870 = vector.shape_cast %868 : vector<8x1xi1> to vector<8x1xi1>
    %871 = vector.broadcast %870 : vector<8x1xi1> to vector<8x128xi1>
    %872 = arith.select %871, %869, %852 : vector<8x128xi1>, vector<8x128xf32>
    %873 = vector.broadcast %675 : vector<1x128xf32> to vector<8x128xf32>
    %874 = arith.addf %872, %873 : vector<8x128xf32>
    %cst_202 = arith.constant dense<0xFF800000> : vector<8xf32>
    %875 = vector.multi_reduction <maximumf>, %874, %cst_202 [1] : vector<8x128xf32> to vector<8xf32>
    %876 = vector.shape_cast %875 : vector<8xf32> to vector<8x1xf32>
    %877 = vector.broadcast %876 : vector<8x1xf32> to vector<8x128xf32>
    %878 = arith.subf %874, %877 : vector<8x128xf32>
    %879 = math.exp %878 : vector<8x128xf32>
    %cst_203 = arith.constant dense<0.000000e+00> : vector<8xf32>
    %880 = vector.multi_reduction <add>, %879, %cst_203 [1] : vector<8x128xf32> to vector<8xf32>
    %881 = vector.shape_cast %880 : vector<8xf32> to vector<8x1xf32>
    %882 = math.log %881 : vector<8x1xf32>
    %883 = arith.addf %876, %882 : vector<8x1xf32>
    %884 = arith.subf %883, %723 : vector<8x1xf32>
    %c0_204 = arith.constant 0 : index
    %c0_205 = arith.constant 0 : index
    %885 = vector.load %arg20[%c0_204, %c0_205] : memref<8x1xf32, #tpu.memory_space<vmem>>, vector<8x1xf32>
    tpu.vector_store %arg20[%c0_204, %c0_205], %884 {strides = array<i32>} : memref<8x1xf32, #tpu.memory_space<vmem>>, vector<8x1xf32>,
    return
  }
  func.func @transform_0(%arg0: i32) -> (i32, i32) {
    %c0_i32 = arith.constant 0 : i32
    %c0_i32_0 = arith.constant 0 : i32
    %c0_i32_1 = arith.constant 0 : i32
    return %c0_i32, %c0_i32_0 : i32, i32
  }
  func.func @transform_1(%arg0: i32) -> (i32, i32) {
    %c0_i32 = arith.constant 0 : i32
    %c0_i32_0 = arith.constant 0 : i32
    %c0_i32_1 = arith.constant 0 : i32
    return %c0_i32, %c0_i32_0 : i32, i32
  }
  func.func @transform_2(%arg0: i32) -> (i32, i32) {
    %c0_i32 = arith.constant 0 : i32
    %c0_i32_0 = arith.constant 0 : i32
    %c0_i32_1 = arith.constant 0 : i32
    return %c0_i32, %c0_i32_0 : i32, i32
  }
  func.func @transform_3(%arg0: i32) -> (i32, i32) {
    %c0_i32 = arith.constant 0 : i32
    %c0_i32_0 = arith.constant 0 : i32
    %c0_i32_1 = arith.constant 0 : i32
    return %c0_i32, %c0_i32_0 : i32, i32
  }
  func.func @transform_4(%arg0: i32) -> (i32, i32) {
    %c0_i32 = arith.constant 0 : i32
    %c0_i32_0 = arith.constant 0 : i32
    %c0_i32_1 = arith.constant 0 : i32
    return %c0_i32, %c0_i32_0 : i32, i32
  }
  func.func @transform_5(%arg0: i32) -> (i32, i32) {
    %c0_i32 = arith.constant 0 : i32
    %c0_i32_0 = arith.constant 0 : i32
    %c0_i32_1 = arith.constant 0 : i32
    return %c0_i32, %c0_i32_0 : i32, i32
  }
  func.func @transform_6(%arg0: i32) -> (i32, i32) {
    %c0_i32 = arith.constant 0 : i32
    %c0_i32_0 = arith.constant 0 : i32
    %c0_i32_1 = arith.constant 0 : i32
    return %c0_i32, %c0_i32_0 : i32, i32
  }
  func.func @transform_7(%arg0: i32) -> (i32, i32) {
    %c0_i32 = arith.constant 0 : i32
    %c0_i32_0 = arith.constant 0 : i32
    %c0_i32_1 = arith.constant 0 : i32
    return %c0_i32, %c0_i32_0 : i32, i32
  }
  func.func @transform_8(%arg0: i32) -> (i32, i32) {
    %c0_i32 = arith.constant 0 : i32
    %c0_i32_0 = arith.constant 0 : i32
    %c0_i32_1 = arith.constant 0 : i32
    return %c0_i32, %c0_i32_0 : i32, i32
  }
  func.func @transform_9(%arg0: i32) -> (i32, i32) {
    %c0_i32 = arith.constant 0 : i32
    %c0_i32_0 = arith.constant 0 : i32
    %c0_i32_1 = arith.constant 0 : i32
    return %c0_i32, %c0_i32_0 : i32, i32
  }
  func.func @transform_10(%arg0: i32) -> (i32, i32) {
    %c0_i32 = arith.constant 0 : i32
    %c0_i32_0 = arith.constant 0 : i32
    %c0_i32_1 = arith.constant 0 : i32
    return %c0_i32, %c0_i32_0 : i32, i32
  }
  func.func @transform_11(%arg0: i32) -> (i32, i32) {
    %c0_i32 = arith.constant 0 : i32
    %c0_i32_0 = arith.constant 0 : i32
    %c0_i32_1 = arith.constant 0 : i32
    return %c0_i32, %c0_i32_0 : i32, i32
  }
  func.func @transform_12(%arg0: i32) -> (i32, i32) {
    %c0_i32 = arith.constant 0 : i32
    %c0_i32_0 = arith.constant 0 : i32
    %c0_i32_1 = arith.constant 0 : i32
    return %c0_i32, %c0_i32_0 : i32, i32
  }
  func.func @transform_13(%arg0: i32) -> (i32, i32) {
    %c0_i32 = arith.constant 0 : i32
    %c0_i32_0 = arith.constant 0 : i32
    %c0_i32_1 = arith.constant 0 : i32
    return %c0_i32, %c0_i32_0 : i32, i32
  }
  func.func @transform_14(%arg0: i32) -> (i32, i32) {
    %c0_i32 = arith.constant 0 : i32
    %c0_i32_0 = arith.constant 0 : i32
    %c0_i32_1 = arith.constant 0 : i32
    return %c0_i32, %c0_i32_0 : i32, i32
  }
  func.func @transform_15(%arg0: i32) -> (i32, i32) {
    %c0_i32 = arith.constant 0 : i32
    %c0_i32_0 = arith.constant 0 : i32
    %c0_i32_1 = arith.constant 0 : i32
    return %c0_i32, %c0_i32_0 : i32, i32
  }
  func.func @transform_16(%arg0: i32) -> (i32, i32) {
    %c0_i32 = arith.constant 0 : i32
    %c0_i32_0 = arith.constant 0 : i32
    %c0_i32_1 = arith.constant 0 : i32
    return %c0_i32, %c0_i32_0 : i32, i32
  }
  func.func @transform_17(%arg0: i32) -> (i32, i32) {
    %c0_i32 = arith.constant 0 : i32
    %c0_i32_0 = arith.constant 0 : i32
    %c0_i32_1 = arith.constant 0 : i32
    return %c0_i32, %c0_i32_0 : i32, i32
  }
  func.func @transform_18(%arg0: i32) -> (i32, i32) {
    %c0_i32 = arith.constant 0 : i32
    %c0_i32_0 = arith.constant 0 : i32
    %c0_i32_1 = arith.constant 0 : i32
    return %c0_i32, %c0_i32_0 : i32, i32
  }
  func.func @transform_19(%arg0: i32) -> (i32, i32) {
    %c0_i32 = arith.constant 0 : i32
    %c0_i32_0 = arith.constant 0 : i32
    %c0_i32_1 = arith.constant 0 : i32
    return %c0_i32, %c0_i32_0 : i32, i32
  }
}

</mosaic_0001>

<llo_original>
// kernel: ner_forward.1
$region0: #{ner_forward.1}
  #allocation0 [shape = 'u32[]', space=smem, size = 0x4, offset = 0x4, fixed_abs, tag = 'smem constant byte address 0x4 - core index']
  #allocation1 [shape = 'u32[72,128]{1,0:T(1,128)}', space=vmem, size = 0x9000, scoped, tag = 'internal scratch']
  #allocation2 [shape = 'f32[64,32]{1,0:T(8,128)}', space=vmem, size = 0x8000, scoped, tag = 'scratch operand']
  #allocation3 [shape = 'f32[64,32]{1,0:T(8,128)}', space=vmem, size = 0x8000, scoped, tag = 'scratch operand']
  %s0 = inlined_call_operand.vmem [shape: bf16[896,48], index: 0, kind: input, shape index: {}]
  %s1 = inlined_call_operand.vmem [shape: bf16[48,16], index: 1, kind: input, shape index: {}]
  %s2 = inlined_call_operand.vmem [shape: f32[1,16], index: 2, kind: input, shape index: {}]
  %s3 = inlined_call_operand.vmem [shape: bf16[64,32], index: 3, kind: input, shape index: {}]
  %s4 = inlined_call_operand.vmem [shape: bf16[32,192], index: 4, kind: input, shape index: {}]
  %s5 = inlined_call_operand.vmem [shape: bf16[16,192], index: 5, kind: input, shape index: {}]
  %s6 = inlined_call_operand.vmem [shape: f32[1,192], index: 6, kind: input, shape index: {}]
  %s7 = inlined_call_operand.vmem [shape: bf16[32,96], index: 7, kind: input, shape index: {}]
  %s8 = inlined_call_operand.vmem [shape: bf16[32,96], index: 8, kind: input, shape index: {}]
  %s9 = inlined_call_operand.vmem [shape: f32[1,96], index: 9, kind: input, shape index: {}]
  %s10 = inlined_call_operand.vmem [shape: f32[1,96], index: 10, kind: input, shape index: {}]
  %s11 = inlined_call_operand.vmem [shape: bf16[32,128], index: 11, kind: input, shape index: {}]
  %s12 = inlined_call_operand.vmem [shape: bf16[32,128], index: 12, kind: input, shape index: {}]
  %s13 = inlined_call_operand.vmem [shape: f32[1,128], index: 13, kind: input, shape index: {}]
  %s14 = inlined_call_operand.vmem [shape: f32[128,128], index: 14, kind: input, shape index: {}]
  %s15 = inlined_call_operand.vmem [shape: f32[1,128], index: 15, kind: input, shape index: {}]
  %s16 = inlined_call_operand.vmem [shape: f32[1,128], index: 16, kind: input, shape index: {}]
  %s17 = inlined_call_operand.vmem [shape: s32[64,1], index: 17, kind: input, shape index: {}]
  %s18 = inlined_call_operand.vmem [shape: s32[64,1], index: 18, kind: input, shape index: {}]
  %s19 = inlined_call_operand.vmem [shape: f32[8,1], index: 19, kind: output, shape index: {}]
  %s20 = sld [smem:[#allocation0]]
  $region86: #{ner_forward.1} parent=0
    _
  %s22 = ssub.s32 1, %s20
  %s23 = scalar_select 0, %s22, %s20
  // Predicated region
  $region2: #{ner_forward.1} parent=0 // pred_check
    _
  $region3: #{ner_forward.1} parent=0 // pred_check_branch
    %25 = sbr.rel (0) target = $region5
  $region4: #{ner_forward.1} parent=0 // pred_region
    _
  $region5: #{ner_forward.1} parent=0 // pred_fallthru
    _
  // Predicated region
  $region6: #{ner_forward.1} parent=0 // pred_check
    _
  $region7: #{ner_forward.1} parent=0 // pred_check_branch
    %27 = sbr.rel (0) target = $region9
  $region8: #{ner_forward.1} parent=0 // pred_region
    _
  $region9: #{ner_forward.1} parent=0 // pred_fallthru
    _
  // Predicated region
  $region10: #{ner_forward.1} parent=0 // pred_check
    _
  $region11: #{ner_forward.1} parent=0 // pred_check_branch
    %29 = sbr.rel (0) target = $region13
  $region12: #{ner_forward.1} parent=0 // pred_region
    _
  $region13: #{ner_forward.1} parent=0 // pred_fallthru
    _
  // Predicated region
  $region14: #{ner_forward.1} parent=0 // pred_check
    _
  $region15: #{ner_forward.1} parent=0 // pred_check_branch
    %31 = sbr.rel (0) target = $region17
  $region16: #{ner_forward.1} parent=0 // pred_region
    _
  $region17: #{ner_forward.1} parent=0 // pred_fallthru
    _
  // Predicated region
  $region18: #{ner_forward.1} parent=0 // pred_check
    _
  $region19: #{ner_forward.1} parent=0 // pred_check_branch
    %33 = sbr.rel (0) target = $region21
  $region20: #{ner_forward.1} parent=0 // pred_region
    _
  $region21: #{ner_forward.1} parent=0 // pred_fallthru
    _
  // Predicated region
  $region22: #{ner_forward.1} parent=0 // pred_check
    _
  $region23: #{ner_forward.1} parent=0 // pred_check_branch
    %35 = sbr.rel (0) target = $region25
  $region24: #{ner_forward.1} parent=0 // pred_region
    _
  $region25: #{ner_forward.1} parent=0 // pred_fallthru
    _
  // Predicated region
  $region26: #{ner_forward.1} parent=0 // pred_check
    _
  $region27: #{ner_forward.1} parent=0 // pred_check_branch
    %37 = sbr.rel (0) target = $region29
  $region28: #{ner_forward.1} parent=0 // pred_region
    _
  $region29: #{ner_forward.1} parent=0 // pred_fallthru
    _
  // Predicated region
  $region30: #{ner_forward.1} parent=0 // pred_check
    _
  $region31: #{ner_forward.1} parent=0 // pred_check_branch
    %39 = sbr.rel (0) target = $region33
  $region32: #{ner_forward.1} parent=0 // pred_region
    _
  $region33: #{ner_forward.1} parent=0 // pred_fallthru
    _
  // Predicated region
  $region34: #{ner_forward.1} parent=0 // pred_check
    _
  $region35: #{ner_forward.1} parent=0 // pred_check_branch
    %41 = sbr.rel (0) target = $region37
  $region36: #{ner_forward.1} parent=0 // pred_region
    _
  $region37: #{ner_forward.1} parent=0 // pred_fallthru
    _
  // Predicated region
  $region38: #{ner_forward.1} parent=0 // pred_check
    _
  $region39: #{ner_forward.1} parent=0 // pred_check_branch
    %43 = sbr.rel (0) target = $region41
  $region40: #{ner_forward.1} parent=0 // pred_region
    _
  $region41: #{ner_forward.1} parent=0 // pred_fallthru
    _
  // Predicated region
  $region42: #{ner_forward.1} parent=0 // pred_check
    _
  $region43: #{ner_forward.1} parent=0 // pred_check_branch
    %45 = sbr.rel (0) target = $region45
  $region44: #{ner_forward.1} parent=0 // pred_region
    _
  $region45: #{ner_forward.1} parent=0 // pred_fallthru
    _
  // Predicated region
  $region46: #{ner_forward.1} parent=0 // pred_check
    _
  $region47: #{ner_forward.1} parent=0 // pred_check_branch
    %47 = sbr.rel (0) target = $region49
  $region48: #{ner_forward.1} parent=0 // pred_region
    _
  $region49: #{ner_forward.1} parent=0 // pred_fallthru
    _
  // Predicated region
  $region50: #{ner_forward.1} parent=0 // pred_check
    _
  $region51: #{ner_forward.1} parent=0 // pred_check_branch
    %49 = sbr.rel (0) target = $region53
  $region52: #{ner_forward.1} parent=0 // pred_region
    _
  $region53: #{ner_forward.1} parent=0 // pred_fallthru
    _
  // Predicated region
  $region54: #{ner_forward.1} parent=0 // pred_check
    _
  $region55: #{ner_forward.1} parent=0 // pred_check_branch
    %51 = sbr.rel (0) target = $region57
  $region56: #{ner_forward.1} parent=0 // pred_region
    _
  $region57: #{ner_forward.1} parent=0 // pred_fallthru
    _
  // Predicated region
  $region58: #{ner_forward.1} parent=0 // pred_check
    _
  $region59: #{ner_forward.1} parent=0 // pred_check_branch
    %53 = sbr.rel (0) target = $region61
  $region60: #{ner_forward.1} parent=0 // pred_region
    _
  $region61: #{ner_forward.1} parent=0 // pred_fallthru
    _
  // Predicated region
  $region62: #{ner_forward.1} parent=0 // pred_check
    _
  $region63: #{ner_forward.1} parent=0 // pred_check_branch
    %55 = sbr.rel (0) target = $region65
  $region64: #{ner_forward.1} parent=0 // pred_region
    _
  $region65: #{ner_forward.1} parent=0 // pred_fallthru
    _
  // Predicated region
  $region66: #{ner_forward.1} parent=0 // pred_check
    _
  $region67: #{ner_forward.1} parent=0 // pred_check_branch
    %57 = sbr.rel (0) target = $region69
  $region68: #{ner_forward.1} parent=0 // pred_region
    _
  $region69: #{ner_forward.1} parent=0 // pred_fallthru
    _
  // Predicated region
  $region70: #{ner_forward.1} parent=0 // pred_check
    _
  $region71: #{ner_forward.1} parent=0 // pred_check_branch
    %59 = sbr.rel (0) target = $region73
  $region72: #{ner_forward.1} parent=0 // pred_region
    _
  $region73: #{ner_forward.1} parent=0 // pred_fallthru
    _
  // Predicated region
  $region74: #{ner_forward.1} parent=0 // pred_check
    _
  $region75: #{ner_forward.1} parent=0 // pred_check_branch
    %61 = sbr.rel (0) target = $region77
  $region76: #{ner_forward.1} parent=0 // pred_region
    _
  $region77: #{ner_forward.1} parent=0 // pred_fallthru
    _
  %v63 = vld [vmem:[%s0] sm:$0xf]
  %v64 = vld [vmem:[%s0 + $0x4] sm:$0xf]
  %v65 = vld [vmem:[%s0 + $0x8] sm:$0xf]
  %v66 = vld [vmem:[%s0 + $0xc] sm:$0xf]
  %v67 = vld [vmem:[%s0 + $0x10] sm:$0xf]
  %v68 = vld [vmem:[%s0 + $0x14] sm:$0xf]
  %v69 = vld [vmem:[%s0 + $0x18] sm:$0xf]
  %v70 = vld [vmem:[%s0 + $0x1c] sm:$0xf]
  %v71 = vld [vmem:[%s0 + $0x20] sm:$0xf]
  %v72 = vld [vmem:[%s0 + $0x24] sm:$0xf]
  %v73 = vld [vmem:[%s0 + $0x28] sm:$0xf]
  %v74 = vld [vmem:[%s0 + $0x2c] sm:$0xf]
  %v75 = vld [vmem:[%s0 + $0x30] sm:$0xf]
  %v76 = vld [vmem:[%s0 + $0x34] sm:$0xf]
  %v77 = vld [vmem:[%s0 + $0x38] sm:$0xf]
  %v78 = vld [vmem:[%s0 + $0x3c] sm:$0xf]
  %v79 = vld [vmem:[%s0 + $0x40] sm:$0xf]
  %v80 = vld [vmem:[%s0 + $0x44] sm:$0xf]
  %v81 = vld [vmem:[%s0 + $0x48] sm:$0xf]
  %v82 = vld [vmem:[%s0 + $0x4c] sm:$0xf]
  %v83 = vld [vmem:[%s0 + $0x50] sm:$0xf]
  %v84 = vld [vmem:[%s0 + $0x54] sm:$0xf]
  %v85 = vld [vmem:[%s0 + $0x58] sm:$0xf]
  %v86 = vld [vmem:[%s0 + $0x5c] sm:$0xf]
  %v87 = vld [vmem:[%s0 + $0x60] sm:$0xf]
  %v88 = vld [vmem:[%s0 + $0x64] sm:$0xf]
  %v89 = vld [vmem:[%s0 + $0x68] sm:$0xf]
  %v90 = vld [vmem:[%s0 + $0x6c] sm:$0xf]
  %v91 = vld [vmem:[%s0 + $0x70] sm:$0xf]
  %v92 = vld [vmem:[%s0 + $0x74] sm:$0xf]
  %v93 = vld [vmem:[%s0 + $0x78] sm:$0xf]
  %v94 = vld [vmem:[%s0 + $0x7c] sm:$0xf]
  %v95 = vld [vmem:[%s0 + $0x80] sm:$0xf]
  %v96 = vld [vmem:[%s0 + $0x84] sm:$0xf]
  %v97 = vld [vmem:[%s0 + $0x88] sm:$0xf]
  %v98 = vld [vmem:[%s0 + $0x8c] sm:$0xf]
  %v99 = vld [vmem:[%s0 + $0x90] sm:$0xf]
  %v100 = vld [vmem:[%s0 + $0x94] sm:$0xf]
  %v101 = vld [vmem:[%s0 + $0x98] sm:$0xf]
  %v102 = vld [vmem:[%s0 + $0x9c] sm:$0xf]
  %v103 = vld [vmem:[%s0 + $0xa0] sm:$0xf]
  %v104 = vld [vmem:[%s0 + $0xa4] sm:$0xf]
  %v105 = vld [vmem:[%s0 + $0xa8] sm:$0xf]
  %v106 = vld [vmem:[%s0 + $0xac] sm:$0xf]
  %v107 = vld [vmem:[%s0 + $0xb0] sm:$0xf]
  %v108 = vld [vmem:[%s0 + $0xb4] sm:$0xf]
  %v109 = vld [vmem:[%s0 + $0xb8] sm:$0xf]
  %v110 = vld [vmem:[%s0 + $0xbc] sm:$0xf]
  %v111 = vld [vmem:[%s0 + $0xc0] sm:$0xf]
  %v112 = vld [vmem:[%s0 + $0xc4] sm:$0xf]
  %v113 = vld [vmem:[%s0 + $0xc8] sm:$0xf]
  %v114 = vld [vmem:[%s0 + $0xcc] sm:$0xf]
  %v115 = vld [vmem:[%s0 + $0xd0] sm:$0xf]
  %v116 = vld [vmem:[%s0 + $0xd4] sm:$0xf]
  %v117 = vld [vmem:[%s0 + $0xd8] sm:$0xf]
  %v118 = vld [vmem:[%s0 + $0xdc] sm:$0xf]
  %v119 = vld [vmem:[%s0 + $0xe0] sm:$0xf]
  %v120 = vld [vmem:[%s0 + $0xe4] sm:$0xf]
  %v121 = vld [vmem:[%s0 + $0xe8] sm:$0xf]
  %v122 = vld [vmem:[%s0 + $0xec] sm:$0xf]
  %v123 = vld [vmem:[%s0 + $0xf0] sm:$0xf]
  %v124 = vld [vmem:[%s0 + $0xf4] sm:$0xf]
  %v125 = vld [vmem:[%s0 + $0xf8] sm:$0xf]
  %v126 = vld [vmem:[%s0 + $0xfc] sm:$0xf]
  %v127 = vld [vmem:[%s0 + $0x100] sm:$0xf]
  %v128 = vld [vmem:[%s0 + $0x104] sm:$0xf]
  %v129 = vld [vmem:[%s0 + $0x108] sm:$0xf]
  %v130 = vld [vmem:[%s0 + $0x10c] sm:$0xf]
  %v131 = vld [vmem:[%s0 + $0x110] sm:$0xf]
  %v132 = vld [vmem:[%s0 + $0x114] sm:$0xf]
  %v133 = vld [vmem:[%s0 + $0x118] sm:$0xf]
  %v134 = vld [vmem:[%s0 + $0x11c] sm:$0xf]
  %v135 = vld [vmem:[%s0 + $0x120] sm:$0xf]
  %v136 = vld [vmem:[%s0 + $0x124] sm:$0xf]
  %v137 = vld [vmem:[%s0 + $0x128] sm:$0xf]
  %v138 = vld [vmem:[%s0 + $0x12c] sm:$0xf]
  %v139 = vld [vmem:[%s0 + $0x130] sm:$0xf]
  %v140 = vld [vmem:[%s0 + $0x134] sm:$0xf]
  %v141 = vld [vmem:[%s0 + $0x138] sm:$0xf]
  %v142 = vld [vmem:[%s0 + $0x13c] sm:$0xf]
  %v143 = vld [vmem:[%s0 + $0x140] sm:$0xf]
  %v144 = vld [vmem:[%s0 + $0x144] sm:$0xf]
  %v145 = vld [vmem:[%s0 + $0x148] sm:$0xf]
  %v146 = vld [vmem:[%s0 + $0x14c] sm:$0xf]
  %v147 = vld [vmem:[%s0 + $0x150] sm:$0xf]
  %v148 = vld [vmem:[%s0 + $0x154] sm:$0xf]
  %v149 = vld [vmem:[%s0 + $0x158] sm:$0xf]
  %v150 = vld [vmem:[%s0 + $0x15c] sm:$0xf]
  %v151 = vld [vmem:[%s0 + $0x160] sm:$0xf]
  %v152 = vld [vmem:[%s0 + $0x164] sm:$0xf]
  %v153 = vld [vmem:[%s0 + $0x168] sm:$0xf]
  %v154 = vld [vmem:[%s0 + $0x16c] sm:$0xf]
  %v155 = vld [vmem:[%s0 + $0x170] sm:$0xf]
  %v156 = vld [vmem:[%s0 + $0x174] sm:$0xf]
  %v157 = vld [vmem:[%s0 + $0x178] sm:$0xf]
  %v158 = vld [vmem:[%s0 + $0x17c] sm:$0xf]
  %v159 = vld [vmem:[%s0 + $0x180] sm:$0xf]
  %v160 = vld [vmem:[%s0 + $0x184] sm:$0xf]
  %v161 = vld [vmem:[%s0 + $0x188] sm:$0xf]
  %v162 = vld [vmem:[%s0 + $0x18c] sm:$0xf]
  %v163 = vld [vmem:[%s0 + $0x190] sm:$0xf]
  %v164 = vld [vmem:[%s0 + $0x194] sm:$0xf]
  %v165 = vld [vmem:[%s0 + $0x198] sm:$0xf]
  %v166 = vld [vmem:[%s0 + $0x19c] sm:$0xf]
  %v167 = vld [vmem:[%s0 + $0x1a0] sm:$0xf]
  %v168 = vld [vmem:[%s0 + $0x1a4] sm:$0xf]
  %v169 = vld [vmem:[%s0 + $0x1a8] sm:$0xf]
  %v170 = vld [vmem:[%s0 + $0x1ac] sm:$0xf]
  %v171 = vld [vmem:[%s0 + $0x1b0] sm:$0xf]
  %v172 = vld [vmem:[%s0 + $0x1b4] sm:$0xf]
  %v173 = vld [vmem:[%s0 + $0x1b8] sm:$0xf]
  %v174 = vld [vmem:[%s0 + $0x1bc] sm:$0xf]
  %v175 = vld [vmem:[%s1] sm:$0xf]
  %v176 = vld [vmem:[%s1 + $0x4] sm:$0xf]
  %v177 = vld [vmem:[%s1 + $0x8] sm:$0xf]
  %v178 = vld [vmem:[%s1 + $0xc] sm:$0xf]
  %v179 = vld [vmem:[%s1 + $0x10] sm:$0xf]
  %v180 = vld [vmem:[%s1 + $0x14] sm:$0xf]
  %v181 = vld [vmem:[%s2] sm:$0x1]
  %v183 = vperm.slane %v181, 0
  %v297 = vunpack.c.l.b16 %v63
  %v298 = vunpack.c.l.b16 %v64
  %v299 = vunpack.c.l.b16 %v65
  %v300 = vunpack.c.l.b16 %v66
  %v301 = vunpack.c.l.b16 %v67
  %v302 = vunpack.c.l.b16 %v68
  %v303 = vunpack.c.l.b16 %v69
  %v304 = vunpack.c.l.b16 %v70
  %v305 = vunpack.c.l.b16 %v71
  %v306 = vunpack.c.l.b16 %v72
  %v307 = vunpack.c.l.b16 %v73
  %v308 = vunpack.c.l.b16 %v74
  %v309 = vunpack.c.l.b16 %v75
  %v310 = vunpack.c.l.b16 %v76
  %v311 = vunpack.c.l.b16 %v77
  %v312 = vunpack.c.l.b16 %v78
  %v313 = vunpack.c.l.b16 %v79
  %v314 = vunpack.c.l.b16 %v80
  %v315 = vunpack.c.l.b16 %v81
  %v316 = vunpack.c.l.b16 %v82
  %v317 = vunpack.c.l.b16 %v83
  %v318 = vunpack.c.l.b16 %v84
  %v319 = vunpack.c.l.b16 %v85
  %v320 = vunpack.c.l.b16 %v86
  %v321 = vunpack.c.l.b16 %v87
  %v322 = vunpack.c.l.b16 %v88
  %v323 = vunpack.c.l.b16 %v89
  %v324 = vunpack.c.l.b16 %v90
  %v325 = vunpack.c.l.b16 %v91
  %v326 = vunpack.c.l.b16 %v92
  %v327 = vunpack.c.l.b16 %v93
  %v328 = vunpack.c.l.b16 %v94
  %v329 = vunpack.c.l.b16 %v95
  %v330 = vunpack.c.l.b16 %v96
  %v331 = vunpack.c.l.b16 %v97
  %v332 = vunpack.c.l.b16 %v98
  %v333 = vunpack.c.l.b16 %v99
  %v334 = vunpack.c.l.b16 %v100
  %v335 = vunpack.c.l.b16 %v101
  %v336 = vunpack.c.l.b16 %v102
  %v337 = vunpack.c.l.b16 %v103
  %v338 = vunpack.c.l.b16 %v104
  %v339 = vunpack.c.l.b16 %v105
  %v340 = vunpack.c.l.b16 %v106
  %v341 = vunpack.c.l.b16 %v107
  %v342 = vunpack.c.l.b16 %v108
  %v343 = vunpack.c.l.b16 %v109
  %v344 = vunpack.c.l.b16 %v110
  %v345 = vunpack.c.l.b16 %v111
  %v346 = vunpack.c.l.b16 %v112
  %v347 = vunpack.c.l.b16 %v113
  %v348 = vunpack.c.l.b16 %v114
  %v349 = vunpack.c.l.b16 %v115
  %v350 = vunpack.c.l.b16 %v116
  %v351 = vunpack.c.l.b16 %v117
  %v352 = vunpack.c.l.b16 %v118
  %v353 = vunpack.c.l.b16 %v119
  %v354 = vunpack.c.l.b16 %v120
  %v355 = vunpack.c.l.b16 %v121
  %v356 = vunpack.c.l.b16 %v122
  %v357 = vunpack.c.l.b16 %v123
  %v358 = vunpack.c.l.b16 %v124
  %v359 = vunpack.c.l.b16 %v125
  %v360 = vunpack.c.l.b16 %v126
  %v361 = vunpack.c.l.b16 %v127
  %v362 = vunpack.c.l.b16 %v128
  %v363 = vunpack.c.l.b16 %v129
  %v364 = vunpack.c.l.b16 %v130
  %v365 = vunpack.c.l.b16 %v131
  %v366 = vunpack.c.l.b16 %v132
  %v367 = vunpack.c.l.b16 %v133
  %v368 = vunpack.c.l.b16 %v134
  %v369 = vunpack.c.l.b16 %v135
  %v370 = vunpack.c.l.b16 %v136
  %v371 = vunpack.c.l.b16 %v137
  %v372 = vunpack.c.l.b16 %v138
  %v373 = vunpack.c.l.b16 %v139
  %v374 = vunpack.c.l.b16 %v140
  %v375 = vunpack.c.l.b16 %v141
  %v376 = vunpack.c.l.b16 %v142
  %v377 = vunpack.c.l.b16 %v143
  %v378 = vunpack.c.l.b16 %v144
  %v379 = vunpack.c.l.b16 %v145
  %v380 = vunpack.c.l.b16 %v146
  %v381 = vunpack.c.l.b16 %v147
  %v382 = vunpack.c.l.b16 %v148
  %v383 = vunpack.c.l.b16 %v149
  %v384 = vunpack.c.l.b16 %v150
  %v385 = vunpack.c.l.b16 %v151
  %v386 = vunpack.c.l.b16 %v152
  %v387 = vunpack.c.l.b16 %v153
  %v388 = vunpack.c.l.b16 %v154
  %v389 = vunpack.c.l.b16 %v155
  %v390 = vunpack.c.l.b16 %v156
  %v391 = vunpack.c.l.b16 %v157
  %v392 = vunpack.c.l.b16 %v158
  %v393 = vunpack.c.l.b16 %v159
  %v394 = vunpack.c.l.b16 %v160
  %v395 = vunpack.c.l.b16 %v161
  %v396 = vunpack.c.l.b16 %v162
  %v397 = vunpack.c.l.b16 %v163
  %v398 = vunpack.c.l.b16 %v164
  %v399 = vunpack.c.l.b16 %v165
  %v400 = vunpack.c.l.b16 %v166
  %v401 = vunpack.c.l.b16 %v167
  %v402 = vunpack.c.l.b16 %v168
  %v403 = vunpack.c.l.b16 %v169
  %v404 = vunpack.c.l.b16 %v170
  %v405 = vunpack.c.l.b16 %v171
  %v406 = vunpack.c.l.b16 %v172
  %v407 = vunpack.c.l.b16 %v173
  %v408 = vunpack.c.l.b16 %v174
  %v409 = vpack.c.b16 %v298, %v297
  %v410 = vpack.c.b16 %v300, %v299
  %v411 = vpack.c.b16 %v302, %v301
  %v412 = vpack.c.b16 %v304, %v303
  %v413 = vpack.c.b16 %v306, %v305
  %v414 = vpack.c.b16 %v308, %v307
  %v415 = vpack.c.b16 %v310, %v309
  %v416 = vpack.c.b16 %v312, %v311
  %v417 = vpack.c.b16 %v314, %v313
  %v418 = vpack.c.b16 %v316, %v315
  %v419 = vpack.c.b16 %v318, %v317
  %v420 = vpack.c.b16 %v320, %v319
  %v421 = vpack.c.b16 %v322, %v321
  %v422 = vpack.c.b16 %v324, %v323
  %v423 = vpack.c.b16 %v326, %v325
  %v424 = vpack.c.b16 %v328, %v327
  %v425 = vpack.c.b16 %v330, %v329
  %v426 = vpack.c.b16 %v332, %v331
  %v427 = vpack.c.b16 %v334, %v333
  %v428 = vpack.c.b16 %v336, %v335
  %v429 = vpack.c.b16 %v338, %v337
  %v430 = vpack.c.b16 %v340, %v339
  %v431 = vpack.c.b16 %v342, %v341
  %v432 = vpack.c.b16 %v344, %v343
  %v433 = vpack.c.b16 %v346, %v345
  %v434 = vpack.c.b16 %v348, %v347
  %v435 = vpack.c.b16 %v350, %v349
  %v436 = vpack.c.b16 %v352, %v351
  %v437 = vpack.c.b16 %v354, %v353
  %v438 = vpack.c.b16 %v356, %v355
  %v439 = vpack.c.b16 %v358, %v357
  %v440 = vpack.c.b16 %v360, %v359
  %v441 = vpack.c.b16 %v362, %v361
  %v442 = vpack.c.b16 %v364, %v363
  %v443 = vpack.c.b16 %v366, %v365
  %v444 = vpack.c.b16 %v368, %v367
  %v445 = vpack.c.b16 %v370, %v369
  %v446 = vpack.c.b16 %v372, %v371
  %v447 = vpack.c.b16 %v374, %v373
  %v448 = vpack.c.b16 %v376, %v375
  %v449 = vpack.c.b16 %v378, %v377
  %v450 = vpack.c.b16 %v380, %v379
  %v451 = vpack.c.b16 %v382, %v381
  %v452 = vpack.c.b16 %v384, %v383
  %v453 = vpack.c.b16 %v386, %v385
  %v454 = vpack.c.b16 %v388, %v387
  %v455 = vpack.c.b16 %v390, %v389
  %v456 = vpack.c.b16 %v392, %v391
  %v457 = vpack.c.b16 %v394, %v393
  %v458 = vpack.c.b16 %v396, %v395
  %v459 = vpack.c.b16 %v398, %v397
  %v460 = vpack.c.b16 %v400, %v399
  %v461 = vpack.c.b16 %v402, %v401
  %v462 = vpack.c.b16 %v404, %v403
  %v463 = vpack.c.b16 %v406, %v405
  %v464 = vpack.c.b16 %v408, %v407
  %v471 = vunpack.c.l.b16 %v175
  %v472 = vunpack.c.l.b16 %v176
  %v473 = vunpack.c.l.b16 %v177
  %v474 = vunpack.c.l.b16 %v178
  %v475 = vunpack.c.l.b16 %v179
  %v476 = vunpack.c.l.b16 %v180
  %v477 = vpack.c.b16 %v472, %v471
  %v478 = vpack.c.b16 %v474, %v473
  %v479 = vpack.c.b16 %v476, %v475
  %vm483 = vcmask 392192
  %v485 = vsel %vm483, %v409, 0
  %v488 = vsel %vm483, %v410, 0
  %v491 = vsel %vm483, %v411, 0
  %v494 = vsel %vm483, %v412, 0
  %v497 = vsel %vm483, %v413, 0
  %v500 = vsel %vm483, %v414, 0
  %v503 = vsel %vm483, %v415, 0
  %v506 = vsel %vm483, %v416, 0
  %v509 = vsel %vm483, %v417, 0
  %v512 = vsel %vm483, %v418, 0
  %v515 = vsel %vm483, %v419, 0
  %v518 = vsel %vm483, %v420, 0
  %v521 = vsel %vm483, %v421, 0
  %v524 = vsel %vm483, %v422, 0
  %v527 = vsel %vm483, %v423, 0
  %v530 = vsel %vm483, %v424, 0
  %v533 = vsel %vm483, %v425, 0
  %v536 = vsel %vm483, %v426, 0
  %v539 = vsel %vm483, %v427, 0
  %v542 = vsel %vm483, %v428, 0
  %v545 = vsel %vm483, %v429, 0
  %v548 = vsel %vm483, %v430, 0
  %v551 = vsel %vm483, %v431, 0
  %v554 = vsel %vm483, %v432, 0
  %v557 = vsel %vm483, %v433, 0
  %v560 = vsel %vm483, %v434, 0
  %v563 = vsel %vm483, %v435, 0
  %v566 = vsel %vm483, %v436, 0
  %v569 = vsel %vm483, %v437, 0
  %v572 = vsel %vm483, %v438, 0
  %v575 = vsel %vm483, %v439, 0
  %v578 = vsel %vm483, %v440, 0
  %v581 = vsel %vm483, %v441, 0
  %v584 = vsel %vm483, %v442, 0
  %v587 = vsel %vm483, %v443, 0
  %v590 = vsel %vm483, %v444, 0
  %v593 = vsel %vm483, %v445, 0
  %v596 = vsel %vm483, %v446, 0
  %v599 = vsel %vm483, %v447, 0
  %v602 = vsel %vm483, %v448, 0
  %v605 = vsel %vm483, %v449, 0
  %v608 = vsel %vm483, %v450, 0
  %v611 = vsel %vm483, %v451, 0
  %v614 = vsel %vm483, %v452, 0
  %v617 = vsel %vm483, %v453, 0
  %v620 = vsel %vm483, %v454, 0
  %v623 = vsel %vm483, %v455, 0
  %v626 = vsel %vm483, %v456, 0
  %v629 = vsel %vm483, %v457, 0
  %v632 = vsel %vm483, %v458, 0
  %v635 = vsel %vm483, %v459, 0
  %v638 = vsel %vm483, %v460, 0
  %v641 = vsel %vm483, %v461, 0
  %v644 = vsel %vm483, %v462, 0
  %v647 = vsel %vm483, %v463, 0
  %v650 = vsel %vm483, %v464, 0
  %652 = vmatpush.bf16.msra.mxu0 0
  %653 = vmatpush.bf16.msra.mxu0 0
  %654 = vmatpush.bf16.msra.mxu0 0
  %655 = vmatpush.bf16.msra.mxu0 0
  %656 = vmatpush.bf16.msra.mxu0 0
  %657 = vmatpush.bf16.msra.mxu0 %v479
  %658 = vmatpush.bf16.msra.mxu0 %v478
  %659 = vmatpush.bf16.msra.mxu0 %v477
  %660 = vmatmul.bf16.gmra.mxu0 %v485
  %v661 = vpop.f32.mrf.mxu0
  %v662 = vadd.f32 %v183, %v661
  %v663 = vpop.f32.mrf.mxu0
  %v664 = vadd.f32 %v183, %v663
  %665 = vmatmul.bf16.gmra.mxu0 %v488
  %v666 = vpop.f32.mrf.mxu0
  %v667 = vadd.f32 %v183, %v666
  %v668 = vpop.f32.mrf.mxu0
  %v669 = vadd.f32 %v183, %v668
  %670 = vmatmul.bf16.gmra.mxu0 %v491
  %v671 = vpop.f32.mrf.mxu0
  %v672 = vadd.f32 %v183, %v671
  %v673 = vpop.f32.mrf.mxu0
  %v674 = vadd.f32 %v183, %v673
  %675 = vmatmul.bf16.gmra.mxu0 %v494
  %v676 = vpop.f32.mrf.mxu0
  %v677 = vadd.f32 %v183, %v676
  %v678 = vpop.f32.mrf.mxu0
  %v679 = vadd.f32 %v183, %v678
  %680 = vmatmul.bf16.gmra.mxu0 %v497
  %v681 = vpop.f32.mrf.mxu0
  %v682 = vadd.f32 %v183, %v681
  %v683 = vpop.f32.mrf.mxu0
  %v684 = vadd.f32 %v183, %v683
  %685 = vmatmul.bf16.gmra.mxu0 %v500
  %v686 = vpop.f32.mrf.mxu0
  %v687 = vadd.f32 %v183, %v686
  %v688 = vpop.f32.mrf.mxu0
  %v689 = vadd.f32 %v183, %v688
  %690 = vmatmul.bf16.gmra.mxu0 %v503
  %v691 = vpop.f32.mrf.mxu0
  %v692 = vadd.f32 %v183, %v691
  %v693 = vpop.f32.mrf.mxu0
  %v694 = vadd.f32 %v183, %v693
  %695 = vmatmul.bf16.gmra.mxu0 %v506
  %v696 = vpop.f32.mrf.mxu0
  %v697 = vadd.f32 %v183, %v696
  %v698 = vpop.f32.mrf.mxu0
  %v699 = vadd.f32 %v183, %v698
  %700 = vmatmul.bf16.gmra.mxu0 %v509
  %v701 = vpop.f32.mrf.mxu0
  %v702 = vadd.f32 %v183, %v701
  %v703 = vpop.f32.mrf.mxu0
  %v704 = vadd.f32 %v183, %v703
  %705 = vmatmul.bf16.gmra.mxu0 %v512
  %v706 = vpop.f32.mrf.mxu0
  %v707 = vadd.f32 %v183, %v706
  %v708 = vpop.f32.mrf.mxu0
  %v709 = vadd.f32 %v183, %v708
  %710 = vmatmul.bf16.gmra.mxu0 %v515
  %v711 = vpop.f32.mrf.mxu0
  %v712 = vadd.f32 %v183, %v711
  %v713 = vpop.f32.mrf.mxu0
  %v714 = vadd.f32 %v183, %v713
  %715 = vmatmul.bf16.gmra.mxu0 %v518
  %v716 = vpop.f32.mrf.mxu0
  %v717 = vadd.f32 %v183, %v716
  %v718 = vpop.f32.mrf.mxu0
  %v719 = vadd.f32 %v183, %v718
  %720 = vmatmul.bf16.gmra.mxu0 %v521
  %v721 = vpop.f32.mrf.mxu0
  %v722 = vadd.f32 %v183, %v721
  %v723 = vpop.f32.mrf.mxu0
  %v724 = vadd.f32 %v183, %v723
  %725 = vmatmul.bf16.gmra.mxu0 %v524
  %v726 = vpop.f32.mrf.mxu0
  %v727 = vadd.f32 %v183, %v726
  %v728 = vpop.f32.mrf.mxu0
  %v729 = vadd.f32 %v183, %v728
  %730 = vmatmul.bf16.gmra.mxu0 %v527
  %v731 = vpop.f32.mrf.mxu0
  %v732 = vadd.f32 %v183, %v731
  %v733 = vpop.f32.mrf.mxu0
  %v734 = vadd.f32 %v183, %v733
  %735 = vmatmul.bf16.gmra.mxu0 %v530
  %v736 = vpop.f32.mrf.mxu0
  %v737 = vadd.f32 %v183, %v736
  %v738 = vpop.f32.mrf.mxu0
  %v739 = vadd.f32 %v183, %v738
  %740 = vmatmul.bf16.gmra.mxu0 %v533
  %v741 = vpop.f32.mrf.mxu0
  %v742 = vadd.f32 %v183, %v741
  %v743 = vpop.f32.mrf.mxu0
  %v744 = vadd.f32 %v183, %v743
  %745 = vmatmul.bf16.gmra.mxu0 %v536
  %v746 = vpop.f32.mrf.mxu0
  %v747 = vadd.f32 %v183, %v746
  %v748 = vpop.f32.mrf.mxu0
  %v749 = vadd.f32 %v183, %v748
  %750 = vmatmul.bf16.gmra.mxu0 %v539
  %v751 = vpop.f32.mrf.mxu0
  %v752 = vadd.f32 %v183, %v751
  %v753 = vpop.f32.mrf.mxu0
  %v754 = vadd.f32 %v183, %v753
  %755 = vmatmul.bf16.gmra.mxu0 %v542
  %v756 = vpop.f32.mrf.mxu0
  %v757 = vadd.f32 %v183, %v756
  %v758 = vpop.f32.mrf.mxu0
  %v759 = vadd.f32 %v183, %v758
  %760 = vmatmul.bf16.gmra.mxu0 %v545
  %v761 = vpop.f32.mrf.mxu0
  %v762 = vadd.f32 %v183, %v761
  %v763 = vpop.f32.mrf.mxu0
  %v764 = vadd.f32 %v183, %v763
  %765 = vmatmul.bf16.gmra.mxu0 %v548
  %v766 = vpop.f32.mrf.mxu0
  %v767 = vadd.f32 %v183, %v766
  %v768 = vpop.f32.mrf.mxu0
  %v769 = vadd.f32 %v183, %v768
  %770 = vmatmul.bf16.gmra.mxu0 %v551
  %v771 = vpop.f32.mrf.mxu0
  %v772 = vadd.f32 %v183, %v771
  %v773 = vpop.f32.mrf.mxu0
  %v774 = vadd.f32 %v183, %v773
  %775 = vmatmul.bf16.gmra.mxu0 %v554
  %v776 = vpop.f32.mrf.mxu0
  %v777 = vadd.f32 %v183, %v776
  %v778 = vpop.f32.mrf.mxu0
  %v779 = vadd.f32 %v183, %v778
  %780 = vmatmul.bf16.gmra.mxu0 %v557
  %v781 = vpop.f32.mrf.mxu0
  %v782 = vadd.f32 %v183, %v781
  %v783 = vpop.f32.mrf.mxu0
  %v784 = vadd.f32 %v183, %v783
  %785 = vmatmul.bf16.gmra.mxu0 %v560
  %v786 = vpop.f32.mrf.mxu0
  %v787 = vadd.f32 %v183, %v786
  %v788 = vpop.f32.mrf.mxu0
  %v789 = vadd.f32 %v183, %v788
  %790 = vmatmul.bf16.gmra.mxu0 %v563
  %v791 = vpop.f32.mrf.mxu0
  %v792 = vadd.f32 %v183, %v791
  %v793 = vpop.f32.mrf.mxu0
  %v794 = vadd.f32 %v183, %v793
  %795 = vmatmul.bf16.gmra.mxu0 %v566
  %v796 = vpop.f32.mrf.mxu0
  %v797 = vadd.f32 %v183, %v796
  %v798 = vpop.f32.mrf.mxu0
  %v799 = vadd.f32 %v183, %v798
  %800 = vmatmul.bf16.gmra.mxu0 %v569
  %v801 = vpop.f32.mrf.mxu0
  %v802 = vadd.f32 %v183, %v801
  %v803 = vpop.f32.mrf.mxu0
  %v804 = vadd.f32 %v183, %v803
  %805 = vmatmul.bf16.gmra.mxu0 %v572
  %v806 = vpop.f32.mrf.mxu0
  %v807 = vadd.f32 %v183, %v806
  %v808 = vpop.f32.mrf.mxu0
  %v809 = vadd.f32 %v183, %v808
  %810 = vmatmul.bf16.gmra.mxu0 %v575
  %v811 = vpop.f32.mrf.mxu0
  %v812 = vadd.f32 %v183, %v811
  %v813 = vpop.f32.mrf.mxu0
  %v814 = vadd.f32 %v183, %v813
  %815 = vmatmul.bf16.gmra.mxu0 %v578
  %v816 = vpop.f32.mrf.mxu0
  %v817 = vadd.f32 %v183, %v816
  %v818 = vpop.f32.mrf.mxu0
  %v819 = vadd.f32 %v183, %v818
  %820 = vmatmul.bf16.gmra.mxu0 %v581
  %v821 = vpop.f32.mrf.mxu0
  %v822 = vadd.f32 %v183, %v821
  %v823 = vpop.f32.mrf.mxu0
  %v824 = vadd.f32 %v183, %v823
  %825 = vmatmul.bf16.gmra.mxu0 %v584
  %v826 = vpop.f32.mrf.mxu0
  %v827 = vadd.f32 %v183, %v826
  %v828 = vpop.f32.mrf.mxu0
  %v829 = vadd.f32 %v183, %v828
  %830 = vmatmul.bf16.gmra.mxu0 %v587
  %v831 = vpop.f32.mrf.mxu0
  %v832 = vadd.f32 %v183, %v831
  %v833 = vpop.f32.mrf.mxu0
  %v834 = vadd.f32 %v183, %v833
  %835 = vmatmul.bf16.gmra.mxu0 %v590
  %v836 = vpop.f32.mrf.mxu0
  %v837 = vadd.f32 %v183, %v836
  %v838 = vpop.f32.mrf.mxu0
  %v839 = vadd.f32 %v183, %v838
  %840 = vmatmul.bf16.gmra.mxu0 %v593
  %v841 = vpop.f32.mrf.mxu0
  %v842 = vadd.f32 %v183, %v841
  %v843 = vpop.f32.mrf.mxu0
  %v844 = vadd.f32 %v183, %v843
  %845 = vmatmul.bf16.gmra.mxu0 %v596
  %v846 = vpop.f32.mrf.mxu0
  %v847 = vadd.f32 %v183, %v846
  %v848 = vpop.f32.mrf.mxu0
  %v849 = vadd.f32 %v183, %v848
  %850 = vmatmul.bf16.gmra.mxu0 %v599
  %v851 = vpop.f32.mrf.mxu0
  %v852 = vadd.f32 %v183, %v851
  %v853 = vpop.f32.mrf.mxu0
  %v854 = vadd.f32 %v183, %v853
  %855 = vmatmul.bf16.gmra.mxu0 %v602
  %v856 = vpop.f32.mrf.mxu0
  %v857 = vadd.f32 %v183, %v856
  %v858 = vpop.f32.mrf.mxu0
  %v859 = vadd.f32 %v183, %v858
  %860 = vmatmul.bf16.gmra.mxu0 %v605
  %v861 = vpop.f32.mrf.mxu0
  %v862 = vadd.f32 %v183, %v861
  %v863 = vpop.f32.mrf.mxu0
  %v864 = vadd.f32 %v183, %v863
  %865 = vmatmul.bf16.gmra.mxu0 %v608
  %v866 = vpop.f32.mrf.mxu0
  %v867 = vadd.f32 %v183, %v866
  %v868 = vpop.f32.mrf.mxu0
  %v869 = vadd.f32 %v183, %v868
  %870 = vmatmul.bf16.gmra.mxu0 %v611
  %v871 = vpop.f32.mrf.mxu0
  %v872 = vadd.f32 %v183, %v871
  %v873 = vpop.f32.mrf.mxu0
  %v874 = vadd.f32 %v183, %v873
  %875 = vmatmul.bf16.gmra.mxu0 %v614
  %v876 = vpop.f32.mrf.mxu0
  %v877 = vadd.f32 %v183, %v876
  %v878 = vpop.f32.mrf.mxu0
  %v879 = vadd.f32 %v183, %v878
  %880 = vmatmul.bf16.gmra.mxu0 %v617
  %v881 = vpop.f32.mrf.mxu0
  %v882 = vadd.f32 %v183, %v881
  %v883 = vpop.f32.mrf.mxu0
  %v884 = vadd.f32 %v183, %v883
  %885 = vmatmul.bf16.gmra.mxu0 %v620
  %v886 = vpop.f32.mrf.mxu0
  %v887 = vadd.f32 %v183, %v886
  %v888 = vpop.f32.mrf.mxu0
  %v889 = vadd.f32 %v183, %v888
  %890 = vmatmul.bf16.gmra.mxu0 %v623
  %v891 = vpop.f32.mrf.mxu0
  %v892 = vadd.f32 %v183, %v891
  %v893 = vpop.f32.mrf.mxu0
  %v894 = vadd.f32 %v183, %v893
  %895 = vmatmul.bf16.gmra.mxu0 %v626
  %v896 = vpop.f32.mrf.mxu0
  %v897 = vadd.f32 %v183, %v896
  %v898 = vpop.f32.mrf.mxu0
  %v899 = vadd.f32 %v183, %v898
  %900 = vmatmul.bf16.gmra.mxu0 %v629
  %v901 = vpop.f32.mrf.mxu0
  %v902 = vadd.f32 %v183, %v901
  %v903 = vpop.f32.mrf.mxu0
  %v904 = vadd.f32 %v183, %v903
  %905 = vmatmul.bf16.gmra.mxu0 %v632
  %v906 = vpop.f32.mrf.mxu0
  %v907 = vadd.f32 %v183, %v906
  %v908 = vpop.f32.mrf.mxu0
  %v909 = vadd.f32 %v183, %v908
  %910 = vmatmul.bf16.gmra.mxu0 %v635
  %v911 = vpop.f32.mrf.mxu0
  %v912 = vadd.f32 %v183, %v911
  %v913 = vpop.f32.mrf.mxu0
  %v914 = vadd.f32 %v183, %v913
  %915 = vmatmul.bf16.gmra.mxu0 %v638
  %v916 = vpop.f32.mrf.mxu0
  %v917 = vadd.f32 %v183, %v916
  %v918 = vpop.f32.mrf.mxu0
  %v919 = vadd.f32 %v183, %v918
  %920 = vmatmul.bf16.gmra.mxu0 %v641
  %v921 = vpop.f32.mrf.mxu0
  %v922 = vadd.f32 %v183, %v921
  %v923 = vpop.f32.mrf.mxu0
  %v924 = vadd.f32 %v183, %v923
  %925 = vmatmul.bf16.gmra.mxu0 %v644
  %v926 = vpop.f32.mrf.mxu0
  %v927 = vadd.f32 %v183, %v926
  %v928 = vpop.f32.mrf.mxu0
  %v929 = vadd.f32 %v183, %v928
  %930 = vmatmul.bf16.gmra.mxu0 %v647
  %v931 = vpop.f32.mrf.mxu0
  %v932 = vadd.f32 %v183, %v931
  %v933 = vpop.f32.mrf.mxu0
  %v934 = vadd.f32 %v183, %v933
  %935 = vmatmul.bf16.gmra.mxu0 %v650
  %v936 = vpop.f32.mrf.mxu0
  %v937 = vadd.f32 %v183, %v936
  %v938 = vpop.f32.mrf.mxu0
  %v939 = vadd.f32 %v183, %v938
  %940 = vdwg.mxu0
  %v941 = vmax.f32 %v662, 0.0
  %v942 = vmax.f32 %v664, 0.0
  %v943 = vmax.f32 %v667, 0.0
  %v944 = vmax.f32 %v669, 0.0
  %v945 = vmax.f32 %v672, 0.0
  %v946 = vmax.f32 %v674, 0.0
  %v947 = vmax.f32 %v677, 0.0
  %v948 = vmax.f32 %v679, 0.0
  %v949 = vmax.f32 %v682, 0.0
  %v950 = vmax.f32 %v684, 0.0
  %v951 = vmax.f32 %v687, 0.0
  %v952 = vmax.f32 %v689, 0.0
  %v953 = vmax.f32 %v692, 0.0
  %v954 = vmax.f32 %v694, 0.0
  %v955 = vmax.f32 %v697, 0.0
  %v956 = vmax.f32 %v699, 0.0
  %v957 = vmax.f32 %v702, 0.0
  %v958 = vmax.f32 %v704, 0.0
  %v959 = vmax.f32 %v707, 0.0
  %v960 = vmax.f32 %v709, 0.0
  %v961 = vmax.f32 %v712, 0.0
  %v962 = vmax.f32 %v714, 0.0
  %v963 = vmax.f32 %v717, 0.0
  %v964 = vmax.f32 %v719, 0.0
  %v965 = vmax.f32 %v722, 0.0
  %v966 = vmax.f32 %v724, 0.0
  %v967 = vmax.f32 %v727, 0.0
  %v968 = vmax.f32 %v729, 0.0
  %v969 = vmax.f32 %v732, 0.0
  %v970 = vmax.f32 %v734, 0.0
  %v971 = vmax.f32 %v737, 0.0
  %v972 = vmax.f32 %v739, 0.0
  %v973 = vmax.f32 %v742, 0.0
  %v974 = vmax.f32 %v744, 0.0
  %v975 = vmax.f32 %v747, 0.0
  %v976 = vmax.f32 %v749, 0.0
  %v977 = vmax.f32 %v752, 0.0
  %v978 = vmax.f32 %v754, 0.0
  %v979 = vmax.f32 %v757, 0.0
  %v980 = vmax.f32 %v759, 0.0
  %v981 = vmax.f32 %v762, 0.0
  %v982 = vmax.f32 %v764, 0.0
  %v983 = vmax.f32 %v767, 0.0
  %v984 = vmax.f32 %v769, 0.0
  %v985 = vmax.f32 %v772, 0.0
  %v986 = vmax.f32 %v774, 0.0
  %v987 = vmax.f32 %v777, 0.0
  %v988 = vmax.f32 %v779, 0.0
  %v989 = vmax.f32 %v782, 0.0
  %v990 = vmax.f32 %v784, 0.0
  %v991 = vmax.f32 %v787, 0.0
  %v992 = vmax.f32 %v789, 0.0
  %v993 = vmax.f32 %v792, 0.0
  %v994 = vmax.f32 %v794, 0.0
  %v995 = vmax.f32 %v797, 0.0
  %v996 = vmax.f32 %v799, 0.0
  %v997 = vmax.f32 %v802, 0.0
  %v998 = vmax.f32 %v804, 0.0
  %v999 = vmax.f32 %v807, 0.0
  %v1000 = vmax.f32 %v809, 0.0
  %v1001 = vmax.f32 %v812, 0.0
  %v1002 = vmax.f32 %v814, 0.0
  %v1003 = vmax.f32 %v817, 0.0
  %v1004 = vmax.f32 %v819, 0.0
  %v1005 = vmax.f32 %v822, 0.0
  %v1006 = vmax.f32 %v824, 0.0
  %v1007 = vmax.f32 %v827, 0.0
  %v1008 = vmax.f32 %v829, 0.0
  %v1009 = vmax.f32 %v832, 0.0
  %v1010 = vmax.f32 %v834, 0.0
  %v1011 = vmax.f32 %v837, 0.0
  %v1012 = vmax.f32 %v839, 0.0
  %v1013 = vmax.f32 %v842, 0.0
  %v1014 = vmax.f32 %v844, 0.0
  %v1015 = vmax.f32 %v847, 0.0
  %v1016 = vmax.f32 %v849, 0.0
  %v1017 = vmax.f32 %v852, 0.0
  %v1018 = vmax.f32 %v854, 0.0
  %v1019 = vmax.f32 %v857, 0.0
  %v1020 = vmax.f32 %v859, 0.0
  %v1021 = vmax.f32 %v862, 0.0
  %v1022 = vmax.f32 %v864, 0.0
  %v1023 = vmax.f32 %v867, 0.0
  %v1024 = vmax.f32 %v869, 0.0
  %v1025 = vmax.f32 %v872, 0.0
  %v1026 = vmax.f32 %v874, 0.0
  %v1027 = vmax.f32 %v877, 0.0
  %v1028 = vmax.f32 %v879, 0.0
  %v1029 = vmax.f32 %v882, 0.0
  %v1030 = vmax.f32 %v884, 0.0
  %v1031 = vmax.f32 %v887, 0.0
  %v1032 = vmax.f32 %v889, 0.0
  %v1033 = vmax.f32 %v892, 0.0
  %v1034 = vmax.f32 %v894, 0.0
  %v1035 = vmax.f32 %v897, 0.0
  %v1036 = vmax.f32 %v899, 0.0
  %v1037 = vmax.f32 %v902, 0.0
  %v1038 = vmax.f32 %v904, 0.0
  %v1039 = vmax.f32 %v907, 0.0
  %v1040 = vmax.f32 %v909, 0.0
  %v1041 = vmax.f32 %v912, 0.0
  %v1042 = vmax.f32 %v914, 0.0
  %v1043 = vmax.f32 %v917, 0.0
  %v1044 = vmax.f32 %v919, 0.0
  %v1045 = vmax.f32 %v922, 0.0
  %v1046 = vmax.f32 %v924, 0.0
  %v1047 = vmax.f32 %v927, 0.0
  %v1048 = vmax.f32 %v929, 0.0
  %v1049 = vmax.f32 %v932, 0.0
  %v1050 = vmax.f32 %v934, 0.0
  %v1051 = vmax.f32 %v937, 0.0
  %v1052 = vmax.f32 %v939, 0.0
  %vm1053 = vcmask 130048
  %v1054 = vsel %vm1053, %v941, -inf
  %v1055 = vsel %vm1053, %v949, -inf
  %v1056 = vmax.f32 %v1054, %v1055
  %v1057 = vsel %vm1053, %v957, -inf
  %v1058 = vmax.f32 %v1056, %v1057
  %v1059 = vsel %vm1053, %v965, -inf
  %v1060 = vmax.f32 %v1058, %v1059
  %v1061 = vsel %vm1053, %v973, -inf
  %v1062 = vmax.f32 %v1060, %v1061
  %v1063 = vsel %vm1053, %v981, -inf
  %v1064 = vmax.f32 %v1062, %v1063
  %v1065 = vsel %vm1053, %v989, -inf
  %v1066 = vmax.f32 %v1064, %v1065
  %v1067 = vsel %vm1053, %v997, -inf
  %v1068 = vmax.f32 %v1066, %v1067
  %v1069 = vsel %vm1053, %v1005, -inf
  %v1070 = vmax.f32 %v1068, %v1069
  %v1071 = vsel %vm1053, %v1013, -inf
  %v1072 = vmax.f32 %v1070, %v1071
  %v1073 = vsel %vm1053, %v1021, -inf
  %v1074 = vmax.f32 %v1072, %v1073
  %v1075 = vsel %vm1053, %v1029, -inf
  %v1076 = vmax.f32 %v1074, %v1075
  %v1077 = vsel %vm1053, %v1037, -inf
  %v1078 = vmax.f32 %v1076, %v1077
  %v1079 = vsel %vm1053, %v1045, -inf
  %v1080 = vmax.f32 %v1078, %v1079
  %v1081 = vsel %vm1053, %v942, -inf
  %v1082 = vsel %vm1053, %v950, -inf
  %v1083 = vmax.f32 %v1081, %v1082
  %v1084 = vsel %vm1053, %v958, -inf
  %v1085 = vmax.f32 %v1083, %v1084
  %v1086 = vsel %vm1053, %v966, -inf
  %v1087 = vmax.f32 %v1085, %v1086
  %v1088 = vsel %vm1053, %v974, -inf
  %v1089 = vmax.f32 %v1087, %v1088
  %v1090 = vsel %vm1053, %v982, -inf
  %v1091 = vmax.f32 %v1089, %v1090
  %v1092 = vsel %vm1053, %v990, -inf
  %v1093 = vmax.f32 %v1091, %v1092
  %v1094 = vsel %vm1053, %v998, -inf
  %v1095 = vmax.f32 %v1093, %v1094
  %v1096 = vsel %vm1053, %v1006, -inf
  %v1097 = vmax.f32 %v1095, %v1096
  %v1098 = vsel %vm1053, %v1014, -inf
  %v1099 = vmax.f32 %v1097, %v1098
  %v1100 = vsel %vm1053, %v1022, -inf
  %v1101 = vmax.f32 %v1099, %v1100
  %v1102 = vsel %vm1053, %v1030, -inf
  %v1103 = vmax.f32 %v1101, %v1102
  %v1104 = vsel %vm1053, %v1038, -inf
  %v1105 = vmax.f32 %v1103, %v1104
  %v1106 = vsel %vm1053, %v1046, -inf
  %v1107 = vmax.f32 %v1105, %v1106
  %v1108 = vsel %vm1053, %v943, -inf
  %v1109 = vsel %vm1053, %v951, -inf
  %v1110 = vmax.f32 %v1108, %v1109
  %v1111 = vsel %vm1053, %v959, -inf
  %v1112 = vmax.f32 %v1110, %v1111
  %v1113 = vsel %vm1053, %v967, -inf
  %v1114 = vmax.f32 %v1112, %v1113
  %v1115 = vsel %vm1053, %v975, -inf
  %v1116 = vmax.f32 %v1114, %v1115
  %v1117 = vsel %vm1053, %v983, -inf
  %v1118 = vmax.f32 %v1116, %v1117
  %v1119 = vsel %vm1053, %v991, -inf
  %v1120 = vmax.f32 %v1118, %v1119
  %v1121 = vsel %vm1053, %v999, -inf
  %v1122 = vmax.f32 %v1120, %v1121
  %v1123 = vsel %vm1053, %v1007, -inf
  %v1124 = vmax.f32 %v1122, %v1123
  %v1125 = vsel %vm1053, %v1015, -inf
  %v1126 = vmax.f32 %v1124, %v1125
  %v1127 = vsel %vm1053, %v1023, -inf
  %v1128 = vmax.f32 %v1126, %v1127
  %v1129 = vsel %vm1053, %v1031, -inf
  %v1130 = vmax.f32 %v1128, %v1129
  %v1131 = vsel %vm1053, %v1039, -inf
  %v1132 = vmax.f32 %v1130, %v1131
  %v1133 = vsel %vm1053, %v1047, -inf
  %v1134 = vmax.f32 %v1132, %v1133
  %v1135 = vsel %vm1053, %v944, -inf
  %v1136 = vsel %vm1053, %v952, -inf
  %v1137 = vmax.f32 %v1135, %v1136
  %v1138 = vsel %vm1053, %v960, -inf
  %v1139 = vmax.f32 %v1137, %v1138
  %v1140 = vsel %vm1053, %v968, -inf
  %v1141 = vmax.f32 %v1139, %v1140
  %v1142 = vsel %vm1053, %v976, -inf
  %v1143 = vmax.f32 %v1141, %v1142
  %v1144 = vsel %vm1053, %v984, -inf
  %v1145 = vmax.f32 %v1143, %v1144
  %v1146 = vsel %vm1053, %v992, -inf
  %v1147 = vmax.f32 %v1145, %v1146
  %v1148 = vsel %vm1053, %v1000, -inf
  %v1149 = vmax.f32 %v1147, %v1148
  %v1150 = vsel %vm1053, %v1008, -inf
  %v1151 = vmax.f32 %v1149, %v1150
  %v1152 = vsel %vm1053, %v1016, -inf
  %v1153 = vmax.f32 %v1151, %v1152
  %v1154 = vsel %vm1053, %v1024, -inf
  %v1155 = vmax.f32 %v1153, %v1154
  %v1156 = vsel %vm1053, %v1032, -inf
  %v1157 = vmax.f32 %v1155, %v1156
  %v1158 = vsel %vm1053, %v1040, -inf
  %v1159 = vmax.f32 %v1157, %v1158
  %v1160 = vsel %vm1053, %v1048, -inf
  %v1161 = vmax.f32 %v1159, %v1160
  %v1162 = vsel %vm1053, %v945, -inf
  %v1163 = vsel %vm1053, %v953, -inf
  %v1164 = vmax.f32 %v1162, %v1163
  %v1165 = vsel %vm1053, %v961, -inf
  %v1166 = vmax.f32 %v1164, %v1165
  %v1167 = vsel %vm1053, %v969, -inf
  %v1168 = vmax.f32 %v1166, %v1167
  %v1169 = vsel %vm1053, %v977, -inf
  %v1170 = vmax.f32 %v1168, %v1169
  %v1171 = vsel %vm1053, %v985, -inf
  %v1172 = vmax.f32 %v1170, %v1171
  %v1173 = vsel %vm1053, %v993, -inf
  %v1174 = vmax.f32 %v1172, %v1173
  %v1175 = vsel %vm1053, %v1001, -inf
  %v1176 = vmax.f32 %v1174, %v1175
  %v1177 = vsel %vm1053, %v1009, -inf
  %v1178 = vmax.f32 %v1176, %v1177
  %v1179 = vsel %vm1053, %v1017, -inf
  %v1180 = vmax.f32 %v1178, %v1179
  %v1181 = vsel %vm1053, %v1025, -inf
  %v1182 = vmax.f32 %v1180, %v1181
  %v1183 = vsel %vm1053, %v1033, -inf
  %v1184 = vmax.f32 %v1182, %v1183
  %v1185 = vsel %vm1053, %v1041, -inf
  %v1186 = vmax.f32 %v1184, %v1185
  %v1187 = vsel %vm1053, %v1049, -inf
  %v1188 = vmax.f32 %v1186, %v1187
  %v1189 = vsel %vm1053, %v946, -inf
  %v1190 = vsel %vm1053, %v954, -inf
  %v1191 = vmax.f32 %v1189, %v1190
  %v1192 = vsel %vm1053, %v962, -inf
  %v1193 = vmax.f32 %v1191, %v1192
  %v1194 = vsel %vm1053, %v970, -inf
  %v1195 = vmax.f32 %v1193, %v1194
  %v1196 = vsel %vm1053, %v978, -inf
  %v1197 = vmax.f32 %v1195, %v1196
  %v1198 = vsel %vm1053, %v986, -inf
  %v1199 = vmax.f32 %v1197, %v1198
  %v1200 = vsel %vm1053, %v994, -inf
  %v1201 = vmax.f32 %v1199, %v1200
  %v1202 = vsel %vm1053, %v1002, -inf
  %v1203 = vmax.f32 %v1201, %v1202
  %v1204 = vsel %vm1053, %v1010, -inf
  %v1205 = vmax.f32 %v1203, %v1204
  %v1206 = vsel %vm1053, %v1018, -inf
  %v1207 = vmax.f32 %v1205, %v1206
  %v1208 = vsel %vm1053, %v1026, -inf
  %v1209 = vmax.f32 %v1207, %v1208
  %v1210 = vsel %vm1053, %v1034, -inf
  %v1211 = vmax.f32 %v1209, %v1210
  %v1212 = vsel %vm1053, %v1042, -inf
  %v1213 = vmax.f32 %v1211, %v1212
  %v1214 = vsel %vm1053, %v1050, -inf
  %v1215 = vmax.f32 %v1213, %v1214
  %v1216 = vsel %vm1053, %v947, -inf
  %v1217 = vsel %vm1053, %v955, -inf
  %v1218 = vmax.f32 %v1216, %v1217
  %v1219 = vsel %vm1053, %v963, -inf
  %v1220 = vmax.f32 %v1218, %v1219
  %v1221 = vsel %vm1053, %v971, -inf
  %v1222 = vmax.f32 %v1220, %v1221
  %v1223 = vsel %vm1053, %v979, -inf
  %v1224 = vmax.f32 %v1222, %v1223
  %v1225 = vsel %vm1053, %v987, -inf
  %v1226 = vmax.f32 %v1224, %v1225
  %v1227 = vsel %vm1053, %v995, -inf
  %v1228 = vmax.f32 %v1226, %v1227
  %v1229 = vsel %vm1053, %v1003, -inf
  %v1230 = vmax.f32 %v1228, %v1229
  %v1231 = vsel %vm1053, %v1011, -inf
  %v1232 = vmax.f32 %v1230, %v1231
  %v1233 = vsel %vm1053, %v1019, -inf
  %v1234 = vmax.f32 %v1232, %v1233
  %v1235 = vsel %vm1053, %v1027, -inf
  %v1236 = vmax.f32 %v1234, %v1235
  %v1237 = vsel %vm1053, %v1035, -inf
  %v1238 = vmax.f32 %v1236, %v1237
  %v1239 = vsel %vm1053, %v1043, -inf
  %v1240 = vmax.f32 %v1238, %v1239
  %v1241 = vsel %vm1053, %v1051, -inf
  %v1242 = vmax.f32 %v1240, %v1241
  %v1243 = vsel %vm1053, %v948, -inf
  %v1244 = vsel %vm1053, %v956, -inf
  %v1245 = vmax.f32 %v1243, %v1244
  %v1246 = vsel %vm1053, %v964, -inf
  %v1247 = vmax.f32 %v1245, %v1246
  %v1248 = vsel %vm1053, %v972, -inf
  %v1249 = vmax.f32 %v1247, %v1248
  %v1250 = vsel %vm1053, %v980, -inf
  %v1251 = vmax.f32 %v1249, %v1250
  %v1252 = vsel %vm1053, %v988, -inf
  %v1253 = vmax.f32 %v1251, %v1252
  %v1254 = vsel %vm1053, %v996, -inf
  %v1255 = vmax.f32 %v1253, %v1254
  %v1256 = vsel %vm1053, %v1004, -inf
  %v1257 = vmax.f32 %v1255, %v1256
  %v1258 = vsel %vm1053, %v1012, -inf
  %v1259 = vmax.f32 %v1257, %v1258
  %v1260 = vsel %vm1053, %v1020, -inf
  %v1261 = vmax.f32 %v1259, %v1260
  %v1262 = vsel %vm1053, %v1028, -inf
  %v1263 = vmax.f32 %v1261, %v1262
  %v1264 = vsel %vm1053, %v1036, -inf
  %v1265 = vmax.f32 %v1263, %v1264
  %v1266 = vsel %vm1053, %v1044, -inf
  %v1267 = vmax.f32 %v1265, %v1266
  %v1268 = vsel %vm1053, %v1052, -inf
  %v1269 = vmax.f32 %v1267, %v1268
  %v1270 = vld [vmem:[%s3] sm:$0xf]
  %v1271 = vld [vmem:[%s3 + $0x4] sm:$0xf]
  %v1272 = vld [vmem:[%s3 + $0x8] sm:$0xf]
  %v1273 = vld [vmem:[%s3 + $0xc] sm:$0xf]
  %v1274 = vld [vmem:[%s3 + $0x10] sm:$0xf]
  %v1275 = vld [vmem:[%s3 + $0x14] sm:$0xf]
  %v1276 = vld [vmem:[%s3 + $0x18] sm:$0xf]
  %v1277 = vld [vmem:[%s3 + $0x1c] sm:$0xf]
  %v1278 = vld [vmem:[%s4] sm:$0xff]
  %v1279 = vld [vmem:[%s4 + $0x8] sm:$0xff]
  %v1280 = vld [vmem:[%s4 + $0x10] sm:$0xff]
  %v1281 = vld [vmem:[%s4 + $0x18] sm:$0xff]
  %v1282 = vpack.c.bf16 %v1107, %v1080
  %v1283 = vpack.c.bf16 %v1161, %v1134
  %v1284 = vpack.c.bf16 %v1215, %v1188
  %v1285 = vpack.c.bf16 %v1269, %v1242
  %v1286 = vld [vmem:[%s5] sm:$0xff]
  %v1287 = vld [vmem:[%s5 + $0x8] sm:$0xff]
  %v1290 = vunpack.c.l.b16 %v1286
  %v1291 = vunpack.c.h.b16 %v1286
  %v1292 = vunpack.c.l.b16 %v1287
  %v1293 = vunpack.c.h.b16 %v1287
  %v1294 = vpack.c.b16 %v1292, %v1290
  %v1295 = vpack.c.b16 %v1293, %v1291
  %v1299 = vsel %vm1053, %v1282, 0
  %v1302 = vsel %vm1053, %v1283, 0
  %v1305 = vsel %vm1053, %v1284, 0
  %v1308 = vsel %vm1053, %v1285, 0
  %1310 = vmatpush.bf16.msra.mxu0 0
  %1311 = vmatpush.bf16.msra.mxu0 0
  %1312 = vmatpush.bf16.msra.mxu0 0
  %1313 = vmatpush.bf16.msra.mxu0 0
  %1314 = vmatpush.bf16.msra.mxu0 0
  %1315 = vmatpush.bf16.msra.mxu0 0
  %1316 = vmatpush.bf16.msra.mxu0 0
  %1317 = vmatpush.bf16.msra.mxu0 %v1294
  %1318 = vmatmul.bf16.gmra.mxu0 %v1299
  %v1319 = vpop.f32.mrf.mxu0
  %v1320 = vadd.f32 0.0, %v1319
  %v1321 = vpop.f32.mrf.mxu0
  %v1322 = vadd.f32 0.0, %v1321
  %1323 = vmatmul.bf16.gmra.mxu0 %v1302
  %v1324 = vpop.f32.mrf.mxu0
  %v1325 = vadd.f32 0.0, %v1324
  %v1326 = vpop.f32.mrf.mxu0
  %v1327 = vadd.f32 0.0, %v1326
  %1328 = vmatmul.bf16.gmra.mxu0 %v1305
  %v1329 = vpop.f32.mrf.mxu0
  %v1330 = vadd.f32 0.0, %v1329
  %v1331 = vpop.f32.mrf.mxu0
  %v1332 = vadd.f32 0.0, %v1331
  %1333 = vmatmul.bf16.gmra.mxu0 %v1308
  %v1334 = vpop.f32.mrf.mxu0
  %v1335 = vadd.f32 0.0, %v1334
  %v1336 = vpop.f32.mrf.mxu0
  %v1337 = vadd.f32 0.0, %v1336
  %1338 = vdwg.mxu0
  %1339 = vmatpush.bf16.msra.mxu0 0
  %1340 = vmatpush.bf16.msra.mxu0 0
  %1341 = vmatpush.bf16.msra.mxu0 0
  %1342 = vmatpush.bf16.msra.mxu0 0
  %1343 = vmatpush.bf16.msra.mxu0 0
  %1344 = vmatpush.bf16.msra.mxu0 0
  %1345 = vmatpush.bf16.msra.mxu0 0
  %1346 = vmatpush.bf16.msra.mxu0 %v1295
  %1347 = vmatmul.bf16.gmra.mxu0 %v1299
  %v1348 = vpop.f32.mrf.mxu0
  %v1349 = vadd.f32 0.0, %v1348
  %v1350 = vpop.f32.mrf.mxu0
  %v1351 = vadd.f32 0.0, %v1350
  %1352 = vmatmul.bf16.gmra.mxu0 %v1302
  %v1353 = vpop.f32.mrf.mxu0
  %v1354 = vadd.f32 0.0, %v1353
  %v1355 = vpop.f32.mrf.mxu0
  %v1356 = vadd.f32 0.0, %v1355
  %1357 = vmatmul.bf16.gmra.mxu0 %v1305
  %v1358 = vpop.f32.mrf.mxu0
  %v1359 = vadd.f32 0.0, %v1358
  %v1360 = vpop.f32.mrf.mxu0
  %v1361 = vadd.f32 0.0, %v1360
  %1362 = vmatmul.bf16.gmra.mxu0 %v1308
  %v1363 = vpop.f32.mrf.mxu0
  %v1364 = vadd.f32 0.0, %v1363
  %v1365 = vpop.f32.mrf.mxu0
  %v1366 = vadd.f32 0.0, %v1365
  %1367 = vdwg.mxu0
  %v1376 = vunpack.c.l.b16 %v1270
  %v1377 = vunpack.c.l.b16 %v1271
  %v1378 = vunpack.c.l.b16 %v1272
  %v1379 = vunpack.c.l.b16 %v1273
  %v1380 = vunpack.c.l.b16 %v1274
  %v1381 = vunpack.c.l.b16 %v1275
  %v1382 = vunpack.c.l.b16 %v1276
  %v1383 = vunpack.c.l.b16 %v1277
  %v1384 = vpack.c.b16 %v1377, %v1376
  %v1385 = vpack.c.b16 %v1379, %v1378
  %v1386 = vpack.c.b16 %v1381, %v1380
  %v1387 = vpack.c.b16 %v1383, %v1382
  %v1392 = vunpack.c.l.b16 %v1278
  %v1393 = vunpack.c.h.b16 %v1278
  %v1394 = vunpack.c.l.b16 %v1279
  %v1395 = vunpack.c.h.b16 %v1279
  %v1396 = vunpack.c.l.b16 %v1280
  %v1397 = vunpack.c.h.b16 %v1280
  %v1398 = vunpack.c.l.b16 %v1281
  %v1399 = vunpack.c.h.b16 %v1281
  %v1400 = vpack.c.b16 %v1394, %v1392
  %v1401 = vpack.c.b16 %v1395, %v1393
  %v1402 = vpack.c.b16 %v1398, %v1396
  %v1403 = vpack.c.b16 %v1399, %v1397
  %vm1408 = vcmask 261120
  %v1410 = vsel %vm1408, %v1384, 0
  %v1413 = vsel %vm1408, %v1385, 0
  %v1416 = vsel %vm1408, %v1386, 0
  %v1419 = vsel %vm1408, %v1387, 0
  %1421 = vmatpush.bf16.msra.mxu0 0
  %1422 = vmatpush.bf16.msra.mxu0 0
  %1423 = vmatpush.bf16.msra.mxu0 0
  %1424 = vmatpush.bf16.msra.mxu0 0
  %1425 = vmatpush.bf16.msra.mxu0 0
  %1426 = vmatpush.bf16.msra.mxu0 0
  %1427 = vmatpush.bf16.msra.mxu0 %v1402
  %1428 = vmatpush.bf16.msra.mxu0 %v1400
  %1429 = vmatmul.bf16.gmra.mxu0 %v1410
  %v1430 = vpop.f32.mrf.mxu0
  %v1431 = vadd.f32 %v1320, %v1430
  %v1432 = vpop.f32.mrf.mxu0
  %v1433 = vadd.f32 %v1322, %v1432
  %1434 = vmatmul.bf16.gmra.mxu0 %v1413
  %v1435 = vpop.f32.mrf.mxu0
  %v1436 = vadd.f32 %v1325, %v1435
  %v1437 = vpop.f32.mrf.mxu0
  %v1438 = vadd.f32 %v1327, %v1437
  %1439 = vmatmul.bf16.gmra.mxu0 %v1416
  %v1440 = vpop.f32.mrf.mxu0
  %v1441 = vadd.f32 %v1330, %v1440
  %v1442 = vpop.f32.mrf.mxu0
  %v1443 = vadd.f32 %v1332, %v1442
  %1444 = vmatmul.bf16.gmra.mxu0 %v1419
  %v1445 = vpop.f32.mrf.mxu0
  %v1446 = vadd.f32 %v1335, %v1445
  %v1447 = vpop.f32.mrf.mxu0
  %v1448 = vadd.f32 %v1337, %v1447
  %1449 = vdwg.mxu0
  %1450 = vmatpush.bf16.msra.mxu0 0
  %1451 = vmatpush.bf16.msra.mxu0 0
  %1452 = vmatpush.bf16.msra.mxu0 0
  %1453 = vmatpush.bf16.msra.mxu0 0
  %1454 = vmatpush.bf16.msra.mxu0 0
  %1455 = vmatpush.bf16.msra.mxu0 0
  %1456 = vmatpush.bf16.msra.mxu0 %v1403
  %1457 = vmatpush.bf16.msra.mxu0 %v1401
  %1458 = vmatmul.bf16.gmra.mxu0 %v1410
  %v1459 = vpop.f32.mrf.mxu0
  %v1460 = vadd.f32 %v1349, %v1459
  %v1461 = vpop.f32.mrf.mxu0
  %v1462 = vadd.f32 %v1351, %v1461
  %1463 = vmatmul.bf16.gmra.mxu0 %v1413
  %v1464 = vpop.f32.mrf.mxu0
  %v1465 = vadd.f32 %v1354, %v1464
  %v1466 = vpop.f32.mrf.mxu0
  %v1467 = vadd.f32 %v1356, %v1466
  %1468 = vmatmul.bf16.gmra.mxu0 %v1416
  %v1469 = vpop.f32.mrf.mxu0
  %v1470 = vadd.f32 %v1359, %v1469
  %v1471 = vpop.f32.mrf.mxu0
  %v1472 = vadd.f32 %v1361, %v1471
  %1473 = vmatmul.bf16.gmra.mxu0 %v1419
  %v1474 = vpop.f32.mrf.mxu0
  %v1475 = vadd.f32 %v1364, %v1474
  %v1476 = vpop.f32.mrf.mxu0
  %v1477 = vadd.f32 %v1366, %v1476
  %1478 = vdwg.mxu0
  %v1479 = vld [vmem:[%s6] sm:$0x3]
  %v1481 = vperm.slane %v1479, 0
  %v1482 = vperm.slane %v1479, 1
  %v1485 = vadd.f32 %v1431, %v1481
  %v1486 = vadd.f32 %v1460, %v1482
  %v1487 = vadd.f32 %v1433, %v1481
  %v1488 = vadd.f32 %v1462, %v1482
  %v1489 = vadd.f32 %v1436, %v1481
  %v1490 = vadd.f32 %v1465, %v1482
  %v1491 = vadd.f32 %v1438, %v1481
  %v1492 = vadd.f32 %v1467, %v1482
  %v1493 = vadd.f32 %v1441, %v1481
  %v1494 = vadd.f32 %v1470, %v1482
  %v1495 = vadd.f32 %v1443, %v1481
  %v1496 = vadd.f32 %v1472, %v1482
  %v1497 = vadd.f32 %v1446, %v1481
  %v1498 = vadd.f32 %v1475, %v1482
  %v1499 = vadd.f32 %v1448, %v1481
  %v1500 = vadd.f32 %v1477, %v1482
  %v1501 = vld [vmem:[%s7] sm:$0xf]
  %v1502 = vld [vmem:[%s7 + $0x4] sm:$0xf]
  %v1503 = vld [vmem:[%s7 + $0x8] sm:$0xf]
  %v1504 = vld [vmem:[%s7 + $0xc] sm:$0xf]
  %v1505 = vld [vmem:[%s8] sm:$0xf]
  %v1506 = vld [vmem:[%s8 + $0x4] sm:$0xf]
  %v1507 = vld [vmem:[%s8 + $0x8] sm:$0xf]
  %v1508 = vld [vmem:[%s8 + $0xc] sm:$0xf]
  %v1509 = vld [vmem:[%s9] sm:$0x1]
  %v1510 = vld [vmem:[%s10] sm:$0x1]
  %v1511 = vld [vmem:[%s18] sm:$0xff]
  %v1512 = vld [vmem:[%s18 + $0x8] sm:$0xff]
  %v1513 = vld [vmem:[%s18 + $0x10] sm:$0xff]
  %v1514 = vld [vmem:[%s18 + $0x18] sm:$0xff]
  %v1515 = vld [vmem:[%s18 + $0x20] sm:$0xff]
  %v1516 = vld [vmem:[%s18 + $0x28] sm:$0xff]
  %v1517 = vld [vmem:[%s18 + $0x30] sm:$0xff]
  %v1518 = vld [vmem:[%s18 + $0x38] sm:$0xff]
  %v1520 = vperm.slane %v1509, 0
  %v1526 = vunpack.c.l.b16 %v1501
  %v1527 = vunpack.c.l.b16 %v1502
  %v1528 = vunpack.c.l.b16 %v1503
  %v1529 = vunpack.c.l.b16 %v1504
  %v1530 = vpack.c.b16 %v1527, %v1526
  %v1531 = vpack.c.b16 %v1529, %v1528
  %v1535 = vsel %vm1408, 0, 0
  %1537 = vmatpush.bf16.msra.mxu0 0
  %1538 = vmatpush.bf16.msra.mxu0 0
  %1539 = vmatpush.bf16.msra.mxu0 0
  %1540 = vmatpush.bf16.msra.mxu0 0
  %1541 = vmatpush.bf16.msra.mxu0 0
  %1542 = vmatpush.bf16.msra.mxu0 0
  %1543 = vmatpush.bf16.msra.mxu0 %v1531
  %1544 = vmatpush.bf16.msra.mxu0 %v1530
  %1545 = vmatmul.bf16.gmra.mxu0 %v1535
  %v1546 = vpop.f32.mrf.mxu0
  %v1547 = vadd.f32 %v1520, %v1546
  %v1548 = vpop.f32.mrf.mxu0
  %1549 = vdwg.mxu0
  %v1551 = vperm.slane %v1510, 0
  %v1557 = vunpack.c.l.b16 %v1505
  %v1558 = vunpack.c.l.b16 %v1506
  %v1559 = vunpack.c.l.b16 %v1507
  %v1560 = vunpack.c.l.b16 %v1508
  %v1561 = vpack.c.b16 %v1558, %v1557
  %v1562 = vpack.c.b16 %v1560, %v1559
  %1565 = vmatpush.bf16.msra.mxu0 0
  %1566 = vmatpush.bf16.msra.mxu0 0
  %1567 = vmatpush.bf16.msra.mxu0 0
  %1568 = vmatpush.bf16.msra.mxu0 0
  %1569 = vmatpush.bf16.msra.mxu0 0
  %1570 = vmatpush.bf16.msra.mxu0 0
  %1571 = vmatpush.bf16.msra.mxu0 %v1562
  %1572 = vmatpush.bf16.msra.mxu0 %v1561
  %1573 = vmatmul.bf16.gmra.mxu0 %v1535
  %v1574 = vpop.f32.mrf.mxu0
  %v1575 = vadd.f32 %v1551, %v1574
  %v1576 = vpop.f32.mrf.mxu0
  %1577 = vdwg.mxu0
  %v1578 = vadd.f32 %v1485, %v1547
  %v1579 = vxor.u32 %v1578, 2147483648
  %v1580 = vmul.f32 %v1579, 1.442695
  %v1581 = vpow.pop %v1580
  %v1582 = vadd.f32 %v1581, 1.0
  %v1583 = vrcp.pop %v1582
  %v1584 = vmul.f32 %v1582, %v1583
  %v1585 = vsub.f32 1.0, %v1584
  %v1586 = vmul.f32 %v1583, %v1585
  %v1587 = vadd.f32 %v1583, %v1586
  %vm1588 = vweird.f32 %v1582
  %vm1589 = vweird.f32 %v1583
  %vm1590 = vmor %vm1588, %vm1589
  %v1591 = vsel %vm1590, %v1583, %v1587
  %v1592 = vand.u32 2147483647, %v1582
  %vm1593 = vcmp.eq.f32.partialorder %v1592, 8.507059e+37
  %v1594 = vand.u32 %v1582, 2147483648
  %v1595 = vor.u32 1.1754944e-38, %v1594
  %v1596 = vsel %vm1593, %v1595, %v1591
  %v1597 = vmul.f32 1.0, %v1596
  %1599 = vrot.lane.b32.xlu0 %v1547, 64
  %v1600 = vpop.permute.xlu0 %1599
  %v1602 = vmul.f32 %v1597, %v1600
  %1604 = vrot.lane.b32.xlu0 %v1602, 64
  %v1605 = vpop.permute.xlu0 %1604
  %v1607 = vadd.f32 %v1485, %v1605
  %v1608 = vtanh.pop %v1607
  %v1609 = vsub.f32 1.0, %v1597
  %1611 = vrot.lane.b32.xlu0 %v1608, 96
  %v1612 = vpop.permute.xlu0 %1611
  %v1614 = vmul.f32 %v1609, %v1612
  %v1615 = vmul.f32 %v1597, 0.0
  %v1616 = vadd.f32 %v1614, %v1615
  %1618 = vrot.lane.b32.xlu0 %v1575, 96
  %v1619 = vpop.permute.xlu0 %1618
  %v1621 = vadd.f32 %v1499, %v1619
  %v1622 = vxor.u32 %v1621, 2147483648
  %v1623 = vmul.f32 %v1622, 1.442695
  %v1624 = vpow.pop %v1623
  %v1625 = vadd.f32 %v1624, 1.0
  %v1626 = vrcp.pop %v1625
  %v1627 = vmul.f32 %v1625, %v1626
  %v1628 = vsub.f32 1.0, %v1627
  %v1629 = vmul.f32 %v1626, %v1628
  %v1630 = vadd.f32 %v1626, %v1629
  %vm1631 = vweird.f32 %v1625
  %vm1632 = vweird.f32 %v1626
  %vm1633 = vmor %vm1631, %vm1632
  %v1634 = vsel %vm1633, %v1626, %v1630
  %v1635 = vand.u32 2147483647, %v1625
  %vm1636 = vcmp.eq.f32.partialorder %v1635, 8.507059e+37
  %v1637 = vand.u32 %v1625, 2147483648
  %v1638 = vor.u32 1.1754944e-38, %v1637
  %v1639 = vsel %vm1636, %v1638, %v1634
  %v1640 = vmul.f32 1.0, %v1639
  %v1641 = vadd.f32 %v1500, %v1619
  %v1642 = vxor.u32 %v1641, 2147483648
  %v1643 = vmul.f32 %v1642, 1.442695
  %v1644 = vpow.pop %v1643
  %v1645 = vadd.f32 %v1644, 1.0
  %v1646 = vrcp.pop %v1645
  %v1647 = vmul.f32 %v1645, %v1646
  %v1648 = vsub.f32 1.0, %v1647
  %v1649 = vmul.f32 %v1646, %v1648
  %v1650 = vadd.f32 %v1646, %v1649
  %vm1651 = vweird.f32 %v1645
  %vm1652 = vweird.f32 %v1646
  %vm1653 = vmor %vm1651, %vm1652
  %v1654 = vsel %vm1653, %v1646, %v1650
  %v1655 = vand.u32 2147483647, %v1645
  %vm1656 = vcmp.eq.f32.partialorder %v1655, 8.507059e+37
  %v1657 = vand.u32 %v1645, 2147483648
  %v1658 = vor.u32 1.1754944e-38, %v1657
  %v1659 = vsel %vm1656, %v1658, %v1654
  %v1660 = vmul.f32 1.0, %v1659
  %1661 = vrot.lane.b32.xlu0 %v1575, 32
  %v1662 = vpop.permute.xlu0 %1661
  %v1664 = vmul.f32 %v1640, %v1662
  %1666 = vrot.lane.b32.xlu0 %v1664, 64
  %v1667 = vpop.permute.xlu0 %1666
  %v1669 = vadd.f32 %v1500, %v1667
  %v1670 = vtanh.pop %v1669
  %v1671 = vsub.f32 1.0, %v1660
  %1673 = vrot.lane.b32.xlu0 %v1670, 96
  %v1674 = vpop.permute.xlu0 %1673
  %v1676 = vmul.f32 %v1671, %v1674
  %v1677 = vmul.f32 %v1660, 0.0
  %v1678 = vadd.f32 %v1676, %v1677
  %vm1679 = vcmp.gt.s32.totalorder %v1511, 0
  %vm1680 = vcmp.gt.s32.totalorder %v1511, 7
  %v1681 = vsel %vm1679, 1, 0
  %1682 = vset.pattern.permute.xlu0 0
  %1683 = vperm.xlu0 %1682, %v1681
  %v1684 = vpop.permute.xlu0 %1683
  %vm1685 = vcmp.eq.s32.totalorder %v1684, 1
  %v1686 = vsel %vm1685, %v1616, 0.0
  %v1687 = vsel %vm1680, 1, 0
  %1688 = vset.pattern.permute.xlu0 0
  %1689 = vperm.xlu0 %1688, %v1687
  %v1690 = vpop.permute.xlu0 %1689
  %vm1691 = vcmp.eq.s32.totalorder %v1690, 1
  %v1692 = vsel %vm1691, %v1678, 0.0
  %1694 = vrot.lane.b32.xlu0 %v1686, 96
  %v1695 = vpop.permute.xlu0 %1694
  %1697 = vst.msk [vmem:[#allocation2] sm:$0xff] %vm1408, %v1695
  %1698 = vst.msk [vmem:[#allocation3 + $0x38] sm:$0xff] %vm1408, %v1692
  %v1699 = vpack.c.bf16 %v1686, %v1686
  %1701 = vrot.lane.b32.xlu0 %v1699, 96
  %v1702 = vpop.permute.xlu0 %1701
  %v1704 = vsel %vm1408, %v1702, 0
  %1706 = vmatpush.bf16.msra.mxu0 0
  %1707 = vmatpush.bf16.msra.mxu0 0
  %1708 = vmatpush.bf16.msra.mxu0 0
  %1709 = vmatpush.bf16.msra.mxu0 0
  %1710 = vmatpush.bf16.msra.mxu0 0
  %1711 = vmatpush.bf16.msra.mxu0 0
  %1712 = vmatpush.bf16.msra.mxu0 %v1531
  %1713 = vmatpush.bf16.msra.mxu0 %v1530
  %1714 = vmatmul.bf16.gmra.mxu0 %v1704
  %v1715 = vpop.f32.mrf.mxu0
  %v1716 = vadd.f32 %v1520, %v1715
  %v1717 = vpop.f32.mrf.mxu0
  %1718 = vdwg.mxu0
  %v1719 = vpack.c.bf16 %v1692, %v1692
  %v1721 = vsel %vm1408, %v1719, 0
  %1723 = vmatpush.bf16.msra.mxu0 0
  %1724 = vmatpush.bf16.msra.mxu0 0
  %1725 = vmatpush.bf16.msra.mxu0 0
  %1726 = vmatpush.bf16.msra.mxu0 0
  %1727 = vmatpush.bf16.msra.mxu0 0
  %1728 = vmatpush.bf16.msra.mxu0 0
  %1729 = vmatpush.bf16.msra.mxu0 %v1562
  %1730 = vmatpush.bf16.msra.mxu0 %v1561
  %1731 = vmatmul.bf16.gmra.mxu0 %v1721
  %v1732 = vpop.f32.mrf.mxu0
  %v1733 = vadd.f32 %v1551, %v1732
  %v1734 = vpop.f32.mrf.mxu0
  %1735 = vdwg.mxu0
  %v1736 = vadd.f32 %v1487, %v1716
  %v1737 = vxor.u32 %v1736, 2147483648
  %v1738 = vmul.f32 %v1737, 1.442695
  %v1739 = vpow.pop %v1738
  %v1740 = vadd.f32 %v1739, 1.0
  %v1741 = vrcp.pop %v1740
  %v1742 = vmul.f32 %v1740, %v1741
  %v1743 = vsub.f32 1.0, %v1742
  %v1744 = vmul.f32 %v1741, %v1743
  %v1745 = vadd.f32 %v1741, %v1744
  %vm1746 = vweird.f32 %v1740
  %vm1747 = vweird.f32 %v1741
  %vm1748 = vmor %vm1746, %vm1747
  %v1749 = vsel %vm1748, %v1741, %v1745
  %v1750 = vand.u32 2147483647, %v1740
  %vm1751 = vcmp.eq.f32.partialorder %v1750, 8.507059e+37
  %v1752 = vand.u32 %v1740, 2147483648
  %v1753 = vor.u32 1.1754944e-38, %v1752
  %v1754 = vsel %vm1751, %v1753, %v1749
  %v1755 = vmul.f32 1.0, %v1754
  %1757 = vrot.lane.b32.xlu0 %v1716, 64
  %v1758 = vpop.permute.xlu0 %1757
  %v1760 = vmul.f32 %v1755, %v1758
  %1762 = vrot.lane.b32.xlu0 %v1760, 64
  %v1763 = vpop.permute.xlu0 %1762
  %v1765 = vadd.f32 %v1487, %v1763
  %v1766 = vtanh.pop %v1765
  %v1767 = vsub.f32 1.0, %v1755
  %1769 = vrot.lane.b32.xlu0 %v1766, 96
  %v1770 = vpop.permute.xlu0 %1769
  %v1772 = vmul.f32 %v1767, %v1770
  %v1773 = vmul.f32 %v1755, %v1686
  %v1774 = vadd.f32 %v1772, %v1773
  %1776 = vrot.lane.b32.xlu0 %v1733, 96
  %v1777 = vpop.permute.xlu0 %1776
  %v1779 = vadd.f32 %v1497, %v1777
  %v1780 = vxor.u32 %v1779, 2147483648
  %v1781 = vmul.f32 %v1780, 1.442695
  %v1782 = vpow.pop %v1781
  %v1783 = vadd.f32 %v1782, 1.0
  %v1784 = vrcp.pop %v1783
  %v1785 = vmul.f32 %v1783, %v1784
  %v1786 = vsub.f32 1.0, %v1785
  %v1787 = vmul.f32 %v1784, %v1786
  %v1788 = vadd.f32 %v1784, %v1787
  %vm1789 = vweird.f32 %v1783
  %vm1790 = vweird.f32 %v1784
  %vm1791 = vmor %vm1789, %vm1790
  %v1792 = vsel %vm1791, %v1784, %v1788
  %v1793 = vand.u32 2147483647, %v1783
  %vm1794 = vcmp.eq.f32.partialorder %v1793, 8.507059e+37
  %v1795 = vand.u32 %v1783, 2147483648
  %v1796 = vor.u32 1.1754944e-38, %v1795
  %v1797 = vsel %vm1794, %v1796, %v1792
  %v1798 = vmul.f32 1.0, %v1797
  %v1799 = vadd.f32 %v1498, %v1777
  %v1800 = vxor.u32 %v1799, 2147483648
  %v1801 = vmul.f32 %v1800, 1.442695
  %v1802 = vpow.pop %v1801
  %v1803 = vadd.f32 %v1802, 1.0
  %v1804 = vrcp.pop %v1803
  %v1805 = vmul.f32 %v1803, %v1804
  %v1806 = vsub.f32 1.0, %v1805
  %v1807 = vmul.f32 %v1804, %v1806
  %v1808 = vadd.f32 %v1804, %v1807
  %vm1809 = vweird.f32 %v1803
  %vm1810 = vweird.f32 %v1804
  %vm1811 = vmor %vm1809, %vm1810
  %v1812 = vsel %vm1811, %v1804, %v1808
  %v1813 = vand.u32 2147483647, %v1803
  %vm1814 = vcmp.eq.f32.partialorder %v1813, 8.507059e+37
  %v1815 = vand.u32 %v1803, 2147483648
  %v1816 = vor.u32 1.1754944e-38, %v1815
  %v1817 = vsel %vm1814, %v1816, %v1812
  %v1818 = vmul.f32 1.0, %v1817
  %1819 = vrot.lane.b32.xlu0 %v1733, 32
  %v1820 = vpop.permute.xlu0 %1819
  %v1822 = vmul.f32 %v1798, %v1820
  %1824 = vrot.lane.b32.xlu0 %v1822, 64
  %v1825 = vpop.permute.xlu0 %1824
  %v1827 = vadd.f32 %v1498, %v1825
  %v1828 = vtanh.pop %v1827
  %v1829 = vsub.f32 1.0, %v1818
  %1831 = vrot.lane.b32.xlu0 %v1828, 96
  %v1832 = vpop.permute.xlu0 %1831
  %v1834 = vmul.f32 %v1829, %v1832
  %v1835 = vmul.f32 %v1818, %v1692
  %v1836 = vadd.f32 %v1834, %v1835
  %vm1837 = vcmp.gt.s32.totalorder %v1511, 1
  %vm1838 = vcmp.gt.s32.totalorder %v1511, 6
  %v1839 = vsel %vm1837, 1, 0
  %1840 = vset.pattern.permute.xlu0 0
  %1841 = vperm.xlu0 %1840, %v1839
  %v1842 = vpop.permute.xlu0 %1841
  %vm1843 = vcmp.eq.s32.totalorder %v1842, 1
  %v1844 = vsel %vm1843, %v1774, %v1686
  %v1845 = vsel %vm1838, 1, 0
  %1846 = vset.pattern.permute.xlu0 0
  %1847 = vperm.xlu0 %1846, %v1845
  %v1848 = vpop.permute.xlu0 %1847
  %vm1849 = vcmp.eq.s32.totalorder %v1848, 1
  %v1850 = vsel %vm1849, %v1836, %v1692
  %v1851 = vsel %vm1843, %v1774, 0.0
  %1853 = vrot.lane.b32.xlu0 %v1851, 96
  %v1854 = vpop.permute.xlu0 %1853
  %1856 = vst.msk [vmem:[#allocation2 + $0x8] sm:$0xff] %vm1408, %v1854
  %v1857 = vsel %vm1849, %v1836, 0.0
  %1858 = vst.msk [vmem:[#allocation3 + $0x30] sm:$0xff] %vm1408, %v1857
  %v1859 = vpack.c.bf16 %v1844, %v1844
  %1861 = vrot.lane.b32.xlu0 %v1859, 96
  %v1862 = vpop.permute.xlu0 %1861
  %v1864 = vsel %vm1408, %v1862, 0
  %1866 = vmatpush.bf16.msra.mxu0 0
  %1867 = vmatpush.bf16.msra.mxu0 0
  %1868 = vmatpush.bf16.msra.mxu0 0
  %1869 = vmatpush.bf16.msra.mxu0 0
  %1870 = vmatpush.bf16.msra.mxu0 0
  %1871 = vmatpush.bf16.msra.mxu0 0
  %1872 = vmatpush.bf16.msra.mxu0 %v1531
  %1873 = vmatpush.bf16.msra.mxu0 %v1530
  %1874 = vmatmul.bf16.gmra.mxu0 %v1864
  %v1875 = vpop.f32.mrf.mxu0
  %v1876 = vadd.f32 %v1520, %v1875
  %v1877 = vpop.f32.mrf.mxu0
  %1878 = vdwg.mxu0
  %v1879 = vpack.c.bf16 %v1850, %v1850
  %v1881 = vsel %vm1408, %v1879, 0
  %1883 = vmatpush.bf16.msra.mxu0 0
  %1884 = vmatpush.bf16.msra.mxu0 0
  %1885 = vmatpush.bf16.msra.mxu0 0
  %1886 = vmatpush.bf16.msra.mxu0 0
  %1887 = vmatpush.bf16.msra.mxu0 0
  %1888 = vmatpush.bf16.msra.mxu0 0
  %1889 = vmatpush.bf16.msra.mxu0 %v1562
  %1890 = vmatpush.bf16.msra.mxu0 %v1561
  %1891 = vmatmul.bf16.gmra.mxu0 %v1881
  %v1892 = vpop.f32.mrf.mxu0
  %v1893 = vadd.f32 %v1551, %v1892
  %v1894 = vpop.f32.mrf.mxu0
  %1895 = vdwg.mxu0
  %v1896 = vadd.f32 %v1489, %v1876
  %v1897 = vxor.u32 %v1896, 2147483648
  %v1898 = vmul.f32 %v1897, 1.442695
  %v1899 = vpow.pop %v1898
  %v1900 = vadd.f32 %v1899, 1.0
  %v1901 = vrcp.pop %v1900
  %v1902 = vmul.f32 %v1900, %v1901
  %v1903 = vsub.f32 1.0, %v1902
  %v1904 = vmul.f32 %v1901, %v1903
  %v1905 = vadd.f32 %v1901, %v1904
  %vm1906 = vweird.f32 %v1900
  %vm1907 = vweird.f32 %v1901
  %vm1908 = vmor %vm1906, %vm1907
  %v1909 = vsel %vm1908, %v1901, %v1905
  %v1910 = vand.u32 2147483647, %v1900
  %vm1911 = vcmp.eq.f32.partialorder %v1910, 8.507059e+37
  %v1912 = vand.u32 %v1900, 2147483648
  %v1913 = vor.u32 1.1754944e-38, %v1912
  %v1914 = vsel %vm1911, %v1913, %v1909
  %v1915 = vmul.f32 1.0, %v1914
  %1917 = vrot.lane.b32.xlu0 %v1876, 64
  %v1918 = vpop.permute.xlu0 %1917
  %v1920 = vmul.f32 %v1915, %v1918
  %1922 = vrot.lane.b32.xlu0 %v1920, 64
  %v1923 = vpop.permute.xlu0 %1922
  %v1925 = vadd.f32 %v1489, %v1923
  %v1926 = vtanh.pop %v1925
  %v1927 = vsub.f32 1.0, %v1915
  %1929 = vrot.lane.b32.xlu0 %v1926, 96
  %v1930 = vpop.permute.xlu0 %1929
  %v1932 = vmul.f32 %v1927, %v1930
  %v1933 = vmul.f32 %v1915, %v1844
  %v1934 = vadd.f32 %v1932, %v1933
  %1936 = vrot.lane.b32.xlu0 %v1893, 96
  %v1937 = vpop.permute.xlu0 %1936
  %v1939 = vadd.f32 %v1495, %v1937
  %v1940 = vxor.u32 %v1939, 2147483648
  %v1941 = vmul.f32 %v1940, 1.442695
  %v1942 = vpow.pop %v1941
  %v1943 = vadd.f32 %v1942, 1.0
  %v1944 = vrcp.pop %v1943
  %v1945 = vmul.f32 %v1943, %v1944
  %v1946 = vsub.f32 1.0, %v1945
  %v1947 = vmul.f32 %v1944, %v1946
  %v1948 = vadd.f32 %v1944, %v1947
  %vm1949 = vweird.f32 %v1943
  %vm1950 = vweird.f32 %v1944
  %vm1951 = vmor %vm1949, %vm1950
  %v1952 = vsel %vm1951, %v1944, %v1948
  %v1953 = vand.u32 2147483647, %v1943
  %vm1954 = vcmp.eq.f32.partialorder %v1953, 8.507059e+37
  %v1955 = vand.u32 %v1943, 2147483648
  %v1956 = vor.u32 1.1754944e-38, %v1955
  %v1957 = vsel %vm1954, %v1956, %v1952
  %v1958 = vmul.f32 1.0, %v1957
  %v1959 = vadd.f32 %v1496, %v1937
  %v1960 = vxor.u32 %v1959, 2147483648
  %v1961 = vmul.f32 %v1960, 1.442695
  %v1962 = vpow.pop %v1961
  %v1963 = vadd.f32 %v1962, 1.0
  %v1964 = vrcp.pop %v1963
  %v1965 = vmul.f32 %v1963, %v1964
  %v1966 = vsub.f32 1.0, %v1965
  %v1967 = vmul.f32 %v1964, %v1966
  %v1968 = vadd.f32 %v1964, %v1967
  %vm1969 = vweird.f32 %v1963
  %vm1970 = vweird.f32 %v1964
  %vm1971 = vmor %vm1969, %vm1970
  %v1972 = vsel %vm1971, %v1964, %v1968
  %v1973 = vand.u32 2147483647, %v1963
  %vm1974 = vcmp.eq.f32.partialorder %v1973, 8.507059e+37
  %v1975 = vand.u32 %v1963, 2147483648
  %v1976 = vor.u32 1.1754944e-38, %v1975
  %v1977 = vsel %vm1974, %v1976, %v1972
  %v1978 = vmul.f32 1.0, %v1977
  %1979 = vrot.lane.b32.xlu0 %v1893, 32
  %v1980 = vpop.permute.xlu0 %1979
  %v1982 = vmul.f32 %v1958, %v1980
  %1984 = vrot.lane.b32.xlu0 %v1982, 64
  %v1985 = vpop.permute.xlu0 %1984
  %v1987 = vadd.f32 %v1496, %v1985
  %v1988 = vtanh.pop %v1987
  %v1989 = vsub.f32 1.0, %v1978
  %1991 = vrot.lane.b32.xlu0 %v1988, 96
  %v1992 = vpop.permute.xlu0 %1991
  %v1994 = vmul.f32 %v1989, %v1992
  %v1995 = vmul.f32 %v1978, %v1850
  %v1996 = vadd.f32 %v1994, %v1995
  %vm1997 = vcmp.gt.s32.totalorder %v1511, 2
  %vm1998 = vcmp.gt.s32.totalorder %v1511, 5
  %v1999 = vsel %vm1997, 1, 0
  %2000 = vset.pattern.permute.xlu0 0
  %2001 = vperm.xlu0 %2000, %v1999
  %v2002 = vpop.permute.xlu0 %2001
  %vm2003 = vcmp.eq.s32.totalorder %v2002, 1
  %v2004 = vsel %vm2003, %v1934, %v1844
  %v2005 = vsel %vm1998, 1, 0
  %2006 = vset.pattern.permute.xlu0 0
  %2007 = vperm.xlu0 %2006, %v2005
  %v2008 = vpop.permute.xlu0 %2007
  %vm2009 = vcmp.eq.s32.totalorder %v2008, 1
  %v2010 = vsel %vm2009, %v1996, %v1850
  %v2011 = vsel %vm2003, %v1934, 0.0
  %2013 = vrot.lane.b32.xlu0 %v2011, 96
  %v2014 = vpop.permute.xlu0 %2013
  %2016 = vst.msk [vmem:[#allocation2 + $0x10] sm:$0xff] %vm1408, %v2014
  %v2017 = vsel %vm2009, %v1996, 0.0
  %2018 = vst.msk [vmem:[#allocation3 + $0x28] sm:$0xff] %vm1408, %v2017
  %v2019 = vpack.c.bf16 %v2004, %v2004
  %2021 = vrot.lane.b32.xlu0 %v2019, 96
  %v2022 = vpop.permute.xlu0 %2021
  %v2024 = vsel %vm1408, %v2022, 0
  %2026 = vmatpush.bf16.msra.mxu0 0
  %2027 = vmatpush.bf16.msra.mxu0 0
  %2028 = vmatpush.bf16.msra.mxu0 0
  %2029 = vmatpush.bf16.msra.mxu0 0
  %2030 = vmatpush.bf16.msra.mxu0 0
  %2031 = vmatpush.bf16.msra.mxu0 0
  %2032 = vmatpush.bf16.msra.mxu0 %v1531
  %2033 = vmatpush.bf16.msra.mxu0 %v1530
  %2034 = vmatmul.bf16.gmra.mxu0 %v2024
  %v2035 = vpop.f32.mrf.mxu0
  %v2036 = vadd.f32 %v1520, %v2035
  %v2037 = vpop.f32.mrf.mxu0
  %2038 = vdwg.mxu0
  %v2039 = vpack.c.bf16 %v2010, %v2010
  %v2041 = vsel %vm1408, %v2039, 0
  %2043 = vmatpush.bf16.msra.mxu0 0
  %2044 = vmatpush.bf16.msra.mxu0 0
  %2045 = vmatpush.bf16.msra.mxu0 0
  %2046 = vmatpush.bf16.msra.mxu0 0
  %2047 = vmatpush.bf16.msra.mxu0 0
  %2048 = vmatpush.bf16.msra.mxu0 0
  %2049 = vmatpush.bf16.msra.mxu0 %v1562
  %2050 = vmatpush.bf16.msra.mxu0 %v1561
  %2051 = vmatmul.bf16.gmra.mxu0 %v2041
  %v2052 = vpop.f32.mrf.mxu0
  %v2053 = vadd.f32 %v1551, %v2052
  %v2054 = vpop.f32.mrf.mxu0
  %2055 = vdwg.mxu0
  %v2056 = vadd.f32 %v1491, %v2036
  %v2057 = vxor.u32 %v2056, 2147483648
  %v2058 = vmul.f32 %v2057, 1.442695
  %v2059 = vpow.pop %v2058
  %v2060 = vadd.f32 %v2059, 1.0
  %v2061 = vrcp.pop %v2060
  %v2062 = vmul.f32 %v2060, %v2061
  %v2063 = vsub.f32 1.0, %v2062
  %v2064 = vmul.f32 %v2061, %v2063
  %v2065 = vadd.f32 %v2061, %v2064
  %vm2066 = vweird.f32 %v2060
  %vm2067 = vweird.f32 %v2061
  %vm2068 = vmor %vm2066, %vm2067
  %v2069 = vsel %vm2068, %v2061, %v2065
  %v2070 = vand.u32 2147483647, %v2060
  %vm2071 = vcmp.eq.f32.partialorder %v2070, 8.507059e+37
  %v2072 = vand.u32 %v2060, 2147483648
  %v2073 = vor.u32 1.1754944e-38, %v2072
  %v2074 = vsel %vm2071, %v2073, %v2069
  %v2075 = vmul.f32 1.0, %v2074
  %2077 = vrot.lane.b32.xlu0 %v2036, 64
  %v2078 = vpop.permute.xlu0 %2077
  %v2080 = vmul.f32 %v2075, %v2078
  %2082 = vrot.lane.b32.xlu0 %v2080, 64
  %v2083 = vpop.permute.xlu0 %2082
  %v2085 = vadd.f32 %v1491, %v2083
  %v2086 = vtanh.pop %v2085
  %v2087 = vsub.f32 1.0, %v2075
  %2089 = vrot.lane.b32.xlu0 %v2086, 96
  %v2090 = vpop.permute.xlu0 %2089
  %v2092 = vmul.f32 %v2087, %v2090
  %v2093 = vmul.f32 %v2075, %v2004
  %v2094 = vadd.f32 %v2092, %v2093
  %2096 = vrot.lane.b32.xlu0 %v2053, 96
  %v2097 = vpop.permute.xlu0 %2096
  %v2099 = vadd.f32 %v1493, %v2097
  %v2100 = vxor.u32 %v2099, 2147483648
  %v2101 = vmul.f32 %v2100, 1.442695
  %v2102 = vpow.pop %v2101
  %v2103 = vadd.f32 %v2102, 1.0
  %v2104 = vrcp.pop %v2103
  %v2105 = vmul.f32 %v2103, %v2104
  %v2106 = vsub.f32 1.0, %v2105
  %v2107 = vmul.f32 %v2104, %v2106
  %v2108 = vadd.f32 %v2104, %v2107
  %vm2109 = vweird.f32 %v2103
  %vm2110 = vweird.f32 %v2104
  %vm2111 = vmor %vm2109, %vm2110
  %v2112 = vsel %vm2111, %v2104, %v2108
  %v2113 = vand.u32 2147483647, %v2103
  %vm2114 = vcmp.eq.f32.partialorder %v2113, 8.507059e+37
  %v2115 = vand.u32 %v2103, 2147483648
  %v2116 = vor.u32 1.1754944e-38, %v2115
  %v2117 = vsel %vm2114, %v2116, %v2112
  %v2118 = vmul.f32 1.0, %v2117
  %v2119 = vadd.f32 %v1494, %v2097
  %v2120 = vxor.u32 %v2119, 2147483648
  %v2121 = vmul.f32 %v2120, 1.442695
  %v2122 = vpow.pop %v2121
  %v2123 = vadd.f32 %v2122, 1.0
  %v2124 = vrcp.pop %v2123
  %v2125 = vmul.f32 %v2123, %v2124
  %v2126 = vsub.f32 1.0, %v2125
  %v2127 = vmul.f32 %v2124, %v2126
  %v2128 = vadd.f32 %v2124, %v2127
  %vm2129 = vweird.f32 %v2123
  %vm2130 = vweird.f32 %v2124
  %vm2131 = vmor %vm2129, %vm2130
  %v2132 = vsel %vm2131, %v2124, %v2128
  %v2133 = vand.u32 2147483647, %v2123
  %vm2134 = vcmp.eq.f32.partialorder %v2133, 8.507059e+37
  %v2135 = vand.u32 %v2123, 2147483648
  %v2136 = vor.u32 1.1754944e-38, %v2135
  %v2137 = vsel %vm2134, %v2136, %v2132
  %v2138 = vmul.f32 1.0, %v2137
  %2139 = vrot.lane.b32.xlu0 %v2053, 32
  %v2140 = vpop.permute.xlu0 %2139
  %v2142 = vmul.f32 %v2118, %v2140
  %2144 = vrot.lane.b32.xlu0 %v2142, 64
  %v2145 = vpop.permute.xlu0 %2144
  %v2147 = vadd.f32 %v1494, %v2145
  %v2148 = vtanh.pop %v2147
  %v2149 = vsub.f32 1.0, %v2138
  %2151 = vrot.lane.b32.xlu0 %v2148, 96
  %v2152 = vpop.permute.xlu0 %2151
  %v2154 = vmul.f32 %v2149, %v2152
  %v2155 = vmul.f32 %v2138, %v2010
  %v2156 = vadd.f32 %v2154, %v2155
  %vm2157 = vcmp.gt.s32.totalorder %v1511, 3
  %vm2158 = vcmp.gt.s32.totalorder %v1511, 4
  %v2159 = vsel %vm2157, 1, 0
  %2160 = vset.pattern.permute.xlu0 0
  %2161 = vperm.xlu0 %2160, %v2159
  %v2162 = vpop.permute.xlu0 %2161
  %vm2163 = vcmp.eq.s32.totalorder %v2162, 1
  %v2164 = vsel %vm2163, %v2094, %v2004
  %v2165 = vsel %vm2158, 1, 0
  %2166 = vset.pattern.permute.xlu0 0
  %2167 = vperm.xlu0 %2166, %v2165
  %v2168 = vpop.permute.xlu0 %2167
  %vm2169 = vcmp.eq.s32.totalorder %v2168, 1
  %v2170 = vsel %vm2169, %v2156, %v2010
  %v2171 = vsel %vm2163, %v2094, 0.0
  %2173 = vrot.lane.b32.xlu0 %v2171, 96
  %v2174 = vpop.permute.xlu0 %2173
  %2176 = vst.msk [vmem:[#allocation2 + $0x18] sm:$0xff] %vm1408, %v2174
  %v2177 = vsel %vm2169, %v2156, 0.0
  %2178 = vst.msk [vmem:[#allocation3 + $0x20] sm:$0xff] %vm1408, %v2177
  %v2179 = vpack.c.bf16 %v2164, %v2164
  %2181 = vrot.lane.b32.xlu0 %v2179, 96
  %v2182 = vpop.permute.xlu0 %2181
  %v2184 = vsel %vm1408, %v2182, 0
  %2186 = vmatpush.bf16.msra.mxu0 0
  %2187 = vmatpush.bf16.msra.mxu0 0
  %2188 = vmatpush.bf16.msra.mxu0 0
  %2189 = vmatpush.bf16.msra.mxu0 0
  %2190 = vmatpush.bf16.msra.mxu0 0
  %2191 = vmatpush.bf16.msra.mxu0 0
  %2192 = vmatpush.bf16.msra.mxu0 %v1531
  %2193 = vmatpush.bf16.msra.mxu0 %v1530
  %2194 = vmatmul.bf16.gmra.mxu0 %v2184
  %v2195 = vpop.f32.mrf.mxu0
  %v2196 = vadd.f32 %v1520, %v2195
  %v2197 = vpop.f32.mrf.mxu0
  %2198 = vdwg.mxu0
  %v2199 = vpack.c.bf16 %v2170, %v2170
  %v2201 = vsel %vm1408, %v2199, 0
  %2203 = vmatpush.bf16.msra.mxu0 0
  %2204 = vmatpush.bf16.msra.mxu0 0
  %2205 = vmatpush.bf16.msra.mxu0 0
  %2206 = vmatpush.bf16.msra.mxu0 0
  %2207 = vmatpush.bf16.msra.mxu0 0
  %2208 = vmatpush.bf16.msra.mxu0 0
  %2209 = vmatpush.bf16.msra.mxu0 %v1562
  %2210 = vmatpush.bf16.msra.mxu0 %v1561
  %2211 = vmatmul.bf16.gmra.mxu0 %v2201
  %v2212 = vpop.f32.mrf.mxu0
  %v2213 = vadd.f32 %v1551, %v2212
  %v2214 = vpop.f32.mrf.mxu0
  %2215 = vdwg.mxu0
  %v2216 = vadd.f32 %v1493, %v2196
  %v2217 = vxor.u32 %v2216, 2147483648
  %v2218 = vmul.f32 %v2217, 1.442695
  %v2219 = vpow.pop %v2218
  %v2220 = vadd.f32 %v2219, 1.0
  %v2221 = vrcp.pop %v2220
  %v2222 = vmul.f32 %v2220, %v2221
  %v2223 = vsub.f32 1.0, %v2222
  %v2224 = vmul.f32 %v2221, %v2223
  %v2225 = vadd.f32 %v2221, %v2224
  %vm2226 = vweird.f32 %v2220
  %vm2227 = vweird.f32 %v2221
  %vm2228 = vmor %vm2226, %vm2227
  %v2229 = vsel %vm2228, %v2221, %v2225
  %v2230 = vand.u32 2147483647, %v2220
  %vm2231 = vcmp.eq.f32.partialorder %v2230, 8.507059e+37
  %v2232 = vand.u32 %v2220, 2147483648
  %v2233 = vor.u32 1.1754944e-38, %v2232
  %v2234 = vsel %vm2231, %v2233, %v2229
  %v2235 = vmul.f32 1.0, %v2234
  %2237 = vrot.lane.b32.xlu0 %v2196, 64
  %v2238 = vpop.permute.xlu0 %2237
  %v2240 = vmul.f32 %v2235, %v2238
  %2242 = vrot.lane.b32.xlu0 %v2240, 64
  %v2243 = vpop.permute.xlu0 %2242
  %v2245 = vadd.f32 %v1493, %v2243
  %v2246 = vtanh.pop %v2245
  %v2247 = vsub.f32 1.0, %v2235
  %2249 = vrot.lane.b32.xlu0 %v2246, 96
  %v2250 = vpop.permute.xlu0 %2249
  %v2252 = vmul.f32 %v2247, %v2250
  %v2253 = vmul.f32 %v2235, %v2164
  %v2254 = vadd.f32 %v2252, %v2253
  %2256 = vrot.lane.b32.xlu0 %v2213, 96
  %v2257 = vpop.permute.xlu0 %2256
  %v2259 = vadd.f32 %v1491, %v2257
  %v2260 = vxor.u32 %v2259, 2147483648
  %v2261 = vmul.f32 %v2260, 1.442695
  %v2262 = vpow.pop %v2261
  %v2263 = vadd.f32 %v2262, 1.0
  %v2264 = vrcp.pop %v2263
  %v2265 = vmul.f32 %v2263, %v2264
  %v2266 = vsub.f32 1.0, %v2265
  %v2267 = vmul.f32 %v2264, %v2266
  %v2268 = vadd.f32 %v2264, %v2267
  %vm2269 = vweird.f32 %v2263
  %vm2270 = vweird.f32 %v2264
  %vm2271 = vmor %vm2269, %vm2270
  %v2272 = vsel %vm2271, %v2264, %v2268
  %v2273 = vand.u32 2147483647, %v2263
  %vm2274 = vcmp.eq.f32.partialorder %v2273, 8.507059e+37
  %v2275 = vand.u32 %v2263, 2147483648
  %v2276 = vor.u32 1.1754944e-38, %v2275
  %v2277 = vsel %vm2274, %v2276, %v2272
  %v2278 = vmul.f32 1.0, %v2277
  %v2279 = vadd.f32 %v1492, %v2257
  %v2280 = vxor.u32 %v2279, 2147483648
  %v2281 = vmul.f32 %v2280, 1.442695
  %v2282 = vpow.pop %v2281
  %v2283 = vadd.f32 %v2282, 1.0
  %v2284 = vrcp.pop %v2283
  %v2285 = vmul.f32 %v2283, %v2284
  %v2286 = vsub.f32 1.0, %v2285
  %v2287 = vmul.f32 %v2284, %v2286
  %v2288 = vadd.f32 %v2284, %v2287
  %vm2289 = vweird.f32 %v2283
  %vm2290 = vweird.f32 %v2284
  %vm2291 = vmor %vm2289, %vm2290
  %v2292 = vsel %vm2291, %v2284, %v2288
  %v2293 = vand.u32 2147483647, %v2283
  %vm2294 = vcmp.eq.f32.partialorder %v2293, 8.507059e+37
  %v2295 = vand.u32 %v2283, 2147483648
  %v2296 = vor.u32 1.1754944e-38, %v2295
  %v2297 = vsel %vm2294, %v2296, %v2292
  %v2298 = vmul.f32 1.0, %v2297
  %2299 = vrot.lane.b32.xlu0 %v2213, 32
  %v2300 = vpop.permute.xlu0 %2299
  %v2302 = vmul.f32 %v2278, %v2300
  %2304 = vrot.lane.b32.xlu0 %v2302, 64
  %v2305 = vpop.permute.xlu0 %2304
  %v2307 = vadd.f32 %v1492, %v2305
  %v2308 = vtanh.pop %v2307
  %v2309 = vsub.f32 1.0, %v2298
  %2311 = vrot.lane.b32.xlu0 %v2308, 96
  %v2312 = vpop.permute.xlu0 %2311
  %v2314 = vmul.f32 %v2309, %v2312
  %v2315 = vmul.f32 %v2298, %v2170
  %v2316 = vadd.f32 %v2314, %v2315
  %v2317 = vsel %vm2169, %v2254, %v2164
  %v2318 = vsel %vm2163, %v2316, %v2170
  %v2319 = vsel %vm2169, %v2254, 0.0
  %2321 = vrot.lane.b32.xlu0 %v2319, 96
  %v2322 = vpop.permute.xlu0 %2321
  %2324 = vst.msk [vmem:[#allocation2 + $0x20] sm:$0xff] %vm1408, %v2322
  %v2325 = vsel %vm2163, %v2316, 0.0
  %2326 = vst.msk [vmem:[#allocation3 + $0x18] sm:$0xff] %vm1408, %v2325
  %v2327 = vpack.c.bf16 %v2317, %v2317
  %2329 = vrot.lane.b32.xlu0 %v2327, 96
  %v2330 = vpop.permute.xlu0 %2329
  %v2332 = vsel %vm1408, %v2330, 0
  %2334 = vmatpush.bf16.msra.mxu0 0
  %2335 = vmatpush.bf16.msra.mxu0 0
  %2336 = vmatpush.bf16.msra.mxu0 0
  %2337 = vmatpush.bf16.msra.mxu0 0
  %2338 = vmatpush.bf16.msra.mxu0 0
  %2339 = vmatpush.bf16.msra.mxu0 0
  %2340 = vmatpush.bf16.msra.mxu0 %v1531
  %2341 = vmatpush.bf16.msra.mxu0 %v1530
  %2342 = vmatmul.bf16.gmra.mxu0 %v2332
  %v2343 = vpop.f32.mrf.mxu0
  %v2344 = vadd.f32 %v1520, %v2343
  %v2345 = vpop.f32.mrf.mxu0
  %2346 = vdwg.mxu0
  %v2347 = vpack.c.bf16 %v2318, %v2318
  %v2349 = vsel %vm1408, %v2347, 0
  %2351 = vmatpush.bf16.msra.mxu0 0
  %2352 = vmatpush.bf16.msra.mxu0 0
  %2353 = vmatpush.bf16.msra.mxu0 0
  %2354 = vmatpush.bf16.msra.mxu0 0
  %2355 = vmatpush.bf16.msra.mxu0 0
  %2356 = vmatpush.bf16.msra.mxu0 0
  %2357 = vmatpush.bf16.msra.mxu0 %v1562
  %2358 = vmatpush.bf16.msra.mxu0 %v1561
  %2359 = vmatmul.bf16.gmra.mxu0 %v2349
  %v2360 = vpop.f32.mrf.mxu0
  %v2361 = vadd.f32 %v1551, %v2360
  %v2362 = vpop.f32.mrf.mxu0
  %2363 = vdwg.mxu0
  %v2364 = vadd.f32 %v1495, %v2344
  %v2365 = vxor.u32 %v2364, 2147483648
  %v2366 = vmul.f32 %v2365, 1.442695
  %v2367 = vpow.pop %v2366
  %v2368 = vadd.f32 %v2367, 1.0
  %v2369 = vrcp.pop %v2368
  %v2370 = vmul.f32 %v2368, %v2369
  %v2371 = vsub.f32 1.0, %v2370
  %v2372 = vmul.f32 %v2369, %v2371
  %v2373 = vadd.f32 %v2369, %v2372
  %vm2374 = vweird.f32 %v2368
  %vm2375 = vweird.f32 %v2369
  %vm2376 = vmor %vm2374, %vm2375
  %v2377 = vsel %vm2376, %v2369, %v2373
  %v2378 = vand.u32 2147483647, %v2368
  %vm2379 = vcmp.eq.f32.partialorder %v2378, 8.507059e+37
  %v2380 = vand.u32 %v2368, 2147483648
  %v2381 = vor.u32 1.1754944e-38, %v2380
  %v2382 = vsel %vm2379, %v2381, %v2377
  %v2383 = vmul.f32 1.0, %v2382
  %2385 = vrot.lane.b32.xlu0 %v2344, 64
  %v2386 = vpop.permute.xlu0 %2385
  %v2388 = vmul.f32 %v2383, %v2386
  %2390 = vrot.lane.b32.xlu0 %v2388, 64
  %v2391 = vpop.permute.xlu0 %2390
  %v2393 = vadd.f32 %v1495, %v2391
  %v2394 = vtanh.pop %v2393
  %v2395 = vsub.f32 1.0, %v2383
  %2397 = vrot.lane.b32.xlu0 %v2394, 96
  %v2398 = vpop.permute.xlu0 %2397
  %v2400 = vmul.f32 %v2395, %v2398
  %v2401 = vmul.f32 %v2383, %v2317
  %v2402 = vadd.f32 %v2400, %v2401
  %2404 = vrot.lane.b32.xlu0 %v2361, 96
  %v2405 = vpop.permute.xlu0 %2404
  %v2407 = vadd.f32 %v1489, %v2405
  %v2408 = vxor.u32 %v2407, 2147483648
  %v2409 = vmul.f32 %v2408, 1.442695
  %v2410 = vpow.pop %v2409
  %v2411 = vadd.f32 %v2410, 1.0
  %v2412 = vrcp.pop %v2411
  %v2413 = vmul.f32 %v2411, %v2412
  %v2414 = vsub.f32 1.0, %v2413
  %v2415 = vmul.f32 %v2412, %v2414
  %v2416 = vadd.f32 %v2412, %v2415
  %vm2417 = vweird.f32 %v2411
  %vm2418 = vweird.f32 %v2412
  %vm2419 = vmor %vm2417, %vm2418
  %v2420 = vsel %vm2419, %v2412, %v2416
  %v2421 = vand.u32 2147483647, %v2411
  %vm2422 = vcmp.eq.f32.partialorder %v2421, 8.507059e+37
  %v2423 = vand.u32 %v2411, 2147483648
  %v2424 = vor.u32 1.1754944e-38, %v2423
  %v2425 = vsel %vm2422, %v2424, %v2420
  %v2426 = vmul.f32 1.0, %v2425
  %v2427 = vadd.f32 %v1490, %v2405
  %v2428 = vxor.u32 %v2427, 2147483648
  %v2429 = vmul.f32 %v2428, 1.442695
  %v2430 = vpow.pop %v2429
  %v2431 = vadd.f32 %v2430, 1.0
  %v2432 = vrcp.pop %v2431
  %v2433 = vmul.f32 %v2431, %v2432
  %v2434 = vsub.f32 1.0, %v2433
  %v2435 = vmul.f32 %v2432, %v2434
  %v2436 = vadd.f32 %v2432, %v2435
  %vm2437 = vweird.f32 %v2431
  %vm2438 = vweird.f32 %v2432
  %vm2439 = vmor %vm2437, %vm2438
  %v2440 = vsel %vm2439, %v2432, %v2436
  %v2441 = vand.u32 2147483647, %v2431
  %vm2442 = vcmp.eq.f32.partialorder %v2441, 8.507059e+37
  %v2443 = vand.u32 %v2431, 2147483648
  %v2444 = vor.u32 1.1754944e-38, %v2443
  %v2445 = vsel %vm2442, %v2444, %v2440
  %v2446 = vmul.f32 1.0, %v2445
  %2447 = vrot.lane.b32.xlu0 %v2361, 32
  %v2448 = vpop.permute.xlu0 %2447
  %v2450 = vmul.f32 %v2426, %v2448
  %2452 = vrot.lane.b32.xlu0 %v2450, 64
  %v2453 = vpop.permute.xlu0 %2452
  %v2455 = vadd.f32 %v1490, %v2453
  %v2456 = vtanh.pop %v2455
  %v2457 = vsub.f32 1.0, %v2446
  %2459 = vrot.lane.b32.xlu0 %v2456, 96
  %v2460 = vpop.permute.xlu0 %2459
  %v2462 = vmul.f32 %v2457, %v2460
  %v2463 = vmul.f32 %v2446, %v2318
  %v2464 = vadd.f32 %v2462, %v2463
  %v2465 = vsel %vm2009, %v2402, %v2317
  %v2466 = vsel %vm2003, %v2464, %v2318
  %v2467 = vsel %vm2009, %v2402, 0.0
  %2469 = vrot.lane.b32.xlu0 %v2467, 96
  %v2470 = vpop.permute.xlu0 %2469
  %2472 = vst.msk [vmem:[#allocation2 + $0x28] sm:$0xff] %vm1408, %v2470
  %v2473 = vsel %vm2003, %v2464, 0.0
  %2474 = vst.msk [vmem:[#allocation3 + $0x10] sm:$0xff] %vm1408, %v2473
  %v2475 = vpack.c.bf16 %v2465, %v2465
  %2477 = vrot.lane.b32.xlu0 %v2475, 96
  %v2478 = vpop.permute.xlu0 %2477
  %v2480 = vsel %vm1408, %v2478, 0
  %2482 = vmatpush.bf16.msra.mxu0 0
  %2483 = vmatpush.bf16.msra.mxu0 0
  %2484 = vmatpush.bf16.msra.mxu0 0
  %2485 = vmatpush.bf16.msra.mxu0 0
  %2486 = vmatpush.bf16.msra.mxu0 0
  %2487 = vmatpush.bf16.msra.mxu0 0
  %2488 = vmatpush.bf16.msra.mxu0 %v1531
  %2489 = vmatpush.bf16.msra.mxu0 %v1530
  %2490 = vmatmul.bf16.gmra.mxu0 %v2480
  %v2491 = vpop.f32.mrf.mxu0
  %v2492 = vadd.f32 %v1520, %v2491
  %v2493 = vpop.f32.mrf.mxu0
  %2494 = vdwg.mxu0
  %v2495 = vpack.c.bf16 %v2466, %v2466
  %v2497 = vsel %vm1408, %v2495, 0
  %2499 = vmatpush.bf16.msra.mxu0 0
  %2500 = vmatpush.bf16.msra.mxu0 0
  %2501 = vmatpush.bf16.msra.mxu0 0
  %2502 = vmatpush.bf16.msra.mxu0 0
  %2503 = vmatpush.bf16.msra.mxu0 0
  %2504 = vmatpush.bf16.msra.mxu0 0
  %2505 = vmatpush.bf16.msra.mxu0 %v1562
  %2506 = vmatpush.bf16.msra.mxu0 %v1561
  %2507 = vmatmul.bf16.gmra.mxu0 %v2497
  %v2508 = vpop.f32.mrf.mxu0
  %v2509 = vadd.f32 %v1551, %v2508
  %v2510 = vpop.f32.mrf.mxu0
  %2511 = vdwg.mxu0
  %v2512 = vadd.f32 %v1497, %v2492
  %v2513 = vxor.u32 %v2512, 2147483648
  %v2514 = vmul.f32 %v2513, 1.442695
  %v2515 = vpow.pop %v2514
  %v2516 = vadd.f32 %v2515, 1.0
  %v2517 = vrcp.pop %v2516
  %v2518 = vmul.f32 %v2516, %v2517
  %v2519 = vsub.f32 1.0, %v2518
  %v2520 = vmul.f32 %v2517, %v2519
  %v2521 = vadd.f32 %v2517, %v2520
  %vm2522 = vweird.f32 %v2516
  %vm2523 = vweird.f32 %v2517
  %vm2524 = vmor %vm2522, %vm2523
  %v2525 = vsel %vm2524, %v2517, %v2521
  %v2526 = vand.u32 2147483647, %v2516
  %vm2527 = vcmp.eq.f32.partialorder %v2526, 8.507059e+37
  %v2528 = vand.u32 %v2516, 2147483648
  %v2529 = vor.u32 1.1754944e-38, %v2528
  %v2530 = vsel %vm2527, %v2529, %v2525
  %v2531 = vmul.f32 1.0, %v2530
  %2533 = vrot.lane.b32.xlu0 %v2492, 64
  %v2534 = vpop.permute.xlu0 %2533
  %v2536 = vmul.f32 %v2531, %v2534
  %2538 = vrot.lane.b32.xlu0 %v2536, 64
  %v2539 = vpop.permute.xlu0 %2538
  %v2541 = vadd.f32 %v1497, %v2539
  %v2542 = vtanh.pop %v2541
  %v2543 = vsub.f32 1.0, %v2531
  %2545 = vrot.lane.b32.xlu0 %v2542, 96
  %v2546 = vpop.permute.xlu0 %2545
  %v2548 = vmul.f32 %v2543, %v2546
  %v2549 = vmul.f32 %v2531, %v2465
  %v2550 = vadd.f32 %v2548, %v2549
  %2552 = vrot.lane.b32.xlu0 %v2509, 96
  %v2553 = vpop.permute.xlu0 %2552
  %v2555 = vadd.f32 %v1487, %v2553
  %v2556 = vxor.u32 %v2555, 2147483648
  %v2557 = vmul.f32 %v2556, 1.442695
  %v2558 = vpow.pop %v2557
  %v2559 = vadd.f32 %v2558, 1.0
  %v2560 = vrcp.pop %v2559
  %v2561 = vmul.f32 %v2559, %v2560
  %v2562 = vsub.f32 1.0, %v2561
  %v2563 = vmul.f32 %v2560, %v2562
  %v2564 = vadd.f32 %v2560, %v2563
  %vm2565 = vweird.f32 %v2559
  %vm2566 = vweird.f32 %v2560
  %vm2567 = vmor %vm2565, %vm2566
  %v2568 = vsel %vm2567, %v2560, %v2564
  %v2569 = vand.u32 2147483647, %v2559
  %vm2570 = vcmp.eq.f32.partialorder %v2569, 8.507059e+37
  %v2571 = vand.u32 %v2559, 2147483648
  %v2572 = vor.u32 1.1754944e-38, %v2571
  %v2573 = vsel %vm2570, %v2572, %v2568
  %v2574 = vmul.f32 1.0, %v2573
  %v2575 = vadd.f32 %v1488, %v2553
  %v2576 = vxor.u32 %v2575, 2147483648
  %v2577 = vmul.f32 %v2576, 1.442695
  %v2578 = vpow.pop %v2577
  %v2579 = vadd.f32 %v2578, 1.0
  %v2580 = vrcp.pop %v2579
  %v2581 = vmul.f32 %v2579, %v2580
  %v2582 = vsub.f32 1.0, %v2581
  %v2583 = vmul.f32 %v2580, %v2582
  %v2584 = vadd.f32 %v2580, %v2583
  %vm2585 = vweird.f32 %v2579
  %vm2586 = vweird.f32 %v2580
  %vm2587 = vmor %vm2585, %vm2586
  %v2588 = vsel %vm2587, %v2580, %v2584
  %v2589 = vand.u32 2147483647, %v2579
  %vm2590 = vcmp.eq.f32.partialorder %v2589, 8.507059e+37
  %v2591 = vand.u32 %v2579, 2147483648
  %v2592 = vor.u32 1.1754944e-38, %v2591
  %v2593 = vsel %vm2590, %v2592, %v2588
  %v2594 = vmul.f32 1.0, %v2593
  %2595 = vrot.lane.b32.xlu0 %v2509, 32
  %v2596 = vpop.permute.xlu0 %2595
  %v2598 = vmul.f32 %v2574, %v2596
  %2600 = vrot.lane.b32.xlu0 %v2598, 64
  %v2601 = vpop.permute.xlu0 %2600
  %v2603 = vadd.f32 %v1488, %v2601
  %v2604 = vtanh.pop %v2603
  %v2605 = vsub.f32 1.0, %v2594
  %2607 = vrot.lane.b32.xlu0 %v2604, 96
  %v2608 = vpop.permute.xlu0 %2607
  %v2610 = vmul.f32 %v2605, %v2608
  %v2611 = vmul.f32 %v2594, %v2466
  %v2612 = vadd.f32 %v2610, %v2611
  %v2613 = vsel %vm1849, %v2550, %v2465
  %v2614 = vsel %vm1843, %v2612, %v2466
  %v2615 = vsel %vm1849, %v2550, 0.0
  %2617 = vrot.lane.b32.xlu0 %v2615, 96
  %v2618 = vpop.permute.xlu0 %2617
  %2620 = vst.msk [vmem:[#allocation2 + $0x30] sm:$0xff] %vm1408, %v2618
  %v2621 = vsel %vm1843, %v2612, 0.0
  %2622 = vst.msk [vmem:[#allocation3 + $0x8] sm:$0xff] %vm1408, %v2621
  %v2623 = vpack.c.bf16 %v2613, %v2613
  %2625 = vrot.lane.b32.xlu0 %v2623, 96
  %v2626 = vpop.permute.xlu0 %2625
  %v2628 = vsel %vm1408, %v2626, 0
  %2630 = vmatpush.bf16.msra.mxu0 0
  %2631 = vmatpush.bf16.msra.mxu0 0
  %2632 = vmatpush.bf16.msra.mxu0 0
  %2633 = vmatpush.bf16.msra.mxu0 0
  %2634 = vmatpush.bf16.msra.mxu0 0
  %2635 = vmatpush.bf16.msra.mxu0 0
  %2636 = vmatpush.bf16.msra.mxu0 %v1531
  %2637 = vmatpush.bf16.msra.mxu0 %v1530
  %2638 = vmatmul.bf16.gmra.mxu0 %v2628
  %v2639 = vpop.f32.mrf.mxu0
  %v2640 = vadd.f32 %v1520, %v2639
  %v2641 = vpop.f32.mrf.mxu0
  %2642 = vdwg.mxu0
  %v2643 = vpack.c.bf16 %v2614, %v2614
  %v2645 = vsel %vm1408, %v2643, 0
  %2647 = vmatpush.bf16.msra.mxu0 0
  %2648 = vmatpush.bf16.msra.mxu0 0
  %2649 = vmatpush.bf16.msra.mxu0 0
  %2650 = vmatpush.bf16.msra.mxu0 0
  %2651 = vmatpush.bf16.msra.mxu0 0
  %2652 = vmatpush.bf16.msra.mxu0 0
  %2653 = vmatpush.bf16.msra.mxu0 %v1562
  %2654 = vmatpush.bf16.msra.mxu0 %v1561
  %2655 = vmatmul.bf16.gmra.mxu0 %v2645
  %v2656 = vpop.f32.mrf.mxu0
  %v2657 = vadd.f32 %v1551, %v2656
  %v2658 = vpop.f32.mrf.mxu0
  %2659 = vdwg.mxu0
  %v2660 = vadd.f32 %v1499, %v2640
  %v2661 = vxor.u32 %v2660, 2147483648
  %v2662 = vmul.f32 %v2661, 1.442695
  %v2663 = vpow.pop %v2662
  %v2664 = vadd.f32 %v2663, 1.0
  %v2665 = vrcp.pop %v2664
  %v2666 = vmul.f32 %v2664, %v2665
  %v2667 = vsub.f32 1.0, %v2666
  %v2668 = vmul.f32 %v2665, %v2667
  %v2669 = vadd.f32 %v2665, %v2668
  %vm2670 = vweird.f32 %v2664
  %vm2671 = vweird.f32 %v2665
  %vm2672 = vmor %vm2670, %vm2671
  %v2673 = vsel %vm2672, %v2665, %v2669
  %v2674 = vand.u32 2147483647, %v2664
  %vm2675 = vcmp.eq.f32.partialorder %v2674, 8.507059e+37
  %v2676 = vand.u32 %v2664, 2147483648
  %v2677 = vor.u32 1.1754944e-38, %v2676
  %v2678 = vsel %vm2675, %v2677, %v2673
  %v2679 = vmul.f32 1.0, %v2678
  %2681 = vrot.lane.b32.xlu0 %v2640, 64
  %v2682 = vpop.permute.xlu0 %2681
  %v2684 = vmul.f32 %v2679, %v2682
  %2686 = vrot.lane.b32.xlu0 %v2684, 64
  %v2687 = vpop.permute.xlu0 %2686
  %v2689 = vadd.f32 %v1499, %v2687
  %v2690 = vtanh.pop %v2689
  %v2691 = vsub.f32 1.0, %v2679
  %2693 = vrot.lane.b32.xlu0 %v2690, 96
  %v2694 = vpop.permute.xlu0 %2693
  %v2696 = vmul.f32 %v2691, %v2694
  %v2697 = vmul.f32 %v2679, %v2613
  %v2698 = vadd.f32 %v2696, %v2697
  %2700 = vrot.lane.b32.xlu0 %v2657, 96
  %v2701 = vpop.permute.xlu0 %2700
  %v2703 = vadd.f32 %v1485, %v2701
  %v2704 = vxor.u32 %v2703, 2147483648
  %v2705 = vmul.f32 %v2704, 1.442695
  %v2706 = vpow.pop %v2705
  %v2707 = vadd.f32 %v2706, 1.0
  %v2708 = vrcp.pop %v2707
  %v2709 = vmul.f32 %v2707, %v2708
  %v2710 = vsub.f32 1.0, %v2709
  %v2711 = vmul.f32 %v2708, %v2710
  %v2712 = vadd.f32 %v2708, %v2711
  %vm2713 = vweird.f32 %v2707
  %vm2714 = vweird.f32 %v2708
  %vm2715 = vmor %vm2713, %vm2714
  %v2716 = vsel %vm2715, %v2708, %v2712
  %v2717 = vand.u32 2147483647, %v2707
  %vm2718 = vcmp.eq.f32.partialorder %v2717, 8.507059e+37
  %v2719 = vand.u32 %v2707, 2147483648
  %v2720 = vor.u32 1.1754944e-38, %v2719
  %v2721 = vsel %vm2718, %v2720, %v2716
  %v2722 = vmul.f32 1.0, %v2721
  %v2723 = vadd.f32 %v1486, %v2701
  %v2724 = vxor.u32 %v2723, 2147483648
  %v2725 = vmul.f32 %v2724, 1.442695
  %v2726 = vpow.pop %v2725
  %v2727 = vadd.f32 %v2726, 1.0
  %v2728 = vrcp.pop %v2727
  %v2729 = vmul.f32 %v2727, %v2728
  %v2730 = vsub.f32 1.0, %v2729
  %v2731 = vmul.f32 %v2728, %v2730
  %v2732 = vadd.f32 %v2728, %v2731
  %vm2733 = vweird.f32 %v2727
  %vm2734 = vweird.f32 %v2728
  %vm2735 = vmor %vm2733, %vm2734
  %v2736 = vsel %vm2735, %v2728, %v2732
  %v2737 = vand.u32 2147483647, %v2727
  %vm2738 = vcmp.eq.f32.partialorder %v2737, 8.507059e+37
  %v2739 = vand.u32 %v2727, 2147483648
  %v2740 = vor.u32 1.1754944e-38, %v2739
  %v2741 = vsel %vm2738, %v2740, %v2736
  %v2742 = vmul.f32 1.0, %v2741
  %2743 = vrot.lane.b32.xlu0 %v2657, 32
  %v2744 = vpop.permute.xlu0 %2743
  %v2746 = vmul.f32 %v2722, %v2744
  %2748 = vrot.lane.b32.xlu0 %v2746, 64
  %v2749 = vpop.permute.xlu0 %2748
  %v2751 = vadd.f32 %v1486, %v2749
  %v2752 = vtanh.pop %v2751
  %v2753 = vsub.f32 1.0, %v2742
  %2755 = vrot.lane.b32.xlu0 %v2752, 96
  %v2756 = vpop.permute.xlu0 %2755
  %v2758 = vmul.f32 %v2753, %v2756
  %v2759 = vmul.f32 %v2742, %v2614
  %v2760 = vadd.f32 %v2758, %v2759
  %v2761 = vsel %vm1691, %v2698, 0.0
  %2763 = vrot.lane.b32.xlu0 %v2761, 96
  %v2764 = vpop.permute.xlu0 %2763
  %2766 = vst.msk [vmem:[#allocation2 + $0x38] sm:$0xff] %vm1408, %v2764
  %v2767 = vsel %vm1685, %v2760, 0.0
  %2768 = vst.msk [vmem:[#allocation3] sm:$0xff] %vm1408, %v2767
  %v2769 = vld [vmem:[#allocation2] sm:$0xff]
  %v2770 = vld [vmem:[#allocation2 + $0x8] sm:$0xff]
  %v2771 = vld [vmem:[#allocation2 + $0x10] sm:$0xff]
  %v2772 = vld [vmem:[#allocation2 + $0x18] sm:$0xff]
  %v2773 = vld [vmem:[#allocation2 + $0x20] sm:$0xff]
  %v2774 = vld [vmem:[#allocation2 + $0x28] sm:$0xff]
  %v2775 = vld [vmem:[#allocation2 + $0x30] sm:$0xff]
  %v2776 = vld [vmem:[#allocation2 + $0x38] sm:$0xff]
  %v2777 = vpack.c.bf16 %v2770, %v2769
  %v2778 = vpack.c.bf16 %v2772, %v2771
  %v2779 = vpack.c.bf16 %v2774, %v2773
  %v2780 = vpack.c.bf16 %v2776, %v2775
  %v2781 = vld [vmem:[%s11] sm:$0xf]
  %v2782 = vld [vmem:[%s11 + $0x4] sm:$0xf]
  %v2783 = vld [vmem:[%s11 + $0x8] sm:$0xf]
  %v2784 = vld [vmem:[%s11 + $0xc] sm:$0xf]
  %v2785 = vld [vmem:[#allocation3] sm:$0xff]
  %v2786 = vld [vmem:[#allocation3 + $0x8] sm:$0xff]
  %v2787 = vld [vmem:[#allocation3 + $0x10] sm:$0xff]
  %v2788 = vld [vmem:[#allocation3 + $0x18] sm:$0xff]
  %v2789 = vld [vmem:[#allocation3 + $0x20] sm:$0xff]
  %v2790 = vld [vmem:[#allocation3 + $0x28] sm:$0xff]
  %v2791 = vld [vmem:[#allocation3 + $0x30] sm:$0xff]
  %v2792 = vld [vmem:[#allocation3 + $0x38] sm:$0xff]
  %v2793 = vpack.c.bf16 %v2786, %v2785
  %v2794 = vpack.c.bf16 %v2788, %v2787
  %v2795 = vpack.c.bf16 %v2790, %v2789
  %v2796 = vpack.c.bf16 %v2792, %v2791
  %v2797 = vld [vmem:[%s12] sm:$0xf]
  %v2798 = vld [vmem:[%s12 + $0x4] sm:$0xf]
  %v2799 = vld [vmem:[%s12 + $0x8] sm:$0xf]
  %v2800 = vld [vmem:[%s12 + $0xc] sm:$0xf]
  %v2805 = vunpack.c.l.b16 %v2797
  %v2806 = vunpack.c.l.b16 %v2798
  %v2807 = vunpack.c.l.b16 %v2799
  %v2808 = vunpack.c.l.b16 %v2800
  %v2809 = vpack.c.b16 %v2806, %v2805
  %v2810 = vpack.c.b16 %v2808, %v2807
  %v2814 = vsel %vm1408, %v2793, 0
  %v2817 = vsel %vm1408, %v2794, 0
  %v2820 = vsel %vm1408, %v2795, 0
  %v2823 = vsel %vm1408, %v2796, 0
  %2825 = vmatpush.bf16.msra.mxu0 0
  %2826 = vmatpush.bf16.msra.mxu0 0
  %2827 = vmatpush.bf16.msra.mxu0 0
  %2828 = vmatpush.bf16.msra.mxu0 0
  %2829 = vmatpush.bf16.msra.mxu0 0
  %2830 = vmatpush.bf16.msra.mxu0 0
  %2831 = vmatpush.bf16.msra.mxu0 %v2810
  %2832 = vmatpush.bf16.msra.mxu0 %v2809
  %2833 = vmatmul.bf16.gmra.mxu0 %v2814
  %v2834 = vpop.f32.mrf.mxu0
  %v2835 = vadd.f32 0.0, %v2834
  %v2836 = vpop.f32.mrf.mxu0
  %v2837 = vadd.f32 0.0, %v2836
  %2838 = vmatmul.bf16.gmra.mxu0 %v2817
  %v2839 = vpop.f32.mrf.mxu0
  %v2840 = vadd.f32 0.0, %v2839
  %v2841 = vpop.f32.mrf.mxu0
  %v2842 = vadd.f32 0.0, %v2841
  %2843 = vmatmul.bf16.gmra.mxu0 %v2820
  %v2844 = vpop.f32.mrf.mxu0
  %v2845 = vadd.f32 0.0, %v2844
  %v2846 = vpop.f32.mrf.mxu0
  %v2847 = vadd.f32 0.0, %v2846
  %2848 = vmatmul.bf16.gmra.mxu0 %v2823
  %v2849 = vpop.f32.mrf.mxu0
  %v2850 = vadd.f32 0.0, %v2849
  %v2851 = vpop.f32.mrf.mxu0
  %v2852 = vadd.f32 0.0, %v2851
  %2853 = vdwg.mxu0
  %v2858 = vunpack.c.l.b16 %v2781
  %v2859 = vunpack.c.l.b16 %v2782
  %v2860 = vunpack.c.l.b16 %v2783
  %v2861 = vunpack.c.l.b16 %v2784
  %v2862 = vpack.c.b16 %v2859, %v2858
  %v2863 = vpack.c.b16 %v2861, %v2860
  %v2867 = vsel %vm1408, %v2777, 0
  %v2870 = vsel %vm1408, %v2778, 0
  %v2873 = vsel %vm1408, %v2779, 0
  %v2876 = vsel %vm1408, %v2780, 0
  %2878 = vmatpush.bf16.msra.mxu0 0
  %2879 = vmatpush.bf16.msra.mxu0 0
  %2880 = vmatpush.bf16.msra.mxu0 0
  %2881 = vmatpush.bf16.msra.mxu0 0
  %2882 = vmatpush.bf16.msra.mxu0 0
  %2883 = vmatpush.bf16.msra.mxu0 0
  %2884 = vmatpush.bf16.msra.mxu0 %v2863
  %2885 = vmatpush.bf16.msra.mxu0 %v2862
  %2886 = vmatmul.bf16.gmra.mxu0 %v2867
  %v2887 = vpop.f32.mrf.mxu0
  %v2888 = vadd.f32 %v2835, %v2887
  %v2889 = vpop.f32.mrf.mxu0
  %v2890 = vadd.f32 %v2837, %v2889
  %2891 = vmatmul.bf16.gmra.mxu0 %v2870
  %v2892 = vpop.f32.mrf.mxu0
  %v2893 = vadd.f32 %v2840, %v2892
  %v2894 = vpop.f32.mrf.mxu0
  %v2895 = vadd.f32 %v2842, %v2894
  %2896 = vmatmul.bf16.gmra.mxu0 %v2873
  %v2897 = vpop.f32.mrf.mxu0
  %v2898 = vadd.f32 %v2845, %v2897
  %v2899 = vpop.f32.mrf.mxu0
  %v2900 = vadd.f32 %v2847, %v2899
  %2901 = vmatmul.bf16.gmra.mxu0 %v2876
  %v2902 = vpop.f32.mrf.mxu0
  %v2903 = vadd.f32 %v2850, %v2902
  %v2904 = vpop.f32.mrf.mxu0
  %v2905 = vadd.f32 %v2852, %v2904
  %2906 = vdwg.mxu0
  %v2907 = vld [vmem:[%s13] sm:$0x1]
  %v2909 = vperm.slane %v2907, 0
  %v2911 = vadd.f32 %v2888, %v2909
  %v2912 = vadd.f32 %v2890, %v2909
  %v2913 = vadd.f32 %v2893, %v2909
  %v2914 = vadd.f32 %v2895, %v2909
  %v2915 = vadd.f32 %v2898, %v2909
  %v2916 = vadd.f32 %v2900, %v2909
  %v2917 = vadd.f32 %v2903, %v2909
  %v2918 = vadd.f32 %v2905, %v2909
  %v2919 = vld [vmem:[%s15] sm:$0x1]
  %v2920 = vld [vmem:[%s16] sm:$0x1]
  %v2921 = vld [vmem:[%s14] sm:$0xff]
  %v2922 = vld [vmem:[%s14 + $0x8] sm:$0xff]
  %v2923 = vld [vmem:[%s14 + $0x10] sm:$0xff]
  %v2924 = vld [vmem:[%s14 + $0x18] sm:$0xff]
  %v2925 = vld [vmem:[%s14 + $0x20] sm:$0xff]
  %v2926 = vld [vmem:[%s14 + $0x28] sm:$0xff]
  %v2927 = vld [vmem:[%s14 + $0x30] sm:$0xff]
  %v2928 = vld [vmem:[%s14 + $0x38] sm:$0xff]
  %v2929 = vld [vmem:[%s14 + $0x40] sm:$0xff]
  %v2930 = vld [vmem:[%s14 + $0x48] sm:$0xff]
  %v2931 = vld [vmem:[%s14 + $0x50] sm:$0xff]
  %v2932 = vld [vmem:[%s14 + $0x58] sm:$0xff]
  %v2933 = vld [vmem:[%s14 + $0x60] sm:$0xff]
  %v2934 = vld [vmem:[%s14 + $0x68] sm:$0xff]
  %v2935 = vld [vmem:[%s14 + $0x70] sm:$0xff]
  %v2936 = vld [vmem:[%s14 + $0x78] sm:$0xff]
  %v2937 = vld [vmem:[%s17] sm:$0xff]
  %v2938 = vld [vmem:[%s17 + $0x8] sm:$0xff]
  %v2939 = vld [vmem:[%s17 + $0x10] sm:$0xff]
  %v2940 = vld [vmem:[%s17 + $0x18] sm:$0xff]
  %v2941 = vld [vmem:[%s17 + $0x20] sm:$0xff]
  %v2942 = vld [vmem:[%s17 + $0x28] sm:$0xff]
  %v2943 = vld [vmem:[%s17 + $0x30] sm:$0xff]
  %v2944 = vld [vmem:[%s17 + $0x38] sm:$0xff]
  %v2945 = vlaneseq
  %v2946 = vand.u32 %v2945, 127
  %2947 = vset.pattern.permute.xlu0 0
  %2948 = vperm.xlu0 %2947, %v2937
  %v2949 = vpop.permute.xlu0 %2948
  %2950 = vset.pattern.permute.xlu0 0
  %2951 = vperm.xlu0 %2950, %v2938
  %v2952 = vpop.permute.xlu0 %2951
  %2953 = vset.pattern.permute.xlu0 0
  %2954 = vperm.xlu0 %2953, %v2939
  %v2955 = vpop.permute.xlu0 %2954
  %2956 = vset.pattern.permute.xlu0 0
  %2957 = vperm.xlu0 %2956, %v2940
  %v2958 = vpop.permute.xlu0 %2957
  %2959 = vset.pattern.permute.xlu0 0
  %2960 = vperm.xlu0 %2959, %v2941
  %v2961 = vpop.permute.xlu0 %2960
  %2962 = vset.pattern.permute.xlu0 0
  %2963 = vperm.xlu0 %2962, %v2942
  %v2964 = vpop.permute.xlu0 %2963
  %2965 = vset.pattern.permute.xlu0 0
  %2966 = vperm.xlu0 %2965, %v2943
  %v2967 = vpop.permute.xlu0 %2966
  %2968 = vset.pattern.permute.xlu0 0
  %2969 = vperm.xlu0 %2968, %v2944
  %v2970 = vpop.permute.xlu0 %2969
  %vm2971 = vcmp.eq.s32.totalorder %v2946, %v2949
  %vm2972 = vcmp.eq.s32.totalorder %v2946, %v2952
  %vm2973 = vcmp.eq.s32.totalorder %v2946, %v2955
  %vm2974 = vcmp.eq.s32.totalorder %v2946, %v2958
  %vm2975 = vcmp.eq.s32.totalorder %v2946, %v2961
  %vm2976 = vcmp.eq.s32.totalorder %v2946, %v2964
  %vm2977 = vcmp.eq.s32.totalorder %v2946, %v2967
  %vm2978 = vcmp.eq.s32.totalorder %v2946, %v2970
  %v2979 = vsel %vm2971, 1, 0
  %v2980 = vsel %vm2972, 1, 0
  %v2981 = vsel %vm2973, 1, 0
  %v2982 = vsel %vm2974, 1, 0
  %v2983 = vsel %vm2975, 1, 0
  %v2984 = vsel %vm2976, 1, 0
  %v2985 = vsel %vm2977, 1, 0
  %v2986 = vsel %vm2978, 1, 0
  %v2987 = vcvt.s32.f32 %v2979
  %v2988 = vcvt.s32.f32 %v2980
  %v2989 = vcvt.s32.f32 %v2981
  %v2990 = vcvt.s32.f32 %v2982
  %v2991 = vcvt.s32.f32 %v2983
  %v2992 = vcvt.s32.f32 %v2984
  %v2993 = vcvt.s32.f32 %v2985
  %v2994 = vcvt.s32.f32 %v2986
  %vm2995 = vcmp.gt.s32.totalorder %v1512, 1
  %vm2996 = vcmp.gt.s32.totalorder %v1513, 2
  %vm2997 = vcmp.gt.s32.totalorder %v1514, 3
  %vm2998 = vcmp.gt.s32.totalorder %v1515, 4
  %vm2999 = vcmp.gt.s32.totalorder %v1516, 5
  %vm3000 = vcmp.gt.s32.totalorder %v1517, 6
  %vm3001 = vcmp.gt.s32.totalorder %v1518, 7
  %v3002 = vsel %vm2995, 1, 0
  %v3003 = vsel %vm2996, 1, 0
  %v3004 = vsel %vm2997, 1, 0
  %v3005 = vsel %vm2998, 1, 0
  %v3006 = vsel %vm2999, 1, 0
  %v3007 = vsel %vm3000, 1, 0
  %v3008 = vsel %vm3001, 1, 0
  %v3009 = vcvt.s32.f32 %v1681
  %v3010 = vcvt.s32.f32 %v3002
  %v3011 = vcvt.s32.f32 %v3003
  %v3012 = vcvt.s32.f32 %v3004
  %v3013 = vcvt.s32.f32 %v3005
  %v3014 = vcvt.s32.f32 %v3006
  %v3015 = vcvt.s32.f32 %v3007
  %v3016 = vcvt.s32.f32 %v3008
  %v3017 = vmul.f32 %v2987, %v2911
  %v3018 = vmul.f32 %v2988, %v2912
  %v3019 = vmul.f32 %v2989, %v2913
  %v3020 = vmul.f32 %v2990, %v2914
  %v3021 = vmul.f32 %v2991, %v2915
  %v3022 = vmul.f32 %v2992, %v2916
  %v3023 = vmul.f32 %v2993, %v2917
  %v3024 = vmul.f32 %v2994, %v2918
  %3025 = vadd.xlane.f32.xlu0 %v3017
  %v3026 = vpop.xlane.xlu0 %3025
  %3027 = vadd.xlane.f32.xlu0 %v3018
  %v3028 = vpop.xlane.xlu0 %3027
  %3029 = vadd.xlane.f32.xlu0 %v3019
  %v3030 = vpop.xlane.xlu0 %3029
  %3031 = vadd.xlane.f32.xlu0 %v3020
  %v3032 = vpop.xlane.xlu0 %3031
  %3033 = vadd.xlane.f32.xlu0 %v3021
  %v3034 = vpop.xlane.xlu0 %3033
  %3035 = vadd.xlane.f32.xlu0 %v3022
  %v3036 = vpop.xlane.xlu0 %3035
  %3037 = vadd.xlane.f32.xlu0 %v3023
  %v3038 = vpop.xlane.xlu0 %3037
  %3039 = vadd.xlane.f32.xlu0 %v3024
  %v3040 = vpop.xlane.xlu0 %3039
  %v3041 = vmul.f32 %v3026, %v3009
  %v3042 = vmul.f32 %v3028, %v3010
  %v3043 = vmul.f32 %v3030, %v3011
  %v3044 = vmul.f32 %v3032, %v3012
  %v3045 = vmul.f32 %v3034, %v3013
  %v3046 = vmul.f32 %v3036, %v3014
  %v3047 = vmul.f32 %v3038, %v3015
  %v3048 = vmul.f32 %v3040, %v3016
  %vm3049 = vcmask 7168
  %v3050 = vsel %vm3049, %v3041, 0.0
  %v3051 = vsel %vm3049, %v3042, 0.0
  %v3052 = vadd.f32 %v3050, %v3051
  %v3053 = vsel %vm3049, %v3043, 0.0
  %v3054 = vadd.f32 %v3052, %v3053
  %v3055 = vsel %vm3049, %v3044, 0.0
  %v3056 = vadd.f32 %v3054, %v3055
  %v3057 = vsel %vm3049, %v3045, 0.0
  %v3058 = vadd.f32 %v3056, %v3057
  %v3059 = vsel %vm3049, %v3046, 0.0
  %v3060 = vadd.f32 %v3058, %v3059
  %v3061 = vsel %vm3049, %v3047, 0.0
  %v3062 = vadd.f32 %v3060, %v3061
  %v3063 = vsel %vm3049, %v3048, 0.0
  %v3064 = vadd.f32 %v3062, %v3063
  %3065 = vmatpush.msra.mxu0 %v2936
  %3066 = vmatpush.msra.mxu0 %v2935
  %3067 = vmatpush.msra.mxu0 %v2934
  %3068 = vmatpush.msra.mxu0 %v2933
  %3069 = vmatpush.msra.mxu0 %v2932
  %3070 = vmatpush.msra.mxu0 %v2931
  %3071 = vmatpush.msra.mxu0 %v2930
  %3072 = vmatpush.msra.mxu0 %v2929
  %3073 = vmatpush.msra.mxu0 %v2928
  %3074 = vmatpush.msra.mxu0 %v2927
  %3075 = vmatpush.msra.mxu0 %v2926
  %3076 = vmatpush.msra.mxu0 %v2925
  %3077 = vmatpush.msra.mxu0 %v2924
  %3078 = vmatpush.msra.mxu0 %v2923
  %3079 = vmatpush.msra.mxu0 %v2922
  %3080 = vmatpush.msra.mxu0 %v2921
  %3081 = vmatmul.f32.gmra.mxu0 %v2987
  %v3082 = vpop.f32.mrf.mxu0
  %v3083 = vadd.f32 0.0, %v3082
  %3084 = vmatmul.f32.gmra.mxu0 %v2988
  %v3085 = vpop.f32.mrf.mxu0
  %v3086 = vadd.f32 0.0, %v3085
  %3087 = vmatmul.f32.gmra.mxu0 %v2989
  %v3088 = vpop.f32.mrf.mxu0
  %v3089 = vadd.f32 0.0, %v3088
  %3090 = vmatmul.f32.gmra.mxu0 %v2990
  %v3091 = vpop.f32.mrf.mxu0
  %v3092 = vadd.f32 0.0, %v3091
  %3093 = vmatmul.f32.gmra.mxu0 %v2991
  %v3094 = vpop.f32.mrf.mxu0
  %v3095 = vadd.f32 0.0, %v3094
  %3096 = vmatmul.f32.gmra.mxu0 %v2992
  %v3097 = vpop.f32.mrf.mxu0
  %v3098 = vadd.f32 0.0, %v3097
  %3099 = vmatmul.f32.gmra.mxu0 %v2993
  %v3100 = vpop.f32.mrf.mxu0
  %v3101 = vadd.f32 0.0, %v3100
  %3102 = vdwg.mxu0
  %v3103 = vmul.f32 %v3083, %v2988
  %v3104 = vmul.f32 %v3086, %v2989
  %v3105 = vmul.f32 %v3089, %v2990
  %v3106 = vmul.f32 %v3092, %v2991
  %v3107 = vmul.f32 %v3095, %v2992
  %v3108 = vmul.f32 %v3098, %v2993
  %v3109 = vmul.f32 %v3101, %v2994
  %3110 = vadd.xlane.f32.xlu0 %v3103
  %v3111 = vpop.xlane.xlu0 %3110
  %3112 = vadd.xlane.f32.xlu0 %v3104
  %v3113 = vpop.xlane.xlu0 %3112
  %3114 = vadd.xlane.f32.xlu0 %v3105
  %v3115 = vpop.xlane.xlu0 %3114
  %3116 = vadd.xlane.f32.xlu0 %v3106
  %v3117 = vpop.xlane.xlu0 %3116
  %3118 = vadd.xlane.f32.xlu0 %v3107
  %v3119 = vpop.xlane.xlu0 %3118
  %3120 = vadd.xlane.f32.xlu0 %v3108
  %v3121 = vpop.xlane.xlu0 %3120
  %3122 = vadd.xlane.f32.xlu0 %v3109
  %v3123 = vpop.xlane.xlu0 %3122
  %v3124 = vmul.f32 %v3111, %v3010
  %v3125 = vmul.f32 %v3113, %v3011
  %v3126 = vmul.f32 %v3115, %v3012
  %v3127 = vmul.f32 %v3117, %v3013
  %v3128 = vmul.f32 %v3119, %v3014
  %v3129 = vmul.f32 %v3121, %v3015
  %v3130 = vmul.f32 %v3123, %v3016
  %v3131 = vsel %vm3049, %v3124, 0.0
  %v3132 = vsel %vm3049, %v3125, 0.0
  %v3133 = vadd.f32 %v3131, %v3132
  %v3134 = vsel %vm3049, %v3126, 0.0
  %v3135 = vadd.f32 %v3133, %v3134
  %v3136 = vsel %vm3049, %v3127, 0.0
  %v3137 = vadd.f32 %v3135, %v3136
  %v3138 = vsel %vm3049, %v3128, 0.0
  %v3139 = vadd.f32 %v3137, %v3138
  %v3140 = vsel %vm3049, %v3129, 0.0
  %v3141 = vadd.f32 %v3139, %v3140
  %v3142 = vsel %vm3049, %v3130, 0.0
  %v3143 = vadd.f32 %v3141, %v3142
  %v3145 = vperm.slane %v2919, 0
  %v3147 = vmul.f32 %v2987, %v3145
  %3148 = vadd.xlane.f32.xlu0 %v3147
  %v3149 = vpop.xlane.xlu0 %3148
  %v3150 = vsub.s32 %v1511, 1
  %v3151 = vsub.s32 %v1512, 1
  %v3152 = vsub.s32 %v1513, 1
  %v3153 = vsub.s32 %v1514, 1
  %v3154 = vsub.s32 %v1515, 1
  %v3155 = vsub.s32 %v1516, 1
  %v3156 = vsub.s32 %v1517, 1
  %v3157 = vsub.s32 %v1518, 1
  %vm3158 = vcmp.eq.s32.totalorder %v3150, 0
  %vm3159 = vcmp.eq.s32.totalorder %v3151, 1
  %vm3160 = vcmp.eq.s32.totalorder %v3152, 2
  %vm3161 = vcmp.eq.s32.totalorder %v3153, 3
  %vm3162 = vcmp.eq.s32.totalorder %v3154, 4
  %vm3163 = vcmp.eq.s32.totalorder %v3155, 5
  %vm3164 = vcmp.eq.s32.totalorder %v3156, 6
  %vm3165 = vcmp.eq.s32.totalorder %v3157, 7
  %v3166 = vsel %vm3158, 1, 0
  %v3167 = vsel %vm3159, 1, 0
  %v3168 = vsel %vm3160, 1, 0
  %v3169 = vsel %vm3161, 1, 0
  %v3170 = vsel %vm3162, 1, 0
  %v3171 = vsel %vm3163, 1, 0
  %v3172 = vsel %vm3164, 1, 0
  %v3173 = vsel %vm3165, 1, 0
  %v3174 = vcvt.s32.f32 %v3166
  %v3175 = vcvt.s32.f32 %v3167
  %v3176 = vcvt.s32.f32 %v3168
  %v3177 = vcvt.s32.f32 %v3169
  %v3178 = vcvt.s32.f32 %v3170
  %v3179 = vcvt.s32.f32 %v3171
  %v3180 = vcvt.s32.f32 %v3172
  %v3181 = vcvt.s32.f32 %v3173
  %v3183 = vperm.slane %v2920, 0
  %v3185 = vmul.f32 %v2987, %v3183
  %v3186 = vmul.f32 %v2988, %v3183
  %v3187 = vmul.f32 %v2989, %v3183
  %v3188 = vmul.f32 %v2990, %v3183
  %v3189 = vmul.f32 %v2991, %v3183
  %v3190 = vmul.f32 %v2992, %v3183
  %v3191 = vmul.f32 %v2993, %v3183
  %v3192 = vmul.f32 %v2994, %v3183
  %3193 = vadd.xlane.f32.xlu0 %v3185
  %v3194 = vpop.xlane.xlu0 %3193
  %3195 = vadd.xlane.f32.xlu0 %v3186
  %v3196 = vpop.xlane.xlu0 %3195
  %3197 = vadd.xlane.f32.xlu0 %v3187
  %v3198 = vpop.xlane.xlu0 %3197
  %3199 = vadd.xlane.f32.xlu0 %v3188
  %v3200 = vpop.xlane.xlu0 %3199
  %3201 = vadd.xlane.f32.xlu0 %v3189
  %v3202 = vpop.xlane.xlu0 %3201
  %3203 = vadd.xlane.f32.xlu0 %v3190
  %v3204 = vpop.xlane.xlu0 %3203
  %3205 = vadd.xlane.f32.xlu0 %v3191
  %v3206 = vpop.xlane.xlu0 %3205
  %3207 = vadd.xlane.f32.xlu0 %v3192
  %v3208 = vpop.xlane.xlu0 %3207
  %v3209 = vmul.f32 %v3194, %v3174
  %v3210 = vmul.f32 %v3196, %v3175
  %v3211 = vmul.f32 %v3198, %v3176
  %v3212 = vmul.f32 %v3200, %v3177
  %v3213 = vmul.f32 %v3202, %v3178
  %v3214 = vmul.f32 %v3204, %v3179
  %v3215 = vmul.f32 %v3206, %v3180
  %v3216 = vmul.f32 %v3208, %v3181
  %v3217 = vsel %vm3049, %v3209, 0.0
  %v3218 = vsel %vm3049, %v3210, 0.0
  %v3219 = vadd.f32 %v3217, %v3218
  %v3220 = vsel %vm3049, %v3211, 0.0
  %v3221 = vadd.f32 %v3219, %v3220
  %v3222 = vsel %vm3049, %v3212, 0.0
  %v3223 = vadd.f32 %v3221, %v3222
  %v3224 = vsel %vm3049, %v3213, 0.0
  %v3225 = vadd.f32 %v3223, %v3224
  %v3226 = vsel %vm3049, %v3214, 0.0
  %v3227 = vadd.f32 %v3225, %v3226
  %v3228 = vsel %vm3049, %v3215, 0.0
  %v3229 = vadd.f32 %v3227, %v3228
  %v3230 = vsel %vm3049, %v3216, 0.0
  %v3231 = vadd.f32 %v3229, %v3230
  %v3232 = vadd.f32 %v3064, %v3143
  %v3233 = vadd.f32 %v3232, %v3149
  %v3234 = vadd.f32 %v3233, %v3231
  %v3235 = vmax.f32 %v2921, %v2925
  %v3236 = vmax.f32 %v2922, %v2926
  %v3237 = vmax.f32 %v2923, %v2927
  %v3238 = vmax.f32 %v2924, %v2928
  %v3239 = vmax.f32 %v3235, %v2929
  %v3240 = vmax.f32 %v3236, %v2930
  %v3241 = vmax.f32 %v3237, %v2931
  %v3242 = vmax.f32 %v3238, %v2932
  %v3243 = vmax.f32 %v3239, %v2933
  %v3244 = vmax.f32 %v3240, %v2934
  %v3245 = vmax.f32 %v3241, %v2935
  %v3246 = vmax.f32 %v3242, %v2936
  %v3247 = vmax.f32 %v3243, %v3244
  %v3248 = vmax.f32 %v3245, %v3246
  %v3249 = vmax.f32 %v3247, %v3248
  %v3250 = vrot.slane %v3249, 4
  %v3251 = vmax.f32 %v3249, %v3250
  %v3252 = vrot.slane %v3251, 2
  %v3253 = vmax.f32 %v3251, %v3252
  %v3254 = vrot.slane %v3253, 1
  %v3255 = vmax.f32 %v3253, %v3254
  %v3256 = vsub.f32 %v2921, %v3255
  %v3257 = vsub.f32 %v2922, %v3255
  %v3258 = vsub.f32 %v2923, %v3255
  %v3259 = vsub.f32 %v2924, %v3255
  %v3260 = vsub.f32 %v2925, %v3255
  %v3261 = vsub.f32 %v2926, %v3255
  %v3262 = vsub.f32 %v2927, %v3255
  %v3263 = vsub.f32 %v2928, %v3255
  %v3264 = vsub.f32 %v2929, %v3255
  %v3265 = vsub.f32 %v2930, %v3255
  %v3266 = vsub.f32 %v2931, %v3255
  %v3267 = vsub.f32 %v2932, %v3255
  %v3268 = vsub.f32 %v2933, %v3255
  %v3269 = vsub.f32 %v2934, %v3255
  %v3270 = vsub.f32 %v2935, %v3255
  %v3271 = vsub.f32 %v2936, %v3255
  %v3272 = vmul.f32 %v3256, 1.442695
  %v3273 = vpow.pop %v3272
  %v3274 = vmul.f32 %v3257, 1.442695
  %v3275 = vpow.pop %v3274
  %v3276 = vmul.f32 %v3258, 1.442695
  %v3277 = vpow.pop %v3276
  %v3278 = vmul.f32 %v3259, 1.442695
  %v3279 = vpow.pop %v3278
  %v3280 = vmul.f32 %v3260, 1.442695
  %v3281 = vpow.pop %v3280
  %v3282 = vmul.f32 %v3261, 1.442695
  %v3283 = vpow.pop %v3282
  %v3284 = vmul.f32 %v3262, 1.442695
  %v3285 = vpow.pop %v3284
  %v3286 = vmul.f32 %v3263, 1.442695
  %v3287 = vpow.pop %v3286
  %v3288 = vmul.f32 %v3264, 1.442695
  %v3289 = vpow.pop %v3288
  %v3290 = vmul.f32 %v3265, 1.442695
  %v3291 = vpow.pop %v3290
  %v3292 = vmul.f32 %v3266, 1.442695
  %v3293 = vpow.pop %v3292
  %v3294 = vmul.f32 %v3267, 1.442695
  %v3295 = vpow.pop %v3294
  %v3296 = vmul.f32 %v3268, 1.442695
  %v3297 = vpow.pop %v3296
  %v3298 = vmul.f32 %v3269, 1.442695
  %v3299 = vpow.pop %v3298
  %v3300 = vmul.f32 %v3270, 1.442695
  %v3301 = vpow.pop %v3300
  %v3302 = vmul.f32 %v3271, 1.442695
  %v3303 = vpow.pop %v3302
  %v3304 = vadd.f32 %v3145, %v2911
  %3305 = vmax.xlane.f32.xlu0 %v3304
  %v3306 = vpop.xlane.xlu0 %3305
  %v3307 = vsub.f32 %v3304, %v3306
  %v3308 = vmul.f32 %v3307, 1.442695
  %v3309 = vpow.pop %v3308
  %3310 = vmatpush.msra.mxu0 %v3303
  %3311 = vmatpush.msra.mxu0 %v3301
  %3312 = vmatpush.msra.mxu0 %v3299
  %3313 = vmatpush.msra.mxu0 %v3297
  %3314 = vmatpush.msra.mxu0 %v3295
  %3315 = vmatpush.msra.mxu0 %v3293
  %3316 = vmatpush.msra.mxu0 %v3291
  %3317 = vmatpush.msra.mxu0 %v3289
  %3318 = vmatpush.msra.mxu0 %v3287
  %3319 = vmatpush.msra.mxu0 %v3285
  %3320 = vmatpush.msra.mxu0 %v3283
  %3321 = vmatpush.msra.mxu0 %v3281
  %3322 = vmatpush.msra.mxu0 %v3279
  %3323 = vmatpush.msra.mxu0 %v3277
  %3324 = vmatpush.msra.mxu0 %v3275
  %3325 = vmatpush.msra.mxu0 %v3273
  %3326 = vmatmul.f32.gmra.mxu0 %v3309
  %v3327 = vpop.f32.mrf.mxu0
  %v3328 = vadd.f32 0.0, %v3327
  %3329 = vdwg.mxu0
  %v3330 = vadd.f32 %v3306, %v3255
  %v3331 = vmax.f32 %v3328, 1e-30
  %v3332 = vlog2.pop %v3331
  %v3333 = vmul.f32 %v3332, 0.6931472
  %v3334 = vadd.f32 %v3330, %v3333
  %v3335 = vadd.f32 %v2912, %v3334
  %v3336 = vsel %vm1843, %v3335, %v3304
  %3337 = vmax.xlane.f32.xlu0 %v3336
  %v3338 = vpop.xlane.xlu0 %3337
  %v3339 = vsub.f32 %v3336, %v3338
  %v3340 = vmul.f32 %v3339, 1.442695
  %v3341 = vpow.pop %v3340
  %3342 = vmatpush.msra.mxu0 %v3303
  %3343 = vmatpush.msra.mxu0 %v3301
  %3344 = vmatpush.msra.mxu0 %v3299
  %3345 = vmatpush.msra.mxu0 %v3297
  %3346 = vmatpush.msra.mxu0 %v3295
  %3347 = vmatpush.msra.mxu0 %v3293
  %3348 = vmatpush.msra.mxu0 %v3291
  %3349 = vmatpush.msra.mxu0 %v3289
  %3350 = vmatpush.msra.mxu0 %v3287
  %3351 = vmatpush.msra.mxu0 %v3285
  %3352 = vmatpush.msra.mxu0 %v3283
  %3353 = vmatpush.msra.mxu0 %v3281
  %3354 = vmatpush.msra.mxu0 %v3279
  %3355 = vmatpush.msra.mxu0 %v3277
  %3356 = vmatpush.msra.mxu0 %v3275
  %3357 = vmatpush.msra.mxu0 %v3273
  %3358 = vmatmul.f32.gmra.mxu0 %v3341
  %v3359 = vpop.f32.mrf.mxu0
  %v3360 = vadd.f32 0.0, %v3359
  %3361 = vdwg.mxu0
  %v3362 = vadd.f32 %v3338, %v3255
  %v3363 = vmax.f32 %v3360, 1e-30
  %v3364 = vlog2.pop %v3363
  %v3365 = vmul.f32 %v3364, 0.6931472
  %v3366 = vadd.f32 %v3362, %v3365
  %v3367 = vadd.f32 %v2913, %v3366
  %v3368 = vsel %vm2003, %v3367, %v3336
  %3369 = vmax.xlane.f32.xlu0 %v3368
  %v3370 = vpop.xlane.xlu0 %3369
  %v3371 = vsub.f32 %v3368, %v3370
  %v3372 = vmul.f32 %v3371, 1.442695
  %v3373 = vpow.pop %v3372
  %3374 = vmatpush.msra.mxu0 %v3303
  %3375 = vmatpush.msra.mxu0 %v3301
  %3376 = vmatpush.msra.mxu0 %v3299
  %3377 = vmatpush.msra.mxu0 %v3297
  %3378 = vmatpush.msra.mxu0 %v3295
  %3379 = vmatpush.msra.mxu0 %v3293
  %3380 = vmatpush.msra.mxu0 %v3291
  %3381 = vmatpush.msra.mxu0 %v3289
  %3382 = vmatpush.msra.mxu0 %v3287
  %3383 = vmatpush.msra.mxu0 %v3285
  %3384 = vmatpush.msra.mxu0 %v3283
  %3385 = vmatpush.msra.mxu0 %v3281
  %3386 = vmatpush.msra.mxu0 %v3279
  %3387 = vmatpush.msra.mxu0 %v3277
  %3388 = vmatpush.msra.mxu0 %v3275
  %3389 = vmatpush.msra.mxu0 %v3273
  %3390 = vmatmul.f32.gmra.mxu0 %v3373
  %v3391 = vpop.f32.mrf.mxu0
  %v3392 = vadd.f32 0.0, %v3391
  %3393 = vdwg.mxu0
  %v3394 = vadd.f32 %v3370, %v3255
  %v3395 = vmax.f32 %v3392, 1e-30
  %v3396 = vlog2.pop %v3395
  %v3397 = vmul.f32 %v3396, 0.6931472
  %v3398 = vadd.f32 %v3394, %v3397
  %v3399 = vadd.f32 %v2914, %v3398
  %v3400 = vsel %vm2163, %v3399, %v3368
  %3401 = vmax.xlane.f32.xlu0 %v3400
  %v3402 = vpop.xlane.xlu0 %3401
  %v3403 = vsub.f32 %v3400, %v3402
  %v3404 = vmul.f32 %v3403, 1.442695
  %v3405 = vpow.pop %v3404
  %3406 = vmatpush.msra.mxu0 %v3303
  %3407 = vmatpush.msra.mxu0 %v3301
  %3408 = vmatpush.msra.mxu0 %v3299
  %3409 = vmatpush.msra.mxu0 %v3297
  %3410 = vmatpush.msra.mxu0 %v3295
  %3411 = vmatpush.msra.mxu0 %v3293
  %3412 = vmatpush.msra.mxu0 %v3291
  %3413 = vmatpush.msra.mxu0 %v3289
  %3414 = vmatpush.msra.mxu0 %v3287
  %3415 = vmatpush.msra.mxu0 %v3285
  %3416 = vmatpush.msra.mxu0 %v3283
  %3417 = vmatpush.msra.mxu0 %v3281
  %3418 = vmatpush.msra.mxu0 %v3279
  %3419 = vmatpush.msra.mxu0 %v3277
  %3420 = vmatpush.msra.mxu0 %v3275
  %3421 = vmatpush.msra.mxu0 %v3273
  %3422 = vmatmul.f32.gmra.mxu0 %v3405
  %v3423 = vpop.f32.mrf.mxu0
  %v3424 = vadd.f32 0.0, %v3423
  %3425 = vdwg.mxu0
  %v3426 = vadd.f32 %v3402, %v3255
  %v3427 = vmax.f32 %v3424, 1e-30
  %v3428 = vlog2.pop %v3427
  %v3429 = vmul.f32 %v3428, 0.6931472
  %v3430 = vadd.f32 %v3426, %v3429
  %v3431 = vadd.f32 %v2915, %v3430
  %v3432 = vsel %vm2169, %v3431, %v3400
  %3433 = vmax.xlane.f32.xlu0 %v3432
  %v3434 = vpop.xlane.xlu0 %3433
  %v3435 = vsub.f32 %v3432, %v3434
  %v3436 = vmul.f32 %v3435, 1.442695
  %v3437 = vpow.pop %v3436
  %3438 = vmatpush.msra.mxu0 %v3303
  %3439 = vmatpush.msra.mxu0 %v3301
  %3440 = vmatpush.msra.mxu0 %v3299
  %3441 = vmatpush.msra.mxu0 %v3297
  %3442 = vmatpush.msra.mxu0 %v3295
  %3443 = vmatpush.msra.mxu0 %v3293
  %3444 = vmatpush.msra.mxu0 %v3291
  %3445 = vmatpush.msra.mxu0 %v3289
  %3446 = vmatpush.msra.mxu0 %v3287
  %3447 = vmatpush.msra.mxu0 %v3285
  %3448 = vmatpush.msra.mxu0 %v3283
  %3449 = vmatpush.msra.mxu0 %v3281
  %3450 = vmatpush.msra.mxu0 %v3279
  %3451 = vmatpush.msra.mxu0 %v3277
  %3452 = vmatpush.msra.mxu0 %v3275
  %3453 = vmatpush.msra.mxu0 %v3273
  %3454 = vmatmul.f32.gmra.mxu0 %v3437
  %v3455 = vpop.f32.mrf.mxu0
  %v3456 = vadd.f32 0.0, %v3455
  %3457 = vdwg.mxu0
  %v3458 = vadd.f32 %v3434, %v3255
  %v3459 = vmax.f32 %v3456, 1e-30
  %v3460 = vlog2.pop %v3459
  %v3461 = vmul.f32 %v3460, 0.6931472
  %v3462 = vadd.f32 %v3458, %v3461
  %v3463 = vadd.f32 %v2916, %v3462
  %v3464 = vsel %vm2009, %v3463, %v3432
  %3465 = vmax.xlane.f32.xlu0 %v3464
  %v3466 = vpop.xlane.xlu0 %3465
  %v3467 = vsub.f32 %v3464, %v3466
  %v3468 = vmul.f32 %v3467, 1.442695
  %v3469 = vpow.pop %v3468
  %3470 = vmatpush.msra.mxu0 %v3303
  %3471 = vmatpush.msra.mxu0 %v3301
  %3472 = vmatpush.msra.mxu0 %v3299
  %3473 = vmatpush.msra.mxu0 %v3297
  %3474 = vmatpush.msra.mxu0 %v3295
  %3475 = vmatpush.msra.mxu0 %v3293
  %3476 = vmatpush.msra.mxu0 %v3291
  %3477 = vmatpush.msra.mxu0 %v3289
  %3478 = vmatpush.msra.mxu0 %v3287
  %3479 = vmatpush.msra.mxu0 %v3285
  %3480 = vmatpush.msra.mxu0 %v3283
  %3481 = vmatpush.msra.mxu0 %v3281
  %3482 = vmatpush.msra.mxu0 %v3279
  %3483 = vmatpush.msra.mxu0 %v3277
  %3484 = vmatpush.msra.mxu0 %v3275
  %3485 = vmatpush.msra.mxu0 %v3273
  %3486 = vmatmul.f32.gmra.mxu0 %v3469
  %v3487 = vpop.f32.mrf.mxu0
  %v3488 = vadd.f32 0.0, %v3487
  %3489 = vdwg.mxu0
  %v3490 = vadd.f32 %v3466, %v3255
  %v3491 = vmax.f32 %v3488, 1e-30
  %v3492 = vlog2.pop %v3491
  %v3493 = vmul.f32 %v3492, 0.6931472
  %v3494 = vadd.f32 %v3490, %v3493
  %v3495 = vadd.f32 %v2917, %v3494
  %v3496 = vsel %vm1849, %v3495, %v3464
  %3497 = vmax.xlane.f32.xlu0 %v3496
  %v3498 = vpop.xlane.xlu0 %3497
  %v3499 = vsub.f32 %v3496, %v3498
  %v3500 = vmul.f32 %v3499, 1.442695
  %v3501 = vpow.pop %v3500
  %3502 = vmatpush.msra.mxu0 %v3303
  %3503 = vmatpush.msra.mxu0 %v3301
  %3504 = vmatpush.msra.mxu0 %v3299
  %3505 = vmatpush.msra.mxu0 %v3297
  %3506 = vmatpush.msra.mxu0 %v3295
  %3507 = vmatpush.msra.mxu0 %v3293
  %3508 = vmatpush.msra.mxu0 %v3291
  %3509 = vmatpush.msra.mxu0 %v3289
  %3510 = vmatpush.msra.mxu0 %v3287
  %3511 = vmatpush.msra.mxu0 %v3285
  %3512 = vmatpush.msra.mxu0 %v3283
  %3513 = vmatpush.msra.mxu0 %v3281
  %3514 = vmatpush.msra.mxu0 %v3279
  %3515 = vmatpush.msra.mxu0 %v3277
  %3516 = vmatpush.msra.mxu0 %v3275
  %3517 = vmatpush.msra.mxu0 %v3273
  %3518 = vmatmul.f32.gmra.mxu0 %v3501
  %v3519 = vpop.f32.mrf.mxu0
  %v3520 = vadd.f32 0.0, %v3519
  %3521 = vdwg.mxu0
  %v3522 = vadd.f32 %v3498, %v3255
  %v3523 = vmax.f32 %v3520, 1e-30
  %v3524 = vlog2.pop %v3523
  %v3525 = vmul.f32 %v3524, 0.6931472
  %v3526 = vadd.f32 %v3522, %v3525
  %v3527 = vadd.f32 %v2918, %v3526
  %v3528 = vsel %vm1691, %v3527, %v3496
  %v3529 = vadd.f32 %v3528, %v3183
  %3530 = vmax.xlane.f32.xlu0 %v3529
  %v3531 = vpop.xlane.xlu0 %3530
  %v3532 = vsub.f32 %v3529, %v3531
  %v3533 = vmul.f32 %v3532, 1.442695
  %v3534 = vpow.pop %v3533
  %3535 = vadd.xlane.f32.xlu0 %v3534
  %v3536 = vpop.xlane.xlu0 %3535
  %v3537 = vlog2.pop %v3536
  %v3538 = vmul.f32 %v3537, 0.6931472
  %v3539 = vadd.f32 %v3531, %v3538
  %v3540 = vsub.f32 %v3539, %v3234
  %3541 = vst.msk [vmem:[%s19] sm:$0xff] %vm3049, %v3540
  // Predicated region
  $region78: #{ner_forward.1} parent=0 // pred_check
    _
  $region79: #{ner_forward.1} parent=0 // pred_check_branch
    %3543 = sbr.rel (0) target = $region81
  $region80: #{ner_forward.1} parent=0 // pred_region
    _
  $region81: #{ner_forward.1} parent=0 // pred_fallthru
    _
  // Predicated region
  $region82: #{ner_forward.1} parent=0 // pred_check
    _
  $region83: #{ner_forward.1} parent=0 // pred_check_branch
    %3545 = sbr.rel (0) target = $region85
  $region84: #{ner_forward.1} parent=0 // pred_region
    _
  $region85: #{ner_forward.1} parent=0 // pred_fallthru
    _

</llo_original>
